<compile_context>
chip_gen: v7x
topology: tpu7x:2x2x1
jax: 0.10.0
libtpu: 0.0.40
codegen_flags: <defaults>
</compile_context>

<pallas_src>
import functools

import jax
import jax.numpy as jnp
from jax.experimental import pallas as pl
from jax.experimental.pallas import tpu as pltpu

EPS = 1e-5        # nn.BatchNorm1d default eps
HID = 256         # GCN hidden width
FC2_PAD = 256     # fc2 width 196 zero-padded to a lane-dense 256
TM = 256          # node-row tile of the aggregation matmul
TK = 256          # node-column (reduction) tile of A_hat


def _round_up(v, m):
    return (v + m - 1) // m * m


def _pick_tile(n_pad):
    """Largest elementwise row tile (<=1024) that divides n_pad."""
    for t in (1024, 512, 256):
        if n_pad % t == 0:
            return t
    return TM


def _cp(dims):
    return pltpu.CompilerParams(dimension_semantics=dims,
                                vmem_limit_bytes=32 * 1024 * 1024)


# ---------------------------------------------------------------------------
# kernel 1: graph aggregation with fused epilogue
#   acc = sum_k A[i,k] @ B[k]                       (f32 accumulator)
#   at last k:  M = (acc [@ W] + bias) * row_mask   (optional W for layer 1)
#               emit M (bf16) + per-row-tile BN partial sums (f32)
#   grid = (row tiles [parallel], k tiles [arbitrary])
# ---------------------------------------------------------------------------
def _aggregate(a_bf16, b_bf16, bias, row_mask, w=None):
    n_pad = a_bf16.shape[0]
    b_w = b_bf16.shape[1]
    apply_w = w is not None
    f_out = w.shape[1] if apply_w else b_w
    nm, nk = n_pad // TM, n_pad // TK

    def body(a_ref, b_ref, w_ref, bias_ref, mask_ref, m_ref, s_ref, q_ref, acc_ref):
        k = pl.program_id(1)

        @pl.when(k == 0)
        def _():
            acc_ref[...] = jnp.zeros_like(acc_ref)

        acc_ref[...] += jnp.dot(a_ref[...], b_ref[...],
                                preferred_element_type=jnp.float32)

        @pl.when(k == pl.num_programs(1) - 1)
        def _():
            acc = acc_ref[...]
            if apply_w:
                acc = jnp.dot(acc.astype(jnp.bfloat16), w_ref[...],
                              preferred_element_type=jnp.float32)
            m = (acc + bias_ref[...]) * mask_ref[...]
            m_ref[...] = m.astype(m_ref.dtype)
            s_ref[0] = jnp.sum(m, axis=0, keepdims=True)
            q_ref[0] = jnp.sum(m * m, axis=0, keepdims=True)

    if apply_w:
        kern = body
        extra_specs = [pl.BlockSpec((b_w, f_out), lambda i, k: (0, 0))]
        extra_args = [w]
    else:
        def kern(a_ref, b_ref, bias_ref, mask_ref, m_ref, s_ref, q_ref, acc_ref):
            body(a_ref, b_ref, None, bias_ref, mask_ref, m_ref, s_ref, q_ref, acc_ref)
        extra_specs = []
        extra_args = []

    flops = 2 * n_pad * n_pad * b_w + (2 * n_pad * b_w * f_out if apply_w else 0)
    return pl.pallas_call(
        kern,
        out_shape=(jax.ShapeDtypeStruct((n_pad, f_out), jnp.bfloat16),
                   jax.ShapeDtypeStruct((nm, 1, f_out), jnp.float32),
                   jax.ShapeDtypeStruct((nm, 1, f_out), jnp.float32)),
        grid=(nm, nk),
        in_specs=[pl.BlockSpec((TM, TK), lambda i, k: (i, k)),
                  pl.BlockSpec((TK, b_w), lambda i, k: (k, 0))]
                 + extra_specs
                 + [pl.BlockSpec((1, f_out), lambda i, k: (0, 0)),
                    pl.BlockSpec((TM, 1), lambda i, k: (i, 0))],
        out_specs=(pl.BlockSpec((TM, f_out), lambda i, k: (i, 0)),
                   pl.BlockSpec((1, 1, f_out), lambda i, k: (i, 0, 0)),
                   pl.BlockSpec((1, 1, f_out), lambda i, k: (i, 0, 0))),
        scratch_shapes=[pltpu.VMEM((TM, b_w), jnp.float32)],
        compiler_params=_cp(("parallel", "arbitrary")),
        cost_estimate=pl.CostEstimate(
            flops=flops,
            transcendentals=0,
            bytes_accessed=2 * n_pad * n_pad + 2 * n_pad * b_w + 2 * n_pad * f_out),
    )(a_bf16, b_bf16, *extra_args, bias, row_mask)


# ---------------------------------------------------------------------------
# BN scale/shift from fused stats (tiny, plain JAX)
# ---------------------------------------------------------------------------
def _bn_affine(s, q, gamma, beta, n_real):
    mean = s / n_real
    var = jnp.maximum(q / n_real - mean * mean, 0.0)
    scale = gamma * jax.lax.rsqrt(var + EPS)
    shift = beta - mean * scale
    return scale, shift


# ---------------------------------------------------------------------------
# kernel 2: layer-1 BN + ReLU fused with layer-2 feature transform
#   XW2_tile = relu(M1_tile * scale + shift) @ W2       (H1 never hits HBM)
# ---------------------------------------------------------------------------
def _bn_relu_matmul(m, scale, shift, w, tm_e):
    n_pad, f = m.shape
    f_out = w.shape[1]
    nm = n_pad // tm_e

    def kern(m_ref, sc_ref, sh_ref, w_ref, o_ref):
        h = jnp.maximum(m_ref[...].astype(jnp.float32) * sc_ref[...] + sh_ref[...],
                        0.0)
        o_ref[...] = jnp.dot(h.astype(jnp.bfloat16), w_ref[...],
                             preferred_element_type=jnp.float32).astype(o_ref.dtype)

    return pl.pallas_call(
        kern,
        out_shape=jax.ShapeDtypeStruct((n_pad, f_out), jnp.bfloat16),
        grid=(nm,),
        in_specs=[pl.BlockSpec((tm_e, f), lambda i: (i, 0)),
                  pl.BlockSpec((1, f), lambda i: (0, 0)),
                  pl.BlockSpec((1, f), lambda i: (0, 0)),
                  pl.BlockSpec((f, f_out), lambda i: (0, 0))],
        out_specs=pl.BlockSpec((tm_e, f_out), lambda i: (i, 0)),
        compiler_params=_cp(("parallel",)),
        cost_estimate=pl.CostEstimate(
            flops=2 * n_pad * f * f_out,
            transcendentals=0,
            bytes_accessed=2 * n_pad * f + 2 * f * f_out + 2 * n_pad * f_out),
    )(m, scale, shift, w)


# ---------------------------------------------------------------------------
# kernel 3: layer-2 BN + ReLU fused with global mean pooling
#   per row tile i:  partial_i = P[:, tile_i] @ relu(M2_tile * scale + shift)
#   (H2 never hits HBM; per-tile partials keep the row axis parallel on v7x)
# ---------------------------------------------------------------------------
def _bn_relu_pool(m, scale, shift, p_bf16, tm_e):
    n_pad, f = m.shape
    b_pad = p_bf16.shape[0]
    nm = n_pad // tm_e

    def kern(m_ref, sc_ref, sh_ref, p_ref, hg_ref):
        h = jnp.maximum(m_ref[...].astype(jnp.float32) * sc_ref[...] + sh_ref[...],
                        0.0)
        hg_ref[0] = jnp.dot(p_ref[...], h.astype(jnp.bfloat16),
                            preferred_element_type=jnp.float32)

    return pl.pallas_call(
        kern,
        out_shape=jax.ShapeDtypeStruct((nm, b_pad, f), jnp.float32),
        grid=(nm,),
        in_specs=[pl.BlockSpec((tm_e, f), lambda i: (i, 0)),
                  pl.BlockSpec((1, f), lambda i: (0, 0)),
                  pl.BlockSpec((1, f), lambda i: (0, 0)),
                  pl.BlockSpec((b_pad, tm_e), lambda i: (0, i))],
        out_specs=pl.BlockSpec((1, b_pad, f), lambda i: (i, 0, 0)),
        compiler_params=_cp(("parallel",)),
        cost_estimate=pl.CostEstimate(
            flops=2 * b_pad * n_pad * f,
            transcendentals=0,
            bytes_accessed=2 * n_pad * f + 2 * b_pad * n_pad + 4 * nm * b_pad * f),
    )(m, scale, shift, p_bf16)


# ---------------------------------------------------------------------------
# kernel 4: MLP head on pooled graphs  (fc2 -> bn3 -> relu -> fc3), single step
# ---------------------------------------------------------------------------
def _head(hg, wf2, bf2, g3, be3, wf3, bf3, gmask, n_graphs_real):
    b_pad, f = hg.shape
    fc2 = wf2.shape[1]
    d_out = wf3.shape[1]
    inv_b = 1.0 / float(n_graphs_real)

    def kern(hg_ref, wf2_ref, bf2_ref, g3_ref, be3_ref, wf3_ref, bf3_ref, gm_ref,
             out_ref):
        z = jnp.dot(hg_ref[...].astype(jnp.bfloat16), wf2_ref[...],
                    preferred_element_type=jnp.float32) + bf2_ref[...]
        z = z * gm_ref[...]                          # zero padded graph rows
        mean = jnp.sum(z, axis=0, keepdims=True) * inv_b
        var = jnp.maximum(jnp.sum(z * z, axis=0, keepdims=True) * inv_b
                          - mean * mean, 0.0)
        zn = jnp.maximum((z - mean) * jax.lax.rsqrt(var + EPS) * g3_ref[...]
                         + be3_ref[...], 0.0)
        out_ref[...] = jnp.dot(zn.astype(jnp.bfloat16), wf3_ref[...],
                               preferred_element_type=jnp.float32) + bf3_ref[...]

    return pl.pallas_call(
        kern,
        out_shape=jax.ShapeDtypeStruct((b_pad, d_out), jnp.float32),
        grid=(1,),
        in_specs=[pl.BlockSpec((b_pad, f), lambda i: (0, 0)),
                  pl.BlockSpec((f, fc2), lambda i: (0, 0)),
                  pl.BlockSpec((1, fc2), lambda i: (0, 0)),
                  pl.BlockSpec((1, fc2), lambda i: (0, 0)),
                  pl.BlockSpec((1, fc2), lambda i: (0, 0)),
                  pl.BlockSpec((fc2, d_out), lambda i: (0, 0)),
                  pl.BlockSpec((1, d_out), lambda i: (0, 0)),
                  pl.BlockSpec((b_pad, 1), lambda i: (0, 0))],
        out_specs=pl.BlockSpec((b_pad, d_out), lambda i: (0, 0)),
        compiler_params=_cp(("arbitrary",)),
    )(hg, wf2, bf2, g3, be3, wf3, bf3, gmask)


# ---------------------------------------------------------------------------
# full forward
# ---------------------------------------------------------------------------
def _gcn_forward_impl(a_hat, x, pool, params, n_nodes, n_graphs):
    n_pad = _round_up(max(n_nodes, TM), TM)
    b_pad = _round_up(max(n_graphs, 16), 16)
    f_in = x.shape[1]
    f_in_pad = _round_up(f_in, 128)
    fc2_dim = params["wf2"].shape[1]                 # 196
    dim_out = params["wf3"].shape[1]
    d_out_pad = _round_up(dim_out, 128)
    tm_e = _pick_tile(n_pad)                         # row tile for fused BN passes

    # pad graph operators / node features; cast matmul operands to bf16
    a_p = jnp.zeros((n_pad, n_pad), jnp.float32).at[:n_nodes, :n_nodes].set(a_hat)
    x_p = jnp.zeros((n_pad, f_in_pad), jnp.float32).at[:n_nodes, :f_in].set(x)
    p_p = jnp.zeros((b_pad, n_pad), jnp.float32).at[:n_graphs, :n_nodes].set(pool)
    row_mask = (jnp.arange(n_pad) < n_nodes).astype(jnp.float32)[:, None]
    g_mask = (jnp.arange(b_pad) < n_graphs).astype(jnp.float32)[:, None]

    a_bf = a_p.astype(jnp.bfloat16)
    x_bf = x_p.astype(jnp.bfloat16)
    p_bf = p_p.astype(jnp.bfloat16)

    w1 = jnp.zeros((f_in_pad, HID), jnp.float32).at[:f_in].set(
        params["w1"]).astype(jnp.bfloat16)
    w2 = params["w2"].astype(jnp.bfloat16)

    # fc2 / bn3 / fc3 padded to lane-dense widths
    wf2 = jnp.zeros((HID, FC2_PAD), jnp.float32).at[:, :fc2_dim].set(
        params["wf2"]).astype(jnp.bfloat16)
    bf2 = jnp.zeros((1, FC2_PAD), jnp.float32).at[:, :fc2_dim].set(params["bf2"])
    g3 = jnp.ones((1, FC2_PAD), jnp.float32).at[:, :fc2_dim].set(params["g3"])
    be3 = jnp.zeros((1, FC2_PAD), jnp.float32).at[:, :fc2_dim].set(params["be3"])
    wf3 = jnp.zeros((FC2_PAD, d_out_pad), jnp.float32).at[:fc2_dim, :dim_out].set(
        params["wf3"]).astype(jnp.bfloat16)
    bf3 = jnp.zeros((1, d_out_pad), jnp.float32).at[:, :dim_out].set(params["bf3"])

    # --- gc1 (reassociated): M1 = (A_hat @ X) @ W1 + b1, masked, stats fused ---
    m1, s1, q1 = _aggregate(a_bf, x_bf, params["b1"], row_mask, w=w1)
    scale1, shift1 = _bn_affine(jnp.sum(s1, axis=0), jnp.sum(q1, axis=0),
                                params["g1"], params["be1"], n_nodes)

    # --- bn1 + relu fused with gc2's feature transform: XW2 = H1 @ W2 ---
    xw2 = _bn_relu_matmul(m1, scale1, shift1, w2, tm_e)

    # --- gc2 aggregation: M2 = A_hat @ XW2 + b2, masked, stats fused ---
    m2, s2, q2 = _aggregate(a_bf, xw2, params["b2"], row_mask, w=None)
    scale2, shift2 = _bn_affine(jnp.sum(s2, axis=0), jnp.sum(q2, axis=0),
                                params["g2"], params["be2"], n_nodes)

    # --- bn2 + relu fused with global mean pooling: hg = P @ H2 ---
    hg_parts = _bn_relu_pool(m2, scale2, shift2, p_bf, tm_e)
    hg = jnp.sum(hg_parts, axis=0)                   # (b_pad, 256) f32

    # --- MLP head: fc2 -> bn3 -> relu -> fc3 ---
    out_p = _head(hg, wf2, bf2, g3, be3, wf3, bf3, g_mask, n_graphs)
    return out_p[:n_graphs, :dim_out], hg[:n_graphs]


gcn_forward = jax.jit(_gcn_forward_impl, static_argnums=(4, 5))


# ---------------------------------------------------------------------------
# plain-JAX glue: dense graph operators + parameter init
# ---------------------------------------------------------------------------
def build_dense_graph_ops(edge_index, batch, num_nodes, num_graphs):
    """Dense GCN-normalized adjacency (with self-loops) and mean-pool matrix."""
    src, dst = edge_index[0], edge_index[1]
    adj = jnp.zeros((num_nodes, num_nodes), jnp.float32)
    # message flows src -> dst : out[dst] += x[src]; .add so multi-edges accumulate
    adj = adj.at[dst, src].add(1.0)
    adj = adj + jnp.eye(num_nodes, dtype=jnp.float32)           # self-loops
    deg = jnp.sum(adj, axis=1)
    dinv = jax.lax.rsqrt(deg)
    a_hat = adj * dinv[:, None] * dinv[None, :]                 # D^-1/2 (A+I) D^-1/2

    one_hot = (batch[None, :] == jnp.arange(num_graphs)[:, None]).astype(jnp.float32)
    counts = jnp.sum(one_hot, axis=1, keepdims=True)
    pool = one_hot / jnp.maximum(counts, 1.0)                   # (B, N) mean pooling
    return a_hat, pool


def init_params(key, num_node_feats, dim_out):
    ks = jax.random.split(key, 8)
    scale = 0.1
    return {
        # GCNConv weights stored as (in, out) for x @ W
        "w1": scale * jax.random.normal(ks[0], (num_node_feats, 256), jnp.float32),
        "b1": jnp.zeros((1, 256), jnp.float32),
        "g1": jnp.ones((1, 256), jnp.float32),
        "be1": jnp.zeros((1, 256), jnp.float32),
        "w2": scale * jax.random.normal(ks[1], (256, 256), jnp.float32),
        "b2": jnp.zeros((1, 256), jnp.float32),
        "g2": jnp.ones((1, 256), jnp.float32),
        "be2": jnp.zeros((1, 256), jnp.float32),
        "wf2": scale * jax.random.normal(ks[2], (256, 196), jnp.float32),
        "bf2": scale * jax.random.normal(ks[3], (1, 196), jnp.float32),
        "g3": jnp.ones((1, 196), jnp.float32),
        "be3": jnp.zeros((1, 196), jnp.float32),
        "wf3": scale * jax.random.normal(ks[4], (196, dim_out), jnp.float32),
        "bf3": scale * jax.random.normal(ks[5], (1, dim_out), jnp.float32),
    }


if __name__ == "__main__":
    key = jax.random.PRNGKey(0)
    num_node_feats = 32
    dim_out = 16
    num_graphs = 4
    nodes_per_graph = 8
    num_nodes = num_graphs * nodes_per_graph   # 32 nodes total

    kx, kp = jax.random.split(key)
    x = jax.random.normal(kx, (num_nodes, num_node_feats), jnp.float32)

    # Deterministic symmetric edges: a ring inside each graph (both directions).
    src_list, dst_list = [], []
    for g in range(num_graphs):
        base = g * nodes_per_graph
        for i in range(nodes_per_graph):
            a_i = base + i
            b_i = base + (i + 1) % nodes_per_graph
            src_list += [a_i, b_i]
            dst_list += [b_i, a_i]
    edge_index = jnp.array([src_list, dst_list], dtype=jnp.int32)   # (2, E)
    batch = jnp.repeat(jnp.arange(num_graphs, dtype=jnp.int32), nodes_per_graph)

    a_hat, pool = build_dense_graph_ops(edge_index, batch, num_nodes, num_graphs)
    params = init_params(kp, num_node_feats, dim_out)

    out, hg = gcn_forward(a_hat, x, pool, params, num_nodes, num_graphs)
    jax.block_until_ready((out, hg))

    assert out.shape == (num_graphs, dim_out)
    assert hg.shape == (num_graphs, 256)
    print("KERNEL_OK")
</pallas_src>

<mosaic_0001>
module attributes {stable_mosaic.version = 11 : i64} {
  func.func @body(%arg0: i32, %arg1: i32, %arg2: memref<256x256xbf16, #tpu.memory_space<vmem>>, %arg3: memref<256x128xbf16, #tpu.memory_space<vmem>>, %arg4: memref<128x256xbf16, #tpu.memory_space<vmem>>, %arg5: memref<1x256xf32, #tpu.memory_space<vmem>>, %arg6: memref<256x1xf32, #tpu.memory_space<vmem>>, %arg7: memref<256x256xbf16, #tpu.memory_space<vmem>>, %arg8: memref<1x1x256xf32, #tpu.memory_space<vmem>>, %arg9: memref<1x1x256xf32, #tpu.memory_space<vmem>>, %arg10: memref<256x128xf32, #tpu.memory_space<vmem>>) attributes {dimension_semantics = [#tpu.dimension_semantics<parallel>, #tpu.dimension_semantics<arbitrary>], iteration_bounds = array<i64: 1, 1>, scalar_prefetch = 0 : i64, scratch_operands = 1 : i64, tpu.core_type = #tpu.core_type<tc>, window_params = [{transform_indices = @transform_0, window_bounds = array<i64: 256, 256>}, {transform_indices = @transform_1, window_bounds = array<i64: 256, 128>}, {pipeline_mode = #tpu.pipeline_mode<synchronous>, transform_indices = @transform_2, window_bounds = array<i64: 128, 256>}, {pipeline_mode = #tpu.pipeline_mode<synchronous>, transform_indices = @transform_3, window_bounds = array<i64: 1, 256>}, {transform_indices = @transform_4, window_bounds = array<i64: 256, 1>}, {transform_indices = @transform_5, window_bounds = array<i64: 256, 256>}, {transform_indices = @transform_6, window_bounds = array<i64: 1, 1, 256>}, {transform_indices = @transform_7, window_bounds = array<i64: 1, 1, 256>}]} {
    %c0_i32 = arith.constant 0 : i32
    %0 = arith.cmpi eq, %arg1, %c0_i32 : i32
    %1 = arith.extui %0 : i1 to i32
    %c0_i32_0 = arith.constant 0 : i32
    %2 = arith.cmpi ne, %1, %c0_i32_0 : i32
    scf.if %2 {
      %cst_10 = arith.constant 0.000000e+00 : f32
      %12 = vector.broadcast %cst_10 : f32 to vector<256x128xf32>
      %c0_11 = arith.constant 0 : index
      %c0_12 = arith.constant 0 : index
      %13 = vector.load %arg10[%c0_11, %c0_12] : memref<256x128xf32, #tpu.memory_space<vmem>>, vector<256x128xf32>
      tpu.vector_store %arg10[%c0_11, %c0_12], %12 {strides = array<i32>} : memref<256x128xf32, #tpu.memory_space<vmem>>, vector<256x128xf32>,
    } else {
    }
    %c0 = arith.constant 0 : index
    %c0_1 = arith.constant 0 : index
    %3 = vector.load %arg10[%c0, %c0_1] : memref<256x128xf32, #tpu.memory_space<vmem>>, vector<256x128xf32>
    %c0_2 = arith.constant 0 : index
    %c0_3 = arith.constant 0 : index
    %4 = vector.load %arg2[%c0_2, %c0_3] : memref<256x256xbf16, #tpu.memory_space<vmem>>, vector<256x256xbf16>
    %c0_4 = arith.constant 0 : index
    %c0_5 = arith.constant 0 : index
    %5 = vector.load %arg3[%c0_4, %c0_5] : memref<256x128xbf16, #tpu.memory_space<vmem>>, vector<256x128xbf16>
    %cst = arith.constant dense<0.000000e+00> : vector<256x128xf32>
    %6 = tpu.matmul %4, %5, %cst {dimension_numbers = #tpu.dot_dimension_numbers<[1], [0], [0], [1], [0, 0, 1, 1], [], []>} : vector<256x256xbf16>, vector<256x128xbf16>, vector<256x128xf32> -> vector<256x128xf32>
    %7 = arith.addf %3, %6 : vector<256x128xf32>
    %c0_6 = arith.constant 0 : index
    %c0_7 = arith.constant 0 : index
    %8 = vector.load %arg10[%c0_6, %c0_7] : memref<256x128xf32, #tpu.memory_space<vmem>>, vector<256x128xf32>
    tpu.vector_store %arg10[%c0_6, %c0_7], %7 {strides = array<i32>} : memref<256x128xf32, #tpu.memory_space<vmem>>, vector<256x128xf32>,
    %c0_i32_8 = arith.constant 0 : i32
    %9 = arith.cmpi eq, %arg1, %c0_i32_8 : i32
    %10 = arith.extui %9 : i1 to i32
    %c0_i32_9 = arith.constant 0 : i32
    %11 = arith.cmpi ne, %10, %c0_i32_9 : i32
    scf.if %11 {
      %c0_10 = arith.constant 0 : index
      %c0_11 = arith.constant 0 : index
      %12 = vector.load %arg10[%c0_10, %c0_11] : memref<256x128xf32, #tpu.memory_space<vmem>>, vector<256x128xf32>
      %13 = arith.truncf %12 : vector<256x128xf32> to vector<256x128xbf16>
      %c0_12 = arith.constant 0 : index
      %c0_13 = arith.constant 0 : index
      %14 = vector.load %arg4[%c0_12, %c0_13] : memref<128x256xbf16, #tpu.memory_space<vmem>>, vector<128x256xbf16>
      %cst_14 = arith.constant dense<0.000000e+00> : vector<256x256xf32>
      %15 = tpu.matmul %13, %14, %cst_14 {dimension_numbers = #tpu.dot_dimension_numbers<[1], [0], [0], [1], [0, 0, 1, 1], [], []>} : vector<256x128xbf16>, vector<128x256xbf16>, vector<256x256xf32> -> vector<256x256xf32>
      %c0_15 = arith.constant 0 : index
      %c0_16 = arith.constant 0 : index
      %16 = vector.load %arg5[%c0_15, %c0_16] : memref<1x256xf32, #tpu.memory_space<vmem>>, vector<1x256xf32>
      %17 = vector.broadcast %16 : vector<1x256xf32> to vector<256x256xf32>
      %18 = arith.addf %15, %17 : vector<256x256xf32>
      %c0_17 = arith.constant 0 : index
      %c0_18 = arith.constant 0 : index
      %19 = vector.load %arg6[%c0_17, %c0_18] : memref<256x1xf32, #tpu.memory_space<vmem>>, vector<256x1xf32>
      %20 = vector.broadcast %19 : vector<256x1xf32> to vector<256x256xf32>
      %21 = arith.mulf %18, %20 : vector<256x256xf32>
      %22 = arith.truncf %21 : vector<256x256xf32> to vector<256x256xbf16>
      %c0_19 = arith.constant 0 : index
      %c0_20 = arith.constant 0 : index
      %23 = vector.load %arg7[%c0_19, %c0_20] : memref<256x256xbf16, #tpu.memory_space<vmem>>, vector<256x256xbf16>
      tpu.vector_store %arg7[%c0_19, %c0_20], %22 {strides = array<i32>} : memref<256x256xbf16, #tpu.memory_space<vmem>>, vector<256x256xbf16>,
      %cst_21 = arith.constant dense<0.000000e+00> : vector<256xf32>
      %24 = vector.multi_reduction <add>, %21, %cst_21 [0] : vector<256x256xf32> to vector<256xf32>
      %25 = vector.shape_cast %24 : vector<256xf32> to vector<1x256xf32>
      %c0_22 = arith.constant 0 : index
      %c0_23 = arith.constant 0 : index
      %c0_24 = arith.constant 0 : index
      %26 = vector.load %arg8[%c0_22, %c0_23, %c0_24] : memref<1x1x256xf32, #tpu.memory_space<vmem>>, vector<1x1x256xf32>
      %27 = vector.shape_cast %26 : vector<1x1x256xf32> to vector<1x256xf32>
      %28 = vector.shape_cast %25 : vector<1x256xf32> to vector<1x1x256xf32>
      tpu.vector_store %arg8[%c0_22, %c0_23, %c0_24], %28 {strides = array<i32>} : memref<1x1x256xf32, #tpu.memory_space<vmem>>, vector<1x1x256xf32>,
      %29 = arith.mulf %21, %21 : vector<256x256xf32>
      %cst_25 = arith.constant dense<0.000000e+00> : vector<256xf32>
      %30 = vector.multi_reduction <add>, %29, %cst_25 [0] : vector<256x256xf32> to vector<256xf32>
      %31 = vector.shape_cast %30 : vector<256xf32> to vector<1x256xf32>
      %c0_26 = arith.constant 0 : index
      %c0_27 = arith.constant 0 : index
      %c0_28 = arith.constant 0 : index
      %32 = vector.load %arg9[%c0_26, %c0_27, %c0_28] : memref<1x1x256xf32, #tpu.memory_space<vmem>>, vector<1x1x256xf32>
      %33 = vector.shape_cast %32 : vector<1x1x256xf32> to vector<1x256xf32>
      %34 = vector.shape_cast %31 : vector<1x256xf32> to vector<1x1x256xf32>
      tpu.vector_store %arg9[%c0_26, %c0_27, %c0_28], %34 {strides = array<i32>} : memref<1x1x256xf32, #tpu.memory_space<vmem>>, vector<1x1x256xf32>,
    } else {
    }
    return
  }
  func.func @transform_0(%arg0: i32, %arg1: i32) -> (i32, i32) {
    %c0_i32 = arith.constant 0 : i32
    return %arg0, %arg1 : i32, i32
  }
  func.func @transform_1(%arg0: i32, %arg1: i32) -> (i32, i32) {
    %c0_i32 = arith.constant 0 : i32
    %c0_i32_0 = arith.constant 0 : i32
    return %arg1, %c0_i32 : i32, i32
  }
  func.func @transform_2(%arg0: i32, %arg1: i32) -> (i32, i32) {
    %c0_i32 = arith.constant 0 : i32
    %c0_i32_0 = arith.constant 0 : i32
    %c0_i32_1 = arith.constant 0 : i32
    return %c0_i32, %c0_i32_0 : i32, i32
  }
  func.func @transform_3(%arg0: i32, %arg1: i32) -> (i32, i32) {
    %c0_i32 = arith.constant 0 : i32
    %c0_i32_0 = arith.constant 0 : i32
    %c0_i32_1 = arith.constant 0 : i32
    return %c0_i32, %c0_i32_0 : i32, i32
  }
  func.func @transform_4(%arg0: i32, %arg1: i32) -> (i32, i32) {
    %c0_i32 = arith.constant 0 : i32
    %c0_i32_0 = arith.constant 0 : i32
    return %arg0, %c0_i32 : i32, i32
  }
  func.func @transform_5(%arg0: i32, %arg1: i32) -> (i32, i32) {
    %c0_i32 = arith.constant 0 : i32
    %c0_i32_0 = arith.constant 0 : i32
    return %arg0, %c0_i32 : i32, i32
  }
  func.func @transform_6(%arg0: i32, %arg1: i32) -> (i32, i32, i32) {
    %c0_i32 = arith.constant 0 : i32
    %c0_i32_0 = arith.constant 0 : i32
    %c0_i32_1 = arith.constant 0 : i32
    return %arg0, %c0_i32, %c0_i32_0 : i32, i32, i32
  }
  func.func @transform_7(%arg0: i32, %arg1: i32) -> (i32, i32, i32) {
    %c0_i32 = arith.constant 0 : i32
    %c0_i32_0 = arith.constant 0 : i32
    %c0_i32_1 = arith.constant 0 : i32
    return %arg0, %c0_i32, %c0_i32_0 : i32, i32, i32
  }
}

module attributes {stable_mosaic.version = 11 : i64} {
  func.func @kern(%arg0: i32, %arg1: memref<256x256xbf16, #tpu.memory_space<vmem>>, %arg2: memref<1x256xf32, #tpu.memory_space<vmem>>, %arg3: memref<1x256xf32, #tpu.memory_space<vmem>>, %arg4: memref<256x256xbf16, #tpu.memory_space<vmem>>, %arg5: memref<256x256xbf16, #tpu.memory_space<vmem>>) attributes {dimension_semantics = [#tpu.dimension_semantics<parallel>], iteration_bounds = array<i64: 1>, scalar_prefetch = 0 : i64, scratch_operands = 0 : i64, tpu.core_type = #tpu.core_type<tc>, window_params = [{transform_indices = @transform_0, window_bounds = array<i64: 256, 256>}, {pipeline_mode = #tpu.pipeline_mode<synchronous>, transform_indices = @transform_1, window_bounds = array<i64: 1, 256>}, {pipeline_mode = #tpu.pipeline_mode<synchronous>, transform_indices = @transform_2, window_bounds = array<i64: 1, 256>}, {pipeline_mode = #tpu.pipeline_mode<synchronous>, transform_indices = @transform_3, window_bounds = array<i64: 256, 256>}, {transform_indices = @transform_4, window_bounds = array<i64: 256, 256>}]} {
    %c0 = arith.constant 0 : index
    %c0_0 = arith.constant 0 : index
    %0 = vector.load %arg1[%c0, %c0_0] : memref<256x256xbf16, #tpu.memory_space<vmem>>, vector<256x256xbf16>
    %1 = arith.extf %0 : vector<256x256xbf16> to vector<256x256xf32>
    %c0_1 = arith.constant 0 : index
    %c0_2 = arith.constant 0 : index
    %2 = vector.load %arg2[%c0_1, %c0_2] : memref<1x256xf32, #tpu.memory_space<vmem>>, vector<1x256xf32>
    %3 = vector.broadcast %2 : vector<1x256xf32> to vector<256x256xf32>
    %4 = arith.mulf %1, %3 : vector<256x256xf32>
    %c0_3 = arith.constant 0 : index
    %c0_4 = arith.constant 0 : index
    %5 = vector.load %arg3[%c0_3, %c0_4] : memref<1x256xf32, #tpu.memory_space<vmem>>, vector<1x256xf32>
    %6 = vector.broadcast %5 : vector<1x256xf32> to vector<256x256xf32>
    %7 = arith.addf %4, %6 : vector<256x256xf32>
    %cst = arith.constant 0.000000e+00 : f32
    %8 = vector.broadcast %cst : f32 to vector<256x256xf32>
    %9 = arith.maximumf %7, %8 : vector<256x256xf32>
    %10 = arith.truncf %9 : vector<256x256xf32> to vector<256x256xbf16>
    %c0_5 = arith.constant 0 : index
    %c0_6 = arith.constant 0 : index
    %11 = vector.load %arg4[%c0_5, %c0_6] : memref<256x256xbf16, #tpu.memory_space<vmem>>, vector<256x256xbf16>
    %cst_7 = arith.constant dense<0.000000e+00> : vector<256x256xf32>
    %12 = tpu.matmul %10, %11, %cst_7 {dimension_numbers = #tpu.dot_dimension_numbers<[1], [0], [0], [1], [0, 0, 1, 1], [], []>} : vector<256x256xbf16>, vector<256x256xbf16>, vector<256x256xf32> -> vector<256x256xf32>
    %13 = arith.truncf %12 : vector<256x256xf32> to vector<256x256xbf16>
    %c0_8 = arith.constant 0 : index
    %c0_9 = arith.constant 0 : index
    %14 = vector.load %arg5[%c0_8, %c0_9] : memref<256x256xbf16, #tpu.memory_space<vmem>>, vector<256x256xbf16>
    tpu.vector_store %arg5[%c0_8, %c0_9], %13 {strides = array<i32>} : memref<256x256xbf16, #tpu.memory_space<vmem>>, vector<256x256xbf16>,
    return
  }
  func.func @transform_0(%arg0: i32) -> (i32, i32) {
    %c0_i32 = arith.constant 0 : i32
    %c0_i32_0 = arith.constant 0 : i32
    return %arg0, %c0_i32 : i32, i32
  }
  func.func @transform_1(%arg0: i32) -> (i32, i32) {
    %c0_i32 = arith.constant 0 : i32
    %c0_i32_0 = arith.constant 0 : i32
    %c0_i32_1 = arith.constant 0 : i32
    return %c0_i32, %c0_i32_0 : i32, i32
  }
  func.func @transform_2(%arg0: i32) -> (i32, i32) {
    %c0_i32 = arith.constant 0 : i32
    %c0_i32_0 = arith.constant 0 : i32
    %c0_i32_1 = arith.constant 0 : i32
    return %c0_i32, %c0_i32_0 : i32, i32
  }
  func.func @transform_3(%arg0: i32) -> (i32, i32) {
    %c0_i32 = arith.constant 0 : i32
    %c0_i32_0 = arith.constant 0 : i32
    %c0_i32_1 = arith.constant 0 : i32
    return %c0_i32, %c0_i32_0 : i32, i32
  }
  func.func @transform_4(%arg0: i32) -> (i32, i32) {
    %c0_i32 = arith.constant 0 : i32
    %c0_i32_0 = arith.constant 0 : i32
    return %arg0, %c0_i32 : i32, i32
  }
}

module attributes {stable_mosaic.version = 11 : i64} {
  func.func @kern(%arg0: i32, %arg1: i32, %arg2: memref<256x256xbf16, #tpu.memory_space<vmem>>, %arg3: memref<256x256xbf16, #tpu.memory_space<vmem>>, %arg4: memref<1x256xf32, #tpu.memory_space<vmem>>, %arg5: memref<256x1xf32, #tpu.memory_space<vmem>>, %arg6: memref<256x256xbf16, #tpu.memory_space<vmem>>, %arg7: memref<1x1x256xf32, #tpu.memory_space<vmem>>, %arg8: memref<1x1x256xf32, #tpu.memory_space<vmem>>, %arg9: memref<256x256xf32, #tpu.memory_space<vmem>>) attributes {dimension_semantics = [#tpu.dimension_semantics<parallel>, #tpu.dimension_semantics<arbitrary>], iteration_bounds = array<i64: 1, 1>, scalar_prefetch = 0 : i64, scratch_operands = 1 : i64, tpu.core_type = #tpu.core_type<tc>, window_params = [{transform_indices = @transform_0, window_bounds = array<i64: 256, 256>}, {transform_indices = @transform_1, window_bounds = array<i64: 256, 256>}, {pipeline_mode = #tpu.pipeline_mode<synchronous>, transform_indices = @transform_2, window_bounds = array<i64: 1, 256>}, {transform_indices = @transform_3, window_bounds = array<i64: 256, 1>}, {transform_indices = @transform_4, window_bounds = array<i64: 256, 256>}, {transform_indices = @transform_5, window_bounds = array<i64: 1, 1, 256>}, {transform_indices = @transform_6, window_bounds = array<i64: 1, 1, 256>}]} {
    %c0_i32 = arith.constant 0 : i32
    %0 = arith.cmpi eq, %arg1, %c0_i32 : i32
    %1 = arith.extui %0 : i1 to i32
    %c0_i32_0 = arith.constant 0 : i32
    %2 = arith.cmpi ne, %1, %c0_i32_0 : i32
    scf.if %2 {
      %cst_10 = arith.constant 0.000000e+00 : f32
      %12 = vector.broadcast %cst_10 : f32 to vector<256x256xf32>
      %c0_11 = arith.constant 0 : index
      %c0_12 = arith.constant 0 : index
      %13 = vector.load %arg9[%c0_11, %c0_12] : memref<256x256xf32, #tpu.memory_space<vmem>>, vector<256x256xf32>
      tpu.vector_store %arg9[%c0_11, %c0_12], %12 {strides = array<i32>} : memref<256x256xf32, #tpu.memory_space<vmem>>, vector<256x256xf32>,
    } else {
    }
    %c0 = arith.constant 0 : index
    %c0_1 = arith.constant 0 : index
    %3 = vector.load %arg9[%c0, %c0_1] : memref<256x256xf32, #tpu.memory_space<vmem>>, vector<256x256xf32>
    %c0_2 = arith.constant 0 : index
    %c0_3 = arith.constant 0 : index
    %4 = vector.load %arg2[%c0_2, %c0_3] : memref<256x256xbf16, #tpu.memory_space<vmem>>, vector<256x256xbf16>
    %c0_4 = arith.constant 0 : index
    %c0_5 = arith.constant 0 : index
    %5 = vector.load %arg3[%c0_4, %c0_5] : memref<256x256xbf16, #tpu.memory_space<vmem>>, vector<256x256xbf16>
    %cst = arith.constant dense<0.000000e+00> : vector<256x256xf32>
    %6 = tpu.matmul %4, %5, %cst {dimension_numbers = #tpu.dot_dimension_numbers<[1], [0], [0], [1], [0, 0, 1, 1], [], []>} : vector<256x256xbf16>, vector<256x256xbf16>, vector<256x256xf32> -> vector<256x256xf32>
    %7 = arith.addf %3, %6 : vector<256x256xf32>
    %c0_6 = arith.constant 0 : index
    %c0_7 = arith.constant 0 : index
    %8 = vector.load %arg9[%c0_6, %c0_7] : memref<256x256xf32, #tpu.memory_space<vmem>>, vector<256x256xf32>
    tpu.vector_store %arg9[%c0_6, %c0_7], %7 {strides = array<i32>} : memref<256x256xf32, #tpu.memory_space<vmem>>, vector<256x256xf32>,
    %c0_i32_8 = arith.constant 0 : i32
    %9 = arith.cmpi eq, %arg1, %c0_i32_8 : i32
    %10 = arith.extui %9 : i1 to i32
    %c0_i32_9 = arith.constant 0 : i32
    %11 = arith.cmpi ne, %10, %c0_i32_9 : i32
    scf.if %11 {
      %c0_10 = arith.constant 0 : index
      %c0_11 = arith.constant 0 : index
      %12 = vector.load %arg9[%c0_10, %c0_11] : memref<256x256xf32, #tpu.memory_space<vmem>>, vector<256x256xf32>
      %c0_12 = arith.constant 0 : index
      %c0_13 = arith.constant 0 : index
      %13 = vector.load %arg4[%c0_12, %c0_13] : memref<1x256xf32, #tpu.memory_space<vmem>>, vector<1x256xf32>
      %14 = vector.broadcast %13 : vector<1x256xf32> to vector<256x256xf32>
      %15 = arith.addf %12, %14 : vector<256x256xf32>
      %c0_14 = arith.constant 0 : index
      %c0_15 = arith.constant 0 : index
      %16 = vector.load %arg5[%c0_14, %c0_15] : memref<256x1xf32, #tpu.memory_space<vmem>>, vector<256x1xf32>
      %17 = vector.broadcast %16 : vector<256x1xf32> to vector<256x256xf32>
      %18 = arith.mulf %15, %17 : vector<256x256xf32>
      %19 = arith.truncf %18 : vector<256x256xf32> to vector<256x256xbf16>
      %c0_16 = arith.constant 0 : index
      %c0_17 = arith.constant 0 : index
      %20 = vector.load %arg6[%c0_16, %c0_17] : memref<256x256xbf16, #tpu.memory_space<vmem>>, vector<256x256xbf16>
      tpu.vector_store %arg6[%c0_16, %c0_17], %19 {strides = array<i32>} : memref<256x256xbf16, #tpu.memory_space<vmem>>, vector<256x256xbf16>,
      %cst_18 = arith.constant dense<0.000000e+00> : vector<256xf32>
      %21 = vector.multi_reduction <add>, %18, %cst_18 [0] : vector<256x256xf32> to vector<256xf32>
      %22 = vector.shape_cast %21 : vector<256xf32> to vector<1x256xf32>
      %c0_19 = arith.constant 0 : index
      %c0_20 = arith.constant 0 : index
      %c0_21 = arith.constant 0 : index
      %23 = vector.load %arg7[%c0_19, %c0_20, %c0_21] : memref<1x1x256xf32, #tpu.memory_space<vmem>>, vector<1x1x256xf32>
      %24 = vector.shape_cast %23 : vector<1x1x256xf32> to vector<1x256xf32>
      %25 = vector.shape_cast %22 : vector<1x256xf32> to vector<1x1x256xf32>
      tpu.vector_store %arg7[%c0_19, %c0_20, %c0_21], %25 {strides = array<i32>} : memref<1x1x256xf32, #tpu.memory_space<vmem>>, vector<1x1x256xf32>,
      %26 = arith.mulf %18, %18 : vector<256x256xf32>
      %cst_22 = arith.constant dense<0.000000e+00> : vector<256xf32>
      %27 = vector.multi_reduction <add>, %26, %cst_22 [0] : vector<256x256xf32> to vector<256xf32>
      %28 = vector.shape_cast %27 : vector<256xf32> to vector<1x256xf32>
      %c0_23 = arith.constant 0 : index
      %c0_24 = arith.constant 0 : index
      %c0_25 = arith.constant 0 : index
      %29 = vector.load %arg8[%c0_23, %c0_24, %c0_25] : memref<1x1x256xf32, #tpu.memory_space<vmem>>, vector<1x1x256xf32>
      %30 = vector.shape_cast %29 : vector<1x1x256xf32> to vector<1x256xf32>
      %31 = vector.shape_cast %28 : vector<1x256xf32> to vector<1x1x256xf32>
      tpu.vector_store %arg8[%c0_23, %c0_24, %c0_25], %31 {strides = array<i32>} : memref<1x1x256xf32, #tpu.memory_space<vmem>>, vector<1x1x256xf32>,
    } else {
    }
    return
  }
  func.func @transform_0(%arg0: i32, %arg1: i32) -> (i32, i32) {
    %c0_i32 = arith.constant 0 : i32
    return %arg0, %arg1 : i32, i32
  }
  func.func @transform_1(%arg0: i32, %arg1: i32) -> (i32, i32) {
    %c0_i32 = arith.constant 0 : i32
    %c0_i32_0 = arith.constant 0 : i32
    return %arg1, %c0_i32 : i32, i32
  }
  func.func @transform_2(%arg0: i32, %arg1: i32) -> (i32, i32) {
    %c0_i32 = arith.constant 0 : i32
    %c0_i32_0 = arith.constant 0 : i32
    %c0_i32_1 = arith.constant 0 : i32
    return %c0_i32, %c0_i32_0 : i32, i32
  }
  func.func @transform_3(%arg0: i32, %arg1: i32) -> (i32, i32) {
    %c0_i32 = arith.constant 0 : i32
    %c0_i32_0 = arith.constant 0 : i32
    return %arg0, %c0_i32 : i32, i32
  }
  func.func @transform_4(%arg0: i32, %arg1: i32) -> (i32, i32) {
    %c0_i32 = arith.constant 0 : i32
    %c0_i32_0 = arith.constant 0 : i32
    return %arg0, %c0_i32 : i32, i32
  }
  func.func @transform_5(%arg0: i32, %arg1: i32) -> (i32, i32, i32) {
    %c0_i32 = arith.constant 0 : i32
    %c0_i32_0 = arith.constant 0 : i32
    %c0_i32_1 = arith.constant 0 : i32
    return %arg0, %c0_i32, %c0_i32_0 : i32, i32, i32
  }
  func.func @transform_6(%arg0: i32, %arg1: i32) -> (i32, i32, i32) {
    %c0_i32 = arith.constant 0 : i32
    %c0_i32_0 = arith.constant 0 : i32
    %c0_i32_1 = arith.constant 0 : i32
    return %arg0, %c0_i32, %c0_i32_0 : i32, i32, i32
  }
}

module attributes {stable_mosaic.version = 11 : i64} {
  func.func @kern(%arg0: i32, %arg1: memref<256x256xbf16, #tpu.memory_space<vmem>>, %arg2: memref<1x256xf32, #tpu.memory_space<vmem>>, %arg3: memref<1x256xf32, #tpu.memory_space<vmem>>, %arg4: memref<16x256xbf16, #tpu.memory_space<vmem>>, %arg5: memref<1x16x256xf32, #tpu.memory_space<vmem>>) attributes {dimension_semantics = [#tpu.dimension_semantics<parallel>], iteration_bounds = array<i64: 1>, scalar_prefetch = 0 : i64, scratch_operands = 0 : i64, tpu.core_type = #tpu.core_type<tc>, window_params = [{transform_indices = @transform_0, window_bounds = array<i64: 256, 256>}, {pipeline_mode = #tpu.pipeline_mode<synchronous>, transform_indices = @transform_1, window_bounds = array<i64: 1, 256>}, {pipeline_mode = #tpu.pipeline_mode<synchronous>, transform_indices = @transform_2, window_bounds = array<i64: 1, 256>}, {transform_indices = @transform_3, window_bounds = array<i64: 16, 256>}, {transform_indices = @transform_4, window_bounds = array<i64: 1, 16, 256>}]} {
    %c0 = arith.constant 0 : index
    %c0_0 = arith.constant 0 : index
    %0 = vector.load %arg1[%c0, %c0_0] : memref<256x256xbf16, #tpu.memory_space<vmem>>, vector<256x256xbf16>
    %1 = arith.extf %0 : vector<256x256xbf16> to vector<256x256xf32>
    %c0_1 = arith.constant 0 : index
    %c0_2 = arith.constant 0 : index
    %2 = vector.load %arg2[%c0_1, %c0_2] : memref<1x256xf32, #tpu.memory_space<vmem>>, vector<1x256xf32>
    %3 = vector.broadcast %2 : vector<1x256xf32> to vector<256x256xf32>
    %4 = arith.mulf %1, %3 : vector<256x256xf32>
    %c0_3 = arith.constant 0 : index
    %c0_4 = arith.constant 0 : index
    %5 = vector.load %arg3[%c0_3, %c0_4] : memref<1x256xf32, #tpu.memory_space<vmem>>, vector<1x256xf32>
    %6 = vector.broadcast %5 : vector<1x256xf32> to vector<256x256xf32>
    %7 = arith.addf %4, %6 : vector<256x256xf32>
    %cst = arith.constant 0.000000e+00 : f32
    %8 = vector.broadcast %cst : f32 to vector<256x256xf32>
    %9 = arith.maximumf %7, %8 : vector<256x256xf32>
    %c0_5 = arith.constant 0 : index
    %c0_6 = arith.constant 0 : index
    %10 = vector.load %arg4[%c0_5, %c0_6] : memref<16x256xbf16, #tpu.memory_space<vmem>>, vector<16x256xbf16>
    %11 = arith.truncf %9 : vector<256x256xf32> to vector<256x256xbf16>
    %cst_7 = arith.constant dense<0.000000e+00> : vector<16x256xf32>
    %12 = tpu.matmul %10, %11, %cst_7 {dimension_numbers = #tpu.dot_dimension_numbers<[1], [0], [0], [1], [0, 0, 1, 1], [], []>} : vector<16x256xbf16>, vector<256x256xbf16>, vector<16x256xf32> -> vector<16x256xf32>
    %c0_8 = arith.constant 0 : index
    %c0_9 = arith.constant 0 : index
    %c0_10 = arith.constant 0 : index
    %13 = vector.load %arg5[%c0_8, %c0_9, %c0_10] : memref<1x16x256xf32, #tpu.memory_space<vmem>>, vector<1x16x256xf32>
    %14 = vector.shape_cast %13 : vector<1x16x256xf32> to vector<16x256xf32>
    %15 = vector.shape_cast %12 : vector<16x256xf32> to vector<1x16x256xf32>
    tpu.vector_store %arg5[%c0_8, %c0_9, %c0_10], %15 {strides = array<i32>} : memref<1x16x256xf32, #tpu.memory_space<vmem>>, vector<1x16x256xf32>,
    return
  }
  func.func @transform_0(%arg0: i32) -> (i32, i32) {
    %c0_i32 = arith.constant 0 : i32
    %c0_i32_0 = arith.constant 0 : i32
    return %arg0, %c0_i32 : i32, i32
  }
  func.func @transform_1(%arg0: i32) -> (i32, i32) {
    %c0_i32 = arith.constant 0 : i32
    %c0_i32_0 = arith.constant 0 : i32
    %c0_i32_1 = arith.constant 0 : i32
    return %c0_i32, %c0_i32_0 : i32, i32
  }
  func.func @transform_2(%arg0: i32) -> (i32, i32) {
    %c0_i32 = arith.constant 0 : i32
    %c0_i32_0 = arith.constant 0 : i32
    %c0_i32_1 = arith.constant 0 : i32
    return %c0_i32, %c0_i32_0 : i32, i32
  }
  func.func @transform_3(%arg0: i32) -> (i32, i32) {
    %c0_i32 = arith.constant 0 : i32
    %c0_i32_0 = arith.constant 0 : i32
    return %c0_i32, %arg0 : i32, i32
  }
  func.func @transform_4(%arg0: i32) -> (i32, i32, i32) {
    %c0_i32 = arith.constant 0 : i32
    %c0_i32_0 = arith.constant 0 : i32
    %c0_i32_1 = arith.constant 0 : i32
    return %arg0, %c0_i32, %c0_i32_0 : i32, i32, i32
  }
}

module attributes {stable_mosaic.version = 11 : i64} {
  func.func @kern(%arg0: i32, %arg1: memref<16x256xf32, #tpu.memory_space<vmem>>, %arg2: memref<256x256xbf16, #tpu.memory_space<vmem>>, %arg3: memref<1x256xf32, #tpu.memory_space<vmem>>, %arg4: memref<1x256xf32, #tpu.memory_space<vmem>>, %arg5: memref<1x256xf32, #tpu.memory_space<vmem>>, %arg6: memref<256x128xbf16, #tpu.memory_space<vmem>>, %arg7: memref<1x128xf32, #tpu.memory_space<vmem>>, %arg8: memref<16x1xf32, #tpu.memory_space<vmem>>, %arg9: memref<16x128xf32, #tpu.memory_space<vmem>>) attributes {dimension_semantics = [#tpu.dimension_semantics<arbitrary>], iteration_bounds = array<i64: 1>, scalar_prefetch = 0 : i64, scratch_operands = 0 : i64, tpu.core_type = #tpu.core_type<tc>, window_params = [{pipeline_mode = #tpu.pipeline_mode<synchronous>, transform_indices = @transform_0, window_bounds = array<i64: 16, 256>}, {pipeline_mode = #tpu.pipeline_mode<synchronous>, transform_indices = @transform_1, window_bounds = array<i64: 256, 256>}, {pipeline_mode = #tpu.pipeline_mode<synchronous>, transform_indices = @transform_2, window_bounds = array<i64: 1, 256>}, {pipeline_mode = #tpu.pipeline_mode<synchronous>, transform_indices = @transform_3, window_bounds = array<i64: 1, 256>}, {pipeline_mode = #tpu.pipeline_mode<synchronous>, transform_indices = @transform_4, window_bounds = array<i64: 1, 256>}, {pipeline_mode = #tpu.pipeline_mode<synchronous>, transform_indices = @transform_5, window_bounds = array<i64: 256, 128>}, {pipeline_mode = #tpu.pipeline_mode<synchronous>, transform_indices = @transform_6, window_bounds = array<i64: 1, 128>}, {pipeline_mode = #tpu.pipeline_mode<synchronous>, transform_indices = @transform_7, window_bounds = array<i64: 16, 1>}, {pipeline_mode = #tpu.pipeline_mode<synchronous>, transform_indices = @transform_8, window_bounds = array<i64: 16, 128>}]} {
    %c0 = arith.constant 0 : index
    %c0_0 = arith.constant 0 : index
    %0 = vector.load %arg1[%c0, %c0_0] : memref<16x256xf32, #tpu.memory_space<vmem>>, vector<16x256xf32>
    %1 = arith.truncf %0 : vector<16x256xf32> to vector<16x256xbf16>
    %c0_1 = arith.constant 0 : index
    %c0_2 = arith.constant 0 : index
    %2 = vector.load %arg2[%c0_1, %c0_2] : memref<256x256xbf16, #tpu.memory_space<vmem>>, vector<256x256xbf16>
    %cst = arith.constant dense<0.000000e+00> : vector<16x256xf32>
    %3 = tpu.matmul %1, %2, %cst {dimension_numbers = #tpu.dot_dimension_numbers<[1], [0], [0], [1], [0, 0, 1, 1], [], []>} : vector<16x256xbf16>, vector<256x256xbf16>, vector<16x256xf32> -> vector<16x256xf32>
    %c0_3 = arith.constant 0 : index
    %c0_4 = arith.constant 0 : index
    %4 = vector.load %arg3[%c0_3, %c0_4] : memref<1x256xf32, #tpu.memory_space<vmem>>, vector<1x256xf32>
    %5 = vector.broadcast %4 : vector<1x256xf32> to vector<16x256xf32>
    %6 = arith.addf %3, %5 : vector<16x256xf32>
    %c0_5 = arith.constant 0 : index
    %c0_6 = arith.constant 0 : index
    %7 = vector.load %arg8[%c0_5, %c0_6] : memref<16x1xf32, #tpu.memory_space<vmem>>, vector<16x1xf32>
    %8 = vector.broadcast %7 : vector<16x1xf32> to vector<16x256xf32>
    %9 = arith.mulf %6, %8 : vector<16x256xf32>
    %cst_7 = arith.constant dense<0.000000e+00> : vector<256xf32>
    %10 = vector.multi_reduction <add>, %9, %cst_7 [0] : vector<16x256xf32> to vector<256xf32>
    %11 = vector.shape_cast %10 : vector<256xf32> to vector<1x256xf32>
    %cst_8 = arith.constant 2.500000e-01 : f32
    %12 = vector.broadcast %cst_8 : f32 to vector<1x256xf32>
    %13 = arith.mulf %11, %12 : vector<1x256xf32>
    %14 = arith.mulf %9, %9 : vector<16x256xf32>
    %cst_9 = arith.constant dense<0.000000e+00> : vector<256xf32>
    %15 = vector.multi_reduction <add>, %14, %cst_9 [0] : vector<16x256xf32> to vector<256xf32>
    %16 = vector.shape_cast %15 : vector<256xf32> to vector<1x256xf32>
    %cst_10 = arith.constant 2.500000e-01 : f32
    %17 = vector.broadcast %cst_10 : f32 to vector<1x256xf32>
    %18 = arith.mulf %16, %17 : vector<1x256xf32>
    %19 = arith.mulf %13, %13 : vector<1x256xf32>
    %20 = arith.subf %18, %19 : vector<1x256xf32>
    %cst_11 = arith.constant 0.000000e+00 : f32
    %21 = vector.broadcast %cst_11 : f32 to vector<1x256xf32>
    %22 = arith.maximumf %20, %21 : vector<1x256xf32>
    %23 = vector.broadcast %13 : vector<1x256xf32> to vector<16x256xf32>
    %24 = arith.subf %9, %23 : vector<16x256xf32>
    %cst_12 = arith.constant 9.99999974E-6 : f32
    %25 = vector.broadcast %cst_12 : f32 to vector<1x256xf32>
    %26 = arith.addf %22, %25 : vector<1x256xf32>
    %27 = math.rsqrt %26 : vector<1x256xf32>
    %28 = vector.broadcast %27 : vector<1x256xf32> to vector<16x256xf32>
    %29 = arith.mulf %24, %28 : vector<16x256xf32>
    %c0_13 = arith.constant 0 : index
    %c0_14 = arith.constant 0 : index
    %30 = vector.load %arg4[%c0_13, %c0_14] : memref<1x256xf32, #tpu.memory_space<vmem>>, vector<1x256xf32>
    %31 = vector.broadcast %30 : vector<1x256xf32> to vector<16x256xf32>
    %32 = arith.mulf %29, %31 : vector<16x256xf32>
    %c0_15 = arith.constant 0 : index
    %c0_16 = arith.constant 0 : index
    %33 = vector.load %arg5[%c0_15, %c0_16] : memref<1x256xf32, #tpu.memory_space<vmem>>, vector<1x256xf32>
    %34 = vector.broadcast %33 : vector<1x256xf32> to vector<16x256xf32>
    %35 = arith.addf %32, %34 : vector<16x256xf32>
    %cst_17 = arith.constant 0.000000e+00 : f32
    %36 = vector.broadcast %cst_17 : f32 to vector<16x256xf32>
    %37 = arith.maximumf %35, %36 : vector<16x256xf32>
    %38 = arith.truncf %37 : vector<16x256xf32> to vector<16x256xbf16>
    %c0_18 = arith.constant 0 : index
    %c0_19 = arith.constant 0 : index
    %39 = vector.load %arg6[%c0_18, %c0_19] : memref<256x128xbf16, #tpu.memory_space<vmem>>, vector<256x128xbf16>
    %cst_20 = arith.constant dense<0.000000e+00> : vector<16x128xf32>
    %40 = tpu.matmul %38, %39, %cst_20 {dimension_numbers = #tpu.dot_dimension_numbers<[1], [0], [0], [1], [0, 0, 1, 1], [], []>} : vector<16x256xbf16>, vector<256x128xbf16>, vector<16x128xf32> -> vector<16x128xf32>
    %c0_21 = arith.constant 0 : index
    %c0_22 = arith.constant 0 : index
    %41 = vector.load %arg7[%c0_21, %c0_22] : memref<1x128xf32, #tpu.memory_space<vmem>>, vector<1x128xf32>
    %42 = vector.broadcast %41 : vector<1x128xf32> to vector<16x128xf32>
    %43 = arith.addf %40, %42 : vector<16x128xf32>
    %c0_23 = arith.constant 0 : index
    %c0_24 = arith.constant 0 : index
    %44 = vector.load %arg9[%c0_23, %c0_24] : memref<16x128xf32, #tpu.memory_space<vmem>>, vector<16x128xf32>
    tpu.vector_store %arg9[%c0_23, %c0_24], %43 {strides = array<i32>} : memref<16x128xf32, #tpu.memory_space<vmem>>, vector<16x128xf32>,
    return
  }
  func.func @transform_0(%arg0: i32) -> (i32, i32) {
    %c0_i32 = arith.constant 0 : i32
    %c0_i32_0 = arith.constant 0 : i32
    %c0_i32_1 = arith.constant 0 : i32
    return %c0_i32, %c0_i32_0 : i32, i32
  }
  func.func @transform_1(%arg0: i32) -> (i32, i32) {
    %c0_i32 = arith.constant 0 : i32
    %c0_i32_0 = arith.constant 0 : i32
    %c0_i32_1 = arith.constant 0 : i32
    return %c0_i32, %c0_i32_0 : i32, i32
  }
  func.func @transform_2(%arg0: i32) -> (i32, i32) {
    %c0_i32 = arith.constant 0 : i32
    %c0_i32_0 = arith.constant 0 : i32
    %c0_i32_1 = arith.constant 0 : i32
    return %c0_i32, %c0_i32_0 : i32, i32
  }
  func.func @transform_3(%arg0: i32) -> (i32, i32) {
    %c0_i32 = arith.constant 0 : i32
    %c0_i32_0 = arith.constant 0 : i32
    %c0_i32_1 = arith.constant 0 : i32
    return %c0_i32, %c0_i32_0 : i32, i32
  }
  func.func @transform_4(%arg0: i32) -> (i32, i32) {
    %c0_i32 = arith.constant 0 : i32
    %c0_i32_0 = arith.constant 0 : i32
    %c0_i32_1 = arith.constant 0 : i32
    return %c0_i32, %c0_i32_0 : i32, i32
  }
  func.func @transform_5(%arg0: i32) -> (i32, i32) {
    %c0_i32 = arith.constant 0 : i32
    %c0_i32_0 = arith.constant 0 : i32
    %c0_i32_1 = arith.constant 0 : i32
    return %c0_i32, %c0_i32_0 : i32, i32
  }
  func.func @transform_6(%arg0: i32) -> (i32, i32) {
    %c0_i32 = arith.constant 0 : i32
    %c0_i32_0 = arith.constant 0 : i32
    %c0_i32_1 = arith.constant 0 : i32
    return %c0_i32, %c0_i32_0 : i32, i32
  }
  func.func @transform_7(%arg0: i32) -> (i32, i32) {
    %c0_i32 = arith.constant 0 : i32
    %c0_i32_0 = arith.constant 0 : i32
    %c0_i32_1 = arith.constant 0 : i32
    return %c0_i32, %c0_i32_0 : i32, i32
  }
  func.func @transform_8(%arg0: i32) -> (i32, i32) {
    %c0_i32 = arith.constant 0 : i32
    %c0_i32_0 = arith.constant 0 : i32
    %c0_i32_1 = arith.constant 0 : i32
    return %c0_i32, %c0_i32_0 : i32, i32
  }
}

</mosaic_0001>

<llo_original>
// kernel: _gcn_forward_impl.8
$region0: #{_gcn_forward_impl.8}
  #allocation0 [shape = 'u32[]', space=smem, size = 0x4, offset = 0x4, fixed_abs, tag = 'smem constant byte address 0x4 - core index']
  #allocation1 [shape = 'u32[144,128]{1,0:T(1,128)}', space=vmem, size = 0x12000, scoped, tag = 'internal scratch']
  %s0 = inlined_call_operand.vmem [shape: bf16[256,256], index: 0, kind: input, shape index: {}]
  %s1 = inlined_call_operand.vmem [shape: f32[1,256], index: 1, kind: input, shape index: {}]
  %s2 = inlined_call_operand.vmem [shape: f32[1,256], index: 2, kind: input, shape index: {}]
  %s3 = inlined_call_operand.vmem [shape: bf16[16,256], index: 3, kind: input, shape index: {}]
  %s4 = inlined_call_operand.vmem [shape: f32[1,16,256], index: 4, kind: output, shape index: {}]
  %s5 = sld [smem:[#allocation0]]
  $region26: #{_gcn_forward_impl.8} parent=0
    _
  %s7 = ssub.s32 1, %s5
  %s8 = scalar_select 0, %s7, %s5
  // Predicated region
  $region2: #{_gcn_forward_impl.8} parent=0 // pred_check
    _
  $region3: #{_gcn_forward_impl.8} parent=0 // pred_check_branch
    %10 = sbr.rel (0) target = $region5
  $region4: #{_gcn_forward_impl.8} parent=0 // pred_region
    _
  $region5: #{_gcn_forward_impl.8} parent=0 // pred_fallthru
    _
  // Predicated region
  $region6: #{_gcn_forward_impl.8} parent=0 // pred_check
    _
  $region7: #{_gcn_forward_impl.8} parent=0 // pred_check_branch
    %12 = sbr.rel (0) target = $region9
  $region8: #{_gcn_forward_impl.8} parent=0 // pred_region
    _
  $region9: #{_gcn_forward_impl.8} parent=0 // pred_fallthru
    _
  // Predicated region
  $region10: #{_gcn_forward_impl.8} parent=0 // pred_check
    _
  $region11: #{_gcn_forward_impl.8} parent=0 // pred_check_branch
    %14 = sbr.rel (0) target = $region13
  $region12: #{_gcn_forward_impl.8} parent=0 // pred_region
    _
  $region13: #{_gcn_forward_impl.8} parent=0 // pred_fallthru
    _
  // Predicated region
  $region14: #{_gcn_forward_impl.8} parent=0 // pred_check
    _
  $region15: #{_gcn_forward_impl.8} parent=0 // pred_check_branch
    %16 = sbr.rel (0) target = $region17
  $region16: #{_gcn_forward_impl.8} parent=0 // pred_region
    _
  $region17: #{_gcn_forward_impl.8} parent=0 // pred_fallthru
    _
  %v17 = vld [vmem:[%s0] sm:$0xff]
  %v18 = vld [vmem:[%s0 + $0x8] sm:$0xff]
  %v19 = vld [vmem:[%s0 + $0x10] sm:$0xff]
  %v20 = vld [vmem:[%s0 + $0x18] sm:$0xff]
  %v21 = vld [vmem:[%s0 + $0x20] sm:$0xff]
  %v22 = vld [vmem:[%s0 + $0x28] sm:$0xff]
  %v23 = vld [vmem:[%s0 + $0x30] sm:$0xff]
  %v24 = vld [vmem:[%s0 + $0x38] sm:$0xff]
  %v25 = vld [vmem:[%s0 + $0x40] sm:$0xff]
  %v26 = vld [vmem:[%s0 + $0x48] sm:$0xff]
  %v27 = vld [vmem:[%s0 + $0x50] sm:$0xff]
  %v28 = vld [vmem:[%s0 + $0x58] sm:$0xff]
  %v29 = vld [vmem:[%s0 + $0x60] sm:$0xff]
  %v30 = vld [vmem:[%s0 + $0x68] sm:$0xff]
  %v31 = vld [vmem:[%s0 + $0x70] sm:$0xff]
  %v32 = vld [vmem:[%s0 + $0x78] sm:$0xff]
  %v33 = vld [vmem:[%s0 + $0x80] sm:$0xff]
  %v34 = vld [vmem:[%s0 + $0x88] sm:$0xff]
  %v35 = vld [vmem:[%s0 + $0x90] sm:$0xff]
  %v36 = vld [vmem:[%s0 + $0x98] sm:$0xff]
  %v37 = vld [vmem:[%s0 + $0xa0] sm:$0xff]
  %v38 = vld [vmem:[%s0 + $0xa8] sm:$0xff]
  %v39 = vld [vmem:[%s0 + $0xb0] sm:$0xff]
  %v40 = vld [vmem:[%s0 + $0xb8] sm:$0xff]
  %v41 = vld [vmem:[%s0 + $0xc0] sm:$0xff]
  %v42 = vld [vmem:[%s0 + $0xc8] sm:$0xff]
  %v43 = vld [vmem:[%s0 + $0xd0] sm:$0xff]
  %v44 = vld [vmem:[%s0 + $0xd8] sm:$0xff]
  %v45 = vld [vmem:[%s0 + $0xe0] sm:$0xff]
  %v46 = vld [vmem:[%s0 + $0xe8] sm:$0xff]
  %v47 = vld [vmem:[%s0 + $0xf0] sm:$0xff]
  %v48 = vld [vmem:[%s0 + $0xf8] sm:$0xff]
  %v49 = vunpack.c.l.bf16 %v17
  %v50 = vunpack.c.h.bf16 %v17
  %v51 = vunpack.c.l.bf16 %v18
  %v52 = vunpack.c.h.bf16 %v18
  %v53 = vunpack.c.l.bf16 %v19
  %v54 = vunpack.c.h.bf16 %v19
  %v55 = vunpack.c.l.bf16 %v20
  %v56 = vunpack.c.h.bf16 %v20
  %v57 = vunpack.c.l.bf16 %v21
  %v58 = vunpack.c.h.bf16 %v21
  %v59 = vunpack.c.l.bf16 %v22
  %v60 = vunpack.c.h.bf16 %v22
  %v61 = vunpack.c.l.bf16 %v23
  %v62 = vunpack.c.h.bf16 %v23
  %v63 = vunpack.c.l.bf16 %v24
  %v64 = vunpack.c.h.bf16 %v24
  %v65 = vunpack.c.l.bf16 %v25
  %v66 = vunpack.c.h.bf16 %v25
  %v67 = vunpack.c.l.bf16 %v26
  %v68 = vunpack.c.h.bf16 %v26
  %v69 = vunpack.c.l.bf16 %v27
  %v70 = vunpack.c.h.bf16 %v27
  %v71 = vunpack.c.l.bf16 %v28
  %v72 = vunpack.c.h.bf16 %v28
  %v73 = vunpack.c.l.bf16 %v29
  %v74 = vunpack.c.h.bf16 %v29
  %v75 = vunpack.c.l.bf16 %v30
  %v76 = vunpack.c.h.bf16 %v30
  %v77 = vunpack.c.l.bf16 %v31
  %v78 = vunpack.c.h.bf16 %v31
  %v79 = vunpack.c.l.bf16 %v32
  %v80 = vunpack.c.h.bf16 %v32
  %v81 = vunpack.c.l.bf16 %v33
  %v82 = vunpack.c.h.bf16 %v33
  %v83 = vunpack.c.l.bf16 %v34
  %v84 = vunpack.c.h.bf16 %v34
  %v85 = vunpack.c.l.bf16 %v35
  %v86 = vunpack.c.h.bf16 %v35
  %v87 = vunpack.c.l.bf16 %v36
  %v88 = vunpack.c.h.bf16 %v36
  %v89 = vunpack.c.l.bf16 %v37
  %v90 = vunpack.c.h.bf16 %v37
  %v91 = vunpack.c.l.bf16 %v38
  %v92 = vunpack.c.h.bf16 %v38
  %v93 = vunpack.c.l.bf16 %v39
  %v94 = vunpack.c.h.bf16 %v39
  %v95 = vunpack.c.l.bf16 %v40
  %v96 = vunpack.c.h.bf16 %v40
  %v97 = vunpack.c.l.bf16 %v41
  %v98 = vunpack.c.h.bf16 %v41
  %v99 = vunpack.c.l.bf16 %v42
  %v100 = vunpack.c.h.bf16 %v42
  %v101 = vunpack.c.l.bf16 %v43
  %v102 = vunpack.c.h.bf16 %v43
  %v103 = vunpack.c.l.bf16 %v44
  %v104 = vunpack.c.h.bf16 %v44
  %v105 = vunpack.c.l.bf16 %v45
  %v106 = vunpack.c.h.bf16 %v45
  %v107 = vunpack.c.l.bf16 %v46
  %v108 = vunpack.c.h.bf16 %v46
  %v109 = vunpack.c.l.bf16 %v47
  %v110 = vunpack.c.h.bf16 %v47
  %v111 = vunpack.c.l.bf16 %v48
  %v112 = vunpack.c.h.bf16 %v48
  %v113 = vld [vmem:[%s1] sm:$0x3]
  %v115 = vlaneseq
  %v116 = vshrl.u32 %v115, 7
  %v117 = vsub.s32 0, %v116
  %v118 = vrot.slane %v113, %v117
  %v119 = vlaneseq
  %v120 = vshrl.u32 %v119, 7
  %v121 = vsub.s32 1, %v120
  %v122 = vrot.slane %v113, %v121
  %v125 = vmul.f32 %v49, %v118
  %v126 = vmul.f32 %v50, %v122
  %v127 = vmul.f32 %v51, %v118
  %v128 = vmul.f32 %v52, %v122
  %v129 = vmul.f32 %v53, %v118
  %v130 = vmul.f32 %v54, %v122
  %v131 = vmul.f32 %v55, %v118
  %v132 = vmul.f32 %v56, %v122
  %v133 = vmul.f32 %v57, %v118
  %v134 = vmul.f32 %v58, %v122
  %v135 = vmul.f32 %v59, %v118
  %v136 = vmul.f32 %v60, %v122
  %v137 = vmul.f32 %v61, %v118
  %v138 = vmul.f32 %v62, %v122
  %v139 = vmul.f32 %v63, %v118
  %v140 = vmul.f32 %v64, %v122
  %v141 = vmul.f32 %v65, %v118
  %v142 = vmul.f32 %v66, %v122
  %v143 = vmul.f32 %v67, %v118
  %v144 = vmul.f32 %v68, %v122
  %v145 = vmul.f32 %v69, %v118
  %v146 = vmul.f32 %v70, %v122
  %v147 = vmul.f32 %v71, %v118
  %v148 = vmul.f32 %v72, %v122
  %v149 = vmul.f32 %v73, %v118
  %v150 = vmul.f32 %v74, %v122
  %v151 = vmul.f32 %v75, %v118
  %v152 = vmul.f32 %v76, %v122
  %v153 = vmul.f32 %v77, %v118
  %v154 = vmul.f32 %v78, %v122
  %v155 = vmul.f32 %v79, %v118
  %v156 = vmul.f32 %v80, %v122
  %v157 = vmul.f32 %v81, %v118
  %v158 = vmul.f32 %v82, %v122
  %v159 = vmul.f32 %v83, %v118
  %v160 = vmul.f32 %v84, %v122
  %v161 = vmul.f32 %v85, %v118
  %v162 = vmul.f32 %v86, %v122
  %v163 = vmul.f32 %v87, %v118
  %v164 = vmul.f32 %v88, %v122
  %v165 = vmul.f32 %v89, %v118
  %v166 = vmul.f32 %v90, %v122
  %v167 = vmul.f32 %v91, %v118
  %v168 = vmul.f32 %v92, %v122
  %v169 = vmul.f32 %v93, %v118
  %v170 = vmul.f32 %v94, %v122
  %v171 = vmul.f32 %v95, %v118
  %v172 = vmul.f32 %v96, %v122
  %v173 = vmul.f32 %v97, %v118
  %v174 = vmul.f32 %v98, %v122
  %v175 = vmul.f32 %v99, %v118
  %v176 = vmul.f32 %v100, %v122
  %v177 = vmul.f32 %v101, %v118
  %v178 = vmul.f32 %v102, %v122
  %v179 = vmul.f32 %v103, %v118
  %v180 = vmul.f32 %v104, %v122
  %v181 = vmul.f32 %v105, %v118
  %v182 = vmul.f32 %v106, %v122
  %v183 = vmul.f32 %v107, %v118
  %v184 = vmul.f32 %v108, %v122
  %v185 = vmul.f32 %v109, %v118
  %v186 = vmul.f32 %v110, %v122
  %v187 = vmul.f32 %v111, %v118
  %v188 = vmul.f32 %v112, %v122
  %v189 = vld [vmem:[%s2] sm:$0x3]
  %v191 = vlaneseq
  %v192 = vshrl.u32 %v191, 7
  %v193 = vsub.s32 0, %v192
  %v194 = vrot.slane %v189, %v193
  %v195 = vlaneseq
  %v196 = vshrl.u32 %v195, 7
  %v197 = vsub.s32 1, %v196
  %v198 = vrot.slane %v189, %v197
  %v201 = vadd.f32 %v125, %v194
  %v202 = vadd.f32 %v126, %v198
  %v203 = vadd.f32 %v127, %v194
  %v204 = vadd.f32 %v128, %v198
  %v205 = vadd.f32 %v129, %v194
  %v206 = vadd.f32 %v130, %v198
  %v207 = vadd.f32 %v131, %v194
  %v208 = vadd.f32 %v132, %v198
  %v209 = vadd.f32 %v133, %v194
  %v210 = vadd.f32 %v134, %v198
  %v211 = vadd.f32 %v135, %v194
  %v212 = vadd.f32 %v136, %v198
  %v213 = vadd.f32 %v137, %v194
  %v214 = vadd.f32 %v138, %v198
  %v215 = vadd.f32 %v139, %v194
  %v216 = vadd.f32 %v140, %v198
  %v217 = vadd.f32 %v141, %v194
  %v218 = vadd.f32 %v142, %v198
  %v219 = vadd.f32 %v143, %v194
  %v220 = vadd.f32 %v144, %v198
  %v221 = vadd.f32 %v145, %v194
  %v222 = vadd.f32 %v146, %v198
  %v223 = vadd.f32 %v147, %v194
  %v224 = vadd.f32 %v148, %v198
  %v225 = vadd.f32 %v149, %v194
  %v226 = vadd.f32 %v150, %v198
  %v227 = vadd.f32 %v151, %v194
  %v228 = vadd.f32 %v152, %v198
  %v229 = vadd.f32 %v153, %v194
  %v230 = vadd.f32 %v154, %v198
  %v231 = vadd.f32 %v155, %v194
  %v232 = vadd.f32 %v156, %v198
  %v233 = vadd.f32 %v157, %v194
  %v234 = vadd.f32 %v158, %v198
  %v235 = vadd.f32 %v159, %v194
  %v236 = vadd.f32 %v160, %v198
  %v237 = vadd.f32 %v161, %v194
  %v238 = vadd.f32 %v162, %v198
  %v239 = vadd.f32 %v163, %v194
  %v240 = vadd.f32 %v164, %v198
  %v241 = vadd.f32 %v165, %v194
  %v242 = vadd.f32 %v166, %v198
  %v243 = vadd.f32 %v167, %v194
  %v244 = vadd.f32 %v168, %v198
  %v245 = vadd.f32 %v169, %v194
  %v246 = vadd.f32 %v170, %v198
  %v247 = vadd.f32 %v171, %v194
  %v248 = vadd.f32 %v172, %v198
  %v249 = vadd.f32 %v173, %v194
  %v250 = vadd.f32 %v174, %v198
  %v251 = vadd.f32 %v175, %v194
  %v252 = vadd.f32 %v176, %v198
  %v253 = vadd.f32 %v177, %v194
  %v254 = vadd.f32 %v178, %v198
  %v255 = vadd.f32 %v179, %v194
  %v256 = vadd.f32 %v180, %v198
  %v257 = vadd.f32 %v181, %v194
  %v258 = vadd.f32 %v182, %v198
  %v259 = vadd.f32 %v183, %v194
  %v260 = vadd.f32 %v184, %v198
  %v261 = vadd.f32 %v185, %v194
  %v262 = vadd.f32 %v186, %v198
  %v263 = vadd.f32 %v187, %v194
  %v264 = vadd.f32 %v188, %v198
  %v265 = vmax.f32 %v201, 0.0
  %v266 = vmax.f32 %v202, 0.0
  %v267 = vmax.f32 %v203, 0.0
  %v268 = vmax.f32 %v204, 0.0
  %v269 = vmax.f32 %v205, 0.0
  %v270 = vmax.f32 %v206, 0.0
  %v271 = vmax.f32 %v207, 0.0
  %v272 = vmax.f32 %v208, 0.0
  %v273 = vmax.f32 %v209, 0.0
  %v274 = vmax.f32 %v210, 0.0
  %v275 = vmax.f32 %v211, 0.0
  %v276 = vmax.f32 %v212, 0.0
  %v277 = vmax.f32 %v213, 0.0
  %v278 = vmax.f32 %v214, 0.0
  %v279 = vmax.f32 %v215, 0.0
  %v280 = vmax.f32 %v216, 0.0
  %v281 = vmax.f32 %v217, 0.0
  %v282 = vmax.f32 %v218, 0.0
  %v283 = vmax.f32 %v219, 0.0
  %v284 = vmax.f32 %v220, 0.0
  %v285 = vmax.f32 %v221, 0.0
  %v286 = vmax.f32 %v222, 0.0
  %v287 = vmax.f32 %v223, 0.0
  %v288 = vmax.f32 %v224, 0.0
  %v289 = vmax.f32 %v225, 0.0
  %v290 = vmax.f32 %v226, 0.0
  %v291 = vmax.f32 %v227, 0.0
  %v292 = vmax.f32 %v228, 0.0
  %v293 = vmax.f32 %v229, 0.0
  %v294 = vmax.f32 %v230, 0.0
  %v295 = vmax.f32 %v231, 0.0
  %v296 = vmax.f32 %v232, 0.0
  %v297 = vmax.f32 %v233, 0.0
  %v298 = vmax.f32 %v234, 0.0
  %v299 = vmax.f32 %v235, 0.0
  %v300 = vmax.f32 %v236, 0.0
  %v301 = vmax.f32 %v237, 0.0
  %v302 = vmax.f32 %v238, 0.0
  %v303 = vmax.f32 %v239, 0.0
  %v304 = vmax.f32 %v240, 0.0
  %v305 = vmax.f32 %v241, 0.0
  %v306 = vmax.f32 %v242, 0.0
  %v307 = vmax.f32 %v243, 0.0
  %v308 = vmax.f32 %v244, 0.0
  %v309 = vmax.f32 %v245, 0.0
  %v310 = vmax.f32 %v246, 0.0
  %v311 = vmax.f32 %v247, 0.0
  %v312 = vmax.f32 %v248, 0.0
  %v313 = vmax.f32 %v249, 0.0
  %v314 = vmax.f32 %v250, 0.0
  %v315 = vmax.f32 %v251, 0.0
  %v316 = vmax.f32 %v252, 0.0
  %v317 = vmax.f32 %v253, 0.0
  %v318 = vmax.f32 %v254, 0.0
  %v319 = vmax.f32 %v255, 0.0
  %v320 = vmax.f32 %v256, 0.0
  %v321 = vmax.f32 %v257, 0.0
  %v322 = vmax.f32 %v258, 0.0
  %v323 = vmax.f32 %v259, 0.0
  %v324 = vmax.f32 %v260, 0.0
  %v325 = vmax.f32 %v261, 0.0
  %v326 = vmax.f32 %v262, 0.0
  %v327 = vmax.f32 %v263, 0.0
  %v328 = vmax.f32 %v264, 0.0
  %v329 = vld [vmem:[%s3] sm:$0xff]
  %v330 = vld [vmem:[%s3 + $0x8] sm:$0xff]
  %v331 = vpack.c.bf16 %v267, %v265
  %v332 = vpack.c.bf16 %v268, %v266
  %v333 = vpack.c.bf16 %v271, %v269
  %v334 = vpack.c.bf16 %v272, %v270
  %v335 = vpack.c.bf16 %v275, %v273
  %v336 = vpack.c.bf16 %v276, %v274
  %v337 = vpack.c.bf16 %v279, %v277
  %v338 = vpack.c.bf16 %v280, %v278
  %v339 = vpack.c.bf16 %v283, %v281
  %v340 = vpack.c.bf16 %v284, %v282
  %v341 = vpack.c.bf16 %v287, %v285
  %v342 = vpack.c.bf16 %v288, %v286
  %v343 = vpack.c.bf16 %v291, %v289
  %v344 = vpack.c.bf16 %v292, %v290
  %v345 = vpack.c.bf16 %v295, %v293
  %v346 = vpack.c.bf16 %v296, %v294
  %v347 = vpack.c.bf16 %v299, %v297
  %v348 = vpack.c.bf16 %v300, %v298
  %v349 = vpack.c.bf16 %v303, %v301
  %v350 = vpack.c.bf16 %v304, %v302
  %v351 = vpack.c.bf16 %v307, %v305
  %v352 = vpack.c.bf16 %v308, %v306
  %v353 = vpack.c.bf16 %v311, %v309
  %v354 = vpack.c.bf16 %v312, %v310
  %v355 = vpack.c.bf16 %v315, %v313
  %v356 = vpack.c.bf16 %v316, %v314
  %v357 = vpack.c.bf16 %v319, %v317
  %v358 = vpack.c.bf16 %v320, %v318
  %v359 = vpack.c.bf16 %v323, %v321
  %v360 = vpack.c.bf16 %v324, %v322
  %v361 = vpack.c.bf16 %v327, %v325
  %v362 = vpack.c.bf16 %v328, %v326
  %v365 = vunpack.c.l.b16 %v329
  %v366 = vunpack.c.h.b16 %v329
  %v367 = vunpack.c.l.b16 %v330
  %v368 = vunpack.c.h.b16 %v330
  %v369 = vpack.c.b16 %v367, %v365
  %v370 = vpack.c.b16 %v368, %v366
  %373 = vmatprep.subr.bf16.mxu0 %v332
  %374 = vmatpush1.bf16.msra.mxu0 %v331
  %375 = vmatprep.subr.bf16.mxu0 %v334
  %376 = vmatpush1.bf16.msra.mxu0 %v333
  %377 = vmatprep.subr.bf16.mxu0 %v336
  %378 = vmatpush1.bf16.msra.mxu0 %v335
  %379 = vmatprep.subr.bf16.mxu0 %v338
  %380 = vmatpush1.bf16.msra.mxu0 %v337
  %381 = vmatprep.subr.bf16.mxu0 %v340
  %382 = vmatpush1.bf16.msra.mxu0 %v339
  %383 = vmatprep.subr.bf16.mxu0 %v342
  %384 = vmatpush1.bf16.msra.mxu0 %v341
  %385 = vmatprep.subr.bf16.mxu0 %v344
  %386 = vmatpush1.bf16.msra.mxu0 %v343
  %387 = vmatprep.subr.bf16.mxu0 %v346
  %388 = vmatpush1.bf16.msra.mxu0 %v345
  %389 = vmatprep.subr.bf16.mxu0 %v348
  %390 = vmatpush1.bf16.msra.mxu0 %v347
  %391 = vmatprep.subr.bf16.mxu0 %v350
  %392 = vmatpush1.bf16.msra.mxu0 %v349
  %393 = vmatprep.subr.bf16.mxu0 %v352
  %394 = vmatpush1.bf16.msra.mxu0 %v351
  %395 = vmatprep.subr.bf16.mxu0 %v354
  %396 = vmatpush1.bf16.msra.mxu0 %v353
  %397 = vmatprep.subr.bf16.mxu0 %v356
  %398 = vmatpush1.bf16.msra.mxu0 %v355
  %399 = vmatprep.subr.bf16.mxu0 %v358
  %400 = vmatpush1.bf16.msra.mxu0 %v357
  %401 = vmatprep.subr.bf16.mxu0 %v360
  %402 = vmatpush1.bf16.msra.mxu0 %v359
  %403 = vmatprep.subr.bf16.mxu0 %v362
  %404 = vmatpush1.bf16.msra.mxu0 %v361
  %405 = vmatprep.mubr.bf16.mxu0 %v370
  %406 = vmatmul.mubr.bf16.gmra.mrb[0].mxu0 %v369
  %v407 = vpop.f32.mrb[0].mxu0
  %v408 = vadd.f32 0.0, %v407
  %v409 = vpop.f32.mrb[0].mxu0
  %v410 = vadd.f32 0.0, %v409
  %v411 = vpop.f32.mrb[0].mxu0
  %v412 = vadd.f32 0.0, %v411
  %v413 = vpop.f32.mrb[0].mxu0
  %v414 = vadd.f32 0.0, %v413
  %415 = vdwg.mxu0
  %416 = vst [vmem:[%s4] sm:$0xff] %v408
  %417 = vst [vmem:[%s4 + $0x8] sm:$0xff] %v410
  %418 = vst [vmem:[%s4 + $0x10] sm:$0xff] %v412
  %419 = vst [vmem:[%s4 + $0x18] sm:$0xff] %v414
  // Predicated region
  $region18: #{_gcn_forward_impl.8} parent=0 // pred_check
    _
  $region19: #{_gcn_forward_impl.8} parent=0 // pred_check_branch
    %421 = sbr.rel (0) target = $region21
  $region20: #{_gcn_forward_impl.8} parent=0 // pred_region
    _
  $region21: #{_gcn_forward_impl.8} parent=0 // pred_fallthru
    _
  // Predicated region
  $region22: #{_gcn_forward_impl.8} parent=0 // pred_check
    _
  $region23: #{_gcn_forward_impl.8} parent=0 // pred_check_branch
    %423 = sbr.rel (0) target = $region25
  $region24: #{_gcn_forward_impl.8} parent=0 // pred_region
    _
  $region25: #{_gcn_forward_impl.8} parent=0 // pred_fallthru
    _

// kernel: _gcn_forward_impl.6
$region0: #{_gcn_forward_impl.6}
  #allocation0 [shape = 'u32[]', space=smem, size = 0x4, offset = 0x4, fixed_abs, tag = 'smem constant byte address 0x4 - core index']
  #allocation1 [shape = 'u32[144,128]{1,0:T(1,128)}', space=vmem, size = 0x12000, scoped, tag = 'internal scratch']
  %s0 = inlined_call_operand.vmem [shape: bf16[256,256], index: 0, kind: input, shape index: {}]
  %s1 = inlined_call_operand.vmem [shape: f32[1,256], index: 1, kind: input, shape index: {}]
  %s2 = inlined_call_operand.vmem [shape: f32[1,256], index: 2, kind: input, shape index: {}]
  %s3 = inlined_call_operand.vmem [shape: bf16[256,256], index: 3, kind: input, shape index: {}]
  %s4 = inlined_call_operand.vmem [shape: bf16[256,256], index: 4, kind: output, shape index: {}]
  %s5 = sld [smem:[#allocation0]]
  $region26: #{_gcn_forward_impl.6} parent=0
    _
  %s7 = ssub.s32 1, %s5
  %s8 = scalar_select 0, %s7, %s5
  // Predicated region
  $region2: #{_gcn_forward_impl.6} parent=0 // pred_check
    _
  $region3: #{_gcn_forward_impl.6} parent=0 // pred_check_branch
    %10 = sbr.rel (0) target = $region5
  $region4: #{_gcn_forward_impl.6} parent=0 // pred_region
    _
  $region5: #{_gcn_forward_impl.6} parent=0 // pred_fallthru
    _
  // Predicated region
  $region6: #{_gcn_forward_impl.6} parent=0 // pred_check
    _
  $region7: #{_gcn_forward_impl.6} parent=0 // pred_check_branch
    %12 = sbr.rel (0) target = $region9
  $region8: #{_gcn_forward_impl.6} parent=0 // pred_region
    _
  $region9: #{_gcn_forward_impl.6} parent=0 // pred_fallthru
    _
  // Predicated region
  $region10: #{_gcn_forward_impl.6} parent=0 // pred_check
    _
  $region11: #{_gcn_forward_impl.6} parent=0 // pred_check_branch
    %14 = sbr.rel (0) target = $region13
  $region12: #{_gcn_forward_impl.6} parent=0 // pred_region
    _
  $region13: #{_gcn_forward_impl.6} parent=0 // pred_fallthru
    _
  // Predicated region
  $region14: #{_gcn_forward_impl.6} parent=0 // pred_check
    _
  $region15: #{_gcn_forward_impl.6} parent=0 // pred_check_branch
    %16 = sbr.rel (0) target = $region17
  $region16: #{_gcn_forward_impl.6} parent=0 // pred_region
    _
  $region17: #{_gcn_forward_impl.6} parent=0 // pred_fallthru
    _
  %v17 = vld [vmem:[%s0] sm:$0xff]
  %v18 = vld [vmem:[%s0 + $0x8] sm:$0xff]
  %v19 = vld [vmem:[%s0 + $0x10] sm:$0xff]
  %v20 = vld [vmem:[%s0 + $0x18] sm:$0xff]
  %v21 = vld [vmem:[%s0 + $0x20] sm:$0xff]
  %v22 = vld [vmem:[%s0 + $0x28] sm:$0xff]
  %v23 = vld [vmem:[%s0 + $0x30] sm:$0xff]
  %v24 = vld [vmem:[%s0 + $0x38] sm:$0xff]
  %v25 = vld [vmem:[%s0 + $0x40] sm:$0xff]
  %v26 = vld [vmem:[%s0 + $0x48] sm:$0xff]
  %v27 = vld [vmem:[%s0 + $0x50] sm:$0xff]
  %v28 = vld [vmem:[%s0 + $0x58] sm:$0xff]
  %v29 = vld [vmem:[%s0 + $0x60] sm:$0xff]
  %v30 = vld [vmem:[%s0 + $0x68] sm:$0xff]
  %v31 = vld [vmem:[%s0 + $0x70] sm:$0xff]
  %v32 = vld [vmem:[%s0 + $0x78] sm:$0xff]
  %v33 = vld [vmem:[%s0 + $0x80] sm:$0xff]
  %v34 = vld [vmem:[%s0 + $0x88] sm:$0xff]
  %v35 = vld [vmem:[%s0 + $0x90] sm:$0xff]
  %v36 = vld [vmem:[%s0 + $0x98] sm:$0xff]
  %v37 = vld [vmem:[%s0 + $0xa0] sm:$0xff]
  %v38 = vld [vmem:[%s0 + $0xa8] sm:$0xff]
  %v39 = vld [vmem:[%s0 + $0xb0] sm:$0xff]
  %v40 = vld [vmem:[%s0 + $0xb8] sm:$0xff]
  %v41 = vld [vmem:[%s0 + $0xc0] sm:$0xff]
  %v42 = vld [vmem:[%s0 + $0xc8] sm:$0xff]
  %v43 = vld [vmem:[%s0 + $0xd0] sm:$0xff]
  %v44 = vld [vmem:[%s0 + $0xd8] sm:$0xff]
  %v45 = vld [vmem:[%s0 + $0xe0] sm:$0xff]
  %v46 = vld [vmem:[%s0 + $0xe8] sm:$0xff]
  %v47 = vld [vmem:[%s0 + $0xf0] sm:$0xff]
  %v48 = vld [vmem:[%s0 + $0xf8] sm:$0xff]
  %v49 = vunpack.c.l.bf16 %v17
  %v50 = vunpack.c.h.bf16 %v17
  %v51 = vunpack.c.l.bf16 %v18
  %v52 = vunpack.c.h.bf16 %v18
  %v53 = vunpack.c.l.bf16 %v19
  %v54 = vunpack.c.h.bf16 %v19
  %v55 = vunpack.c.l.bf16 %v20
  %v56 = vunpack.c.h.bf16 %v20
  %v57 = vunpack.c.l.bf16 %v21
  %v58 = vunpack.c.h.bf16 %v21
  %v59 = vunpack.c.l.bf16 %v22
  %v60 = vunpack.c.h.bf16 %v22
  %v61 = vunpack.c.l.bf16 %v23
  %v62 = vunpack.c.h.bf16 %v23
  %v63 = vunpack.c.l.bf16 %v24
  %v64 = vunpack.c.h.bf16 %v24
  %v65 = vunpack.c.l.bf16 %v25
  %v66 = vunpack.c.h.bf16 %v25
  %v67 = vunpack.c.l.bf16 %v26
  %v68 = vunpack.c.h.bf16 %v26
  %v69 = vunpack.c.l.bf16 %v27
  %v70 = vunpack.c.h.bf16 %v27
  %v71 = vunpack.c.l.bf16 %v28
  %v72 = vunpack.c.h.bf16 %v28
  %v73 = vunpack.c.l.bf16 %v29
  %v74 = vunpack.c.h.bf16 %v29
  %v75 = vunpack.c.l.bf16 %v30
  %v76 = vunpack.c.h.bf16 %v30
  %v77 = vunpack.c.l.bf16 %v31
  %v78 = vunpack.c.h.bf16 %v31
  %v79 = vunpack.c.l.bf16 %v32
  %v80 = vunpack.c.h.bf16 %v32
  %v81 = vunpack.c.l.bf16 %v33
  %v82 = vunpack.c.h.bf16 %v33
  %v83 = vunpack.c.l.bf16 %v34
  %v84 = vunpack.c.h.bf16 %v34
  %v85 = vunpack.c.l.bf16 %v35
  %v86 = vunpack.c.h.bf16 %v35
  %v87 = vunpack.c.l.bf16 %v36
  %v88 = vunpack.c.h.bf16 %v36
  %v89 = vunpack.c.l.bf16 %v37
  %v90 = vunpack.c.h.bf16 %v37
  %v91 = vunpack.c.l.bf16 %v38
  %v92 = vunpack.c.h.bf16 %v38
  %v93 = vunpack.c.l.bf16 %v39
  %v94 = vunpack.c.h.bf16 %v39
  %v95 = vunpack.c.l.bf16 %v40
  %v96 = vunpack.c.h.bf16 %v40
  %v97 = vunpack.c.l.bf16 %v41
  %v98 = vunpack.c.h.bf16 %v41
  %v99 = vunpack.c.l.bf16 %v42
  %v100 = vunpack.c.h.bf16 %v42
  %v101 = vunpack.c.l.bf16 %v43
  %v102 = vunpack.c.h.bf16 %v43
  %v103 = vunpack.c.l.bf16 %v44
  %v104 = vunpack.c.h.bf16 %v44
  %v105 = vunpack.c.l.bf16 %v45
  %v106 = vunpack.c.h.bf16 %v45
  %v107 = vunpack.c.l.bf16 %v46
  %v108 = vunpack.c.h.bf16 %v46
  %v109 = vunpack.c.l.bf16 %v47
  %v110 = vunpack.c.h.bf16 %v47
  %v111 = vunpack.c.l.bf16 %v48
  %v112 = vunpack.c.h.bf16 %v48
  %v113 = vld [vmem:[%s1] sm:$0x3]
  %v115 = vlaneseq
  %v116 = vshrl.u32 %v115, 7
  %v117 = vsub.s32 0, %v116
  %v118 = vrot.slane %v113, %v117
  %v119 = vlaneseq
  %v120 = vshrl.u32 %v119, 7
  %v121 = vsub.s32 1, %v120
  %v122 = vrot.slane %v113, %v121
  %v125 = vmul.f32 %v49, %v118
  %v126 = vmul.f32 %v50, %v122
  %v127 = vmul.f32 %v51, %v118
  %v128 = vmul.f32 %v52, %v122
  %v129 = vmul.f32 %v53, %v118
  %v130 = vmul.f32 %v54, %v122
  %v131 = vmul.f32 %v55, %v118
  %v132 = vmul.f32 %v56, %v122
  %v133 = vmul.f32 %v57, %v118
  %v134 = vmul.f32 %v58, %v122
  %v135 = vmul.f32 %v59, %v118
  %v136 = vmul.f32 %v60, %v122
  %v137 = vmul.f32 %v61, %v118
  %v138 = vmul.f32 %v62, %v122
  %v139 = vmul.f32 %v63, %v118
  %v140 = vmul.f32 %v64, %v122
  %v141 = vmul.f32 %v65, %v118
  %v142 = vmul.f32 %v66, %v122
  %v143 = vmul.f32 %v67, %v118
  %v144 = vmul.f32 %v68, %v122
  %v145 = vmul.f32 %v69, %v118
  %v146 = vmul.f32 %v70, %v122
  %v147 = vmul.f32 %v71, %v118
  %v148 = vmul.f32 %v72, %v122
  %v149 = vmul.f32 %v73, %v118
  %v150 = vmul.f32 %v74, %v122
  %v151 = vmul.f32 %v75, %v118
  %v152 = vmul.f32 %v76, %v122
  %v153 = vmul.f32 %v77, %v118
  %v154 = vmul.f32 %v78, %v122
  %v155 = vmul.f32 %v79, %v118
  %v156 = vmul.f32 %v80, %v122
  %v157 = vmul.f32 %v81, %v118
  %v158 = vmul.f32 %v82, %v122
  %v159 = vmul.f32 %v83, %v118
  %v160 = vmul.f32 %v84, %v122
  %v161 = vmul.f32 %v85, %v118
  %v162 = vmul.f32 %v86, %v122
  %v163 = vmul.f32 %v87, %v118
  %v164 = vmul.f32 %v88, %v122
  %v165 = vmul.f32 %v89, %v118
  %v166 = vmul.f32 %v90, %v122
  %v167 = vmul.f32 %v91, %v118
  %v168 = vmul.f32 %v92, %v122
  %v169 = vmul.f32 %v93, %v118
  %v170 = vmul.f32 %v94, %v122
  %v171 = vmul.f32 %v95, %v118
  %v172 = vmul.f32 %v96, %v122
  %v173 = vmul.f32 %v97, %v118
  %v174 = vmul.f32 %v98, %v122
  %v175 = vmul.f32 %v99, %v118
  %v176 = vmul.f32 %v100, %v122
  %v177 = vmul.f32 %v101, %v118
  %v178 = vmul.f32 %v102, %v122
  %v179 = vmul.f32 %v103, %v118
  %v180 = vmul.f32 %v104, %v122
  %v181 = vmul.f32 %v105, %v118
  %v182 = vmul.f32 %v106, %v122
  %v183 = vmul.f32 %v107, %v118
  %v184 = vmul.f32 %v108, %v122
  %v185 = vmul.f32 %v109, %v118
  %v186 = vmul.f32 %v110, %v122
  %v187 = vmul.f32 %v111, %v118
  %v188 = vmul.f32 %v112, %v122
  %v189 = vld [vmem:[%s2] sm:$0x3]
  %v191 = vlaneseq
  %v192 = vshrl.u32 %v191, 7
  %v193 = vsub.s32 0, %v192
  %v194 = vrot.slane %v189, %v193
  %v195 = vlaneseq
  %v196 = vshrl.u32 %v195, 7
  %v197 = vsub.s32 1, %v196
  %v198 = vrot.slane %v189, %v197
  %v201 = vadd.f32 %v125, %v194
  %v202 = vadd.f32 %v126, %v198
  %v203 = vadd.f32 %v127, %v194
  %v204 = vadd.f32 %v128, %v198
  %v205 = vadd.f32 %v129, %v194
  %v206 = vadd.f32 %v130, %v198
  %v207 = vadd.f32 %v131, %v194
  %v208 = vadd.f32 %v132, %v198
  %v209 = vadd.f32 %v133, %v194
  %v210 = vadd.f32 %v134, %v198
  %v211 = vadd.f32 %v135, %v194
  %v212 = vadd.f32 %v136, %v198
  %v213 = vadd.f32 %v137, %v194
  %v214 = vadd.f32 %v138, %v198
  %v215 = vadd.f32 %v139, %v194
  %v216 = vadd.f32 %v140, %v198
  %v217 = vadd.f32 %v141, %v194
  %v218 = vadd.f32 %v142, %v198
  %v219 = vadd.f32 %v143, %v194
  %v220 = vadd.f32 %v144, %v198
  %v221 = vadd.f32 %v145, %v194
  %v222 = vadd.f32 %v146, %v198
  %v223 = vadd.f32 %v147, %v194
  %v224 = vadd.f32 %v148, %v198
  %v225 = vadd.f32 %v149, %v194
  %v226 = vadd.f32 %v150, %v198
  %v227 = vadd.f32 %v151, %v194
  %v228 = vadd.f32 %v152, %v198
  %v229 = vadd.f32 %v153, %v194
  %v230 = vadd.f32 %v154, %v198
  %v231 = vadd.f32 %v155, %v194
  %v232 = vadd.f32 %v156, %v198
  %v233 = vadd.f32 %v157, %v194
  %v234 = vadd.f32 %v158, %v198
  %v235 = vadd.f32 %v159, %v194
  %v236 = vadd.f32 %v160, %v198
  %v237 = vadd.f32 %v161, %v194
  %v238 = vadd.f32 %v162, %v198
  %v239 = vadd.f32 %v163, %v194
  %v240 = vadd.f32 %v164, %v198
  %v241 = vadd.f32 %v165, %v194
  %v242 = vadd.f32 %v166, %v198
  %v243 = vadd.f32 %v167, %v194
  %v244 = vadd.f32 %v168, %v198
  %v245 = vadd.f32 %v169, %v194
  %v246 = vadd.f32 %v170, %v198
  %v247 = vadd.f32 %v171, %v194
  %v248 = vadd.f32 %v172, %v198
  %v249 = vadd.f32 %v173, %v194
  %v250 = vadd.f32 %v174, %v198
  %v251 = vadd.f32 %v175, %v194
  %v252 = vadd.f32 %v176, %v198
  %v253 = vadd.f32 %v177, %v194
  %v254 = vadd.f32 %v178, %v198
  %v255 = vadd.f32 %v179, %v194
  %v256 = vadd.f32 %v180, %v198
  %v257 = vadd.f32 %v181, %v194
  %v258 = vadd.f32 %v182, %v198
  %v259 = vadd.f32 %v183, %v194
  %v260 = vadd.f32 %v184, %v198
  %v261 = vadd.f32 %v185, %v194
  %v262 = vadd.f32 %v186, %v198
  %v263 = vadd.f32 %v187, %v194
  %v264 = vadd.f32 %v188, %v198
  %v265 = vmax.f32 %v201, 0.0
  %v266 = vmax.f32 %v202, 0.0
  %v267 = vmax.f32 %v203, 0.0
  %v268 = vmax.f32 %v204, 0.0
  %v269 = vmax.f32 %v205, 0.0
  %v270 = vmax.f32 %v206, 0.0
  %v271 = vmax.f32 %v207, 0.0
  %v272 = vmax.f32 %v208, 0.0
  %v273 = vmax.f32 %v209, 0.0
  %v274 = vmax.f32 %v210, 0.0
  %v275 = vmax.f32 %v211, 0.0
  %v276 = vmax.f32 %v212, 0.0
  %v277 = vmax.f32 %v213, 0.0
  %v278 = vmax.f32 %v214, 0.0
  %v279 = vmax.f32 %v215, 0.0
  %v280 = vmax.f32 %v216, 0.0
  %v281 = vmax.f32 %v217, 0.0
  %v282 = vmax.f32 %v218, 0.0
  %v283 = vmax.f32 %v219, 0.0
  %v284 = vmax.f32 %v220, 0.0
  %v285 = vmax.f32 %v221, 0.0
  %v286 = vmax.f32 %v222, 0.0
  %v287 = vmax.f32 %v223, 0.0
  %v288 = vmax.f32 %v224, 0.0
  %v289 = vmax.f32 %v225, 0.0
  %v290 = vmax.f32 %v226, 0.0
  %v291 = vmax.f32 %v227, 0.0
  %v292 = vmax.f32 %v228, 0.0
  %v293 = vmax.f32 %v229, 0.0
  %v294 = vmax.f32 %v230, 0.0
  %v295 = vmax.f32 %v231, 0.0
  %v296 = vmax.f32 %v232, 0.0
  %v297 = vmax.f32 %v233, 0.0
  %v298 = vmax.f32 %v234, 0.0
  %v299 = vmax.f32 %v235, 0.0
  %v300 = vmax.f32 %v236, 0.0
  %v301 = vmax.f32 %v237, 0.0
  %v302 = vmax.f32 %v238, 0.0
  %v303 = vmax.f32 %v239, 0.0
  %v304 = vmax.f32 %v240, 0.0
  %v305 = vmax.f32 %v241, 0.0
  %v306 = vmax.f32 %v242, 0.0
  %v307 = vmax.f32 %v243, 0.0
  %v308 = vmax.f32 %v244, 0.0
  %v309 = vmax.f32 %v245, 0.0
  %v310 = vmax.f32 %v246, 0.0
  %v311 = vmax.f32 %v247, 0.0
  %v312 = vmax.f32 %v248, 0.0
  %v313 = vmax.f32 %v249, 0.0
  %v314 = vmax.f32 %v250, 0.0
  %v315 = vmax.f32 %v251, 0.0
  %v316 = vmax.f32 %v252, 0.0
  %v317 = vmax.f32 %v253, 0.0
  %v318 = vmax.f32 %v254, 0.0
  %v319 = vmax.f32 %v255, 0.0
  %v320 = vmax.f32 %v256, 0.0
  %v321 = vmax.f32 %v257, 0.0
  %v322 = vmax.f32 %v258, 0.0
  %v323 = vmax.f32 %v259, 0.0
  %v324 = vmax.f32 %v260, 0.0
  %v325 = vmax.f32 %v261, 0.0
  %v326 = vmax.f32 %v262, 0.0
  %v327 = vmax.f32 %v263, 0.0
  %v328 = vmax.f32 %v264, 0.0
  %v329 = vpack.c.bf16 %v267, %v265
  %v330 = vpack.c.bf16 %v268, %v266
  %v331 = vpack.c.bf16 %v271, %v269
  %v332 = vpack.c.bf16 %v272, %v270
  %v333 = vpack.c.bf16 %v275, %v273
  %v334 = vpack.c.bf16 %v276, %v274
  %v335 = vpack.c.bf16 %v279, %v277
  %v336 = vpack.c.bf16 %v280, %v278
  %v337 = vpack.c.bf16 %v283, %v281
  %v338 = vpack.c.bf16 %v284, %v282
  %v339 = vpack.c.bf16 %v287, %v285
  %v340 = vpack.c.bf16 %v288, %v286
  %v341 = vpack.c.bf16 %v291, %v289
  %v342 = vpack.c.bf16 %v292, %v290
  %v343 = vpack.c.bf16 %v295, %v293
  %v344 = vpack.c.bf16 %v296, %v294
  %v345 = vpack.c.bf16 %v299, %v297
  %v346 = vpack.c.bf16 %v300, %v298
  %v347 = vpack.c.bf16 %v303, %v301
  %v348 = vpack.c.bf16 %v304, %v302
  %v349 = vpack.c.bf16 %v307, %v305
  %v350 = vpack.c.bf16 %v308, %v306
  %v351 = vpack.c.bf16 %v311, %v309
  %v352 = vpack.c.bf16 %v312, %v310
  %v353 = vpack.c.bf16 %v315, %v313
  %v354 = vpack.c.bf16 %v316, %v314
  %v355 = vpack.c.bf16 %v319, %v317
  %v356 = vpack.c.bf16 %v320, %v318
  %v357 = vpack.c.bf16 %v323, %v321
  %v358 = vpack.c.bf16 %v324, %v322
  %v359 = vpack.c.bf16 %v327, %v325
  %v360 = vpack.c.bf16 %v328, %v326
  %v361 = vld [vmem:[%s3] sm:$0xff]
  %v362 = vld [vmem:[%s3 + $0x8] sm:$0xff]
  %v363 = vld [vmem:[%s3 + $0x10] sm:$0xff]
  %v364 = vld [vmem:[%s3 + $0x18] sm:$0xff]
  %v365 = vld [vmem:[%s3 + $0x20] sm:$0xff]
  %v366 = vld [vmem:[%s3 + $0x28] sm:$0xff]
  %v367 = vld [vmem:[%s3 + $0x30] sm:$0xff]
  %v368 = vld [vmem:[%s3 + $0x38] sm:$0xff]
  %v369 = vld [vmem:[%s3 + $0x40] sm:$0xff]
  %v370 = vld [vmem:[%s3 + $0x48] sm:$0xff]
  %v371 = vld [vmem:[%s3 + $0x50] sm:$0xff]
  %v372 = vld [vmem:[%s3 + $0x58] sm:$0xff]
  %v373 = vld [vmem:[%s3 + $0x60] sm:$0xff]
  %v374 = vld [vmem:[%s3 + $0x68] sm:$0xff]
  %v375 = vld [vmem:[%s3 + $0x70] sm:$0xff]
  %v376 = vld [vmem:[%s3 + $0x78] sm:$0xff]
  %v377 = vld [vmem:[%s3 + $0x80] sm:$0xff]
  %v378 = vld [vmem:[%s3 + $0x88] sm:$0xff]
  %v379 = vld [vmem:[%s3 + $0x90] sm:$0xff]
  %v380 = vld [vmem:[%s3 + $0x98] sm:$0xff]
  %v381 = vld [vmem:[%s3 + $0xa0] sm:$0xff]
  %v382 = vld [vmem:[%s3 + $0xa8] sm:$0xff]
  %v383 = vld [vmem:[%s3 + $0xb0] sm:$0xff]
  %v384 = vld [vmem:[%s3 + $0xb8] sm:$0xff]
  %v385 = vld [vmem:[%s3 + $0xc0] sm:$0xff]
  %v386 = vld [vmem:[%s3 + $0xc8] sm:$0xff]
  %v387 = vld [vmem:[%s3 + $0xd0] sm:$0xff]
  %v388 = vld [vmem:[%s3 + $0xd8] sm:$0xff]
  %v389 = vld [vmem:[%s3 + $0xe0] sm:$0xff]
  %v390 = vld [vmem:[%s3 + $0xe8] sm:$0xff]
  %v391 = vld [vmem:[%s3 + $0xf0] sm:$0xff]
  %v392 = vld [vmem:[%s3 + $0xf8] sm:$0xff]
  %v425 = vunpack.c.l.b16 %v361
  %v426 = vunpack.c.h.b16 %v361
  %v427 = vunpack.c.l.b16 %v362
  %v428 = vunpack.c.h.b16 %v362
  %v429 = vunpack.c.l.b16 %v363
  %v430 = vunpack.c.h.b16 %v363
  %v431 = vunpack.c.l.b16 %v364
  %v432 = vunpack.c.h.b16 %v364
  %v433 = vunpack.c.l.b16 %v365
  %v434 = vunpack.c.h.b16 %v365
  %v435 = vunpack.c.l.b16 %v366
  %v436 = vunpack.c.h.b16 %v366
  %v437 = vunpack.c.l.b16 %v367
  %v438 = vunpack.c.h.b16 %v367
  %v439 = vunpack.c.l.b16 %v368
  %v440 = vunpack.c.h.b16 %v368
  %v441 = vunpack.c.l.b16 %v369
  %v442 = vunpack.c.h.b16 %v369
  %v443 = vunpack.c.l.b16 %v370
  %v444 = vunpack.c.h.b16 %v370
  %v445 = vunpack.c.l.b16 %v371
  %v446 = vunpack.c.h.b16 %v371
  %v447 = vunpack.c.l.b16 %v372
  %v448 = vunpack.c.h.b16 %v372
  %v449 = vunpack.c.l.b16 %v373
  %v450 = vunpack.c.h.b16 %v373
  %v451 = vunpack.c.l.b16 %v374
  %v452 = vunpack.c.h.b16 %v374
  %v453 = vunpack.c.l.b16 %v375
  %v454 = vunpack.c.h.b16 %v375
  %v455 = vunpack.c.l.b16 %v376
  %v456 = vunpack.c.h.b16 %v376
  %v457 = vunpack.c.l.b16 %v377
  %v458 = vunpack.c.h.b16 %v377
  %v459 = vunpack.c.l.b16 %v378
  %v460 = vunpack.c.h.b16 %v378
  %v461 = vunpack.c.l.b16 %v379
  %v462 = vunpack.c.h.b16 %v379
  %v463 = vunpack.c.l.b16 %v380
  %v464 = vunpack.c.h.b16 %v380
  %v465 = vunpack.c.l.b16 %v381
  %v466 = vunpack.c.h.b16 %v381
  %v467 = vunpack.c.l.b16 %v382
  %v468 = vunpack.c.h.b16 %v382
  %v469 = vunpack.c.l.b16 %v383
  %v470 = vunpack.c.h.b16 %v383
  %v471 = vunpack.c.l.b16 %v384
  %v472 = vunpack.c.h.b16 %v384
  %v473 = vunpack.c.l.b16 %v385
  %v474 = vunpack.c.h.b16 %v385
  %v475 = vunpack.c.l.b16 %v386
  %v476 = vunpack.c.h.b16 %v386
  %v477 = vunpack.c.l.b16 %v387
  %v478 = vunpack.c.h.b16 %v387
  %v479 = vunpack.c.l.b16 %v388
  %v480 = vunpack.c.h.b16 %v388
  %v481 = vunpack.c.l.b16 %v389
  %v482 = vunpack.c.h.b16 %v389
  %v483 = vunpack.c.l.b16 %v390
  %v484 = vunpack.c.h.b16 %v390
  %v485 = vunpack.c.l.b16 %v391
  %v486 = vunpack.c.h.b16 %v391
  %v487 = vunpack.c.l.b16 %v392
  %v488 = vunpack.c.h.b16 %v392
  %v489 = vpack.c.b16 %v427, %v425
  %v490 = vpack.c.b16 %v428, %v426
  %v491 = vpack.c.b16 %v431, %v429
  %v492 = vpack.c.b16 %v432, %v430
  %v493 = vpack.c.b16 %v435, %v433
  %v494 = vpack.c.b16 %v436, %v434
  %v495 = vpack.c.b16 %v439, %v437
  %v496 = vpack.c.b16 %v440, %v438
  %v497 = vpack.c.b16 %v443, %v441
  %v498 = vpack.c.b16 %v444, %v442
  %v499 = vpack.c.b16 %v447, %v445
  %v500 = vpack.c.b16 %v448, %v446
  %v501 = vpack.c.b16 %v451, %v449
  %v502 = vpack.c.b16 %v452, %v450
  %v503 = vpack.c.b16 %v455, %v453
  %v504 = vpack.c.b16 %v456, %v454
  %v505 = vpack.c.b16 %v459, %v457
  %v506 = vpack.c.b16 %v460, %v458
  %v507 = vpack.c.b16 %v463, %v461
  %v508 = vpack.c.b16 %v464, %v462
  %v509 = vpack.c.b16 %v467, %v465
  %v510 = vpack.c.b16 %v468, %v466
  %v511 = vpack.c.b16 %v471, %v469
  %v512 = vpack.c.b16 %v472, %v470
  %v513 = vpack.c.b16 %v475, %v473
  %v514 = vpack.c.b16 %v476, %v474
  %v515 = vpack.c.b16 %v479, %v477
  %v516 = vpack.c.b16 %v480, %v478
  %v517 = vpack.c.b16 %v483, %v481
  %v518 = vpack.c.b16 %v484, %v482
  %v519 = vpack.c.b16 %v487, %v485
  %v520 = vpack.c.b16 %v488, %v486
  %553 = vmatprep.subr.bf16.mxu0 %v490
  %554 = vmatpush1.bf16.msra.mxu0 %v489
  %555 = vmatprep.subr.bf16.mxu0 %v492
  %556 = vmatpush1.bf16.msra.mxu0 %v491
  %557 = vmatprep.subr.bf16.mxu0 %v494
  %558 = vmatpush1.bf16.msra.mxu0 %v493
  %559 = vmatprep.subr.bf16.mxu0 %v496
  %560 = vmatpush1.bf16.msra.mxu0 %v495
  %561 = vmatprep.subr.bf16.mxu0 %v498
  %562 = vmatpush1.bf16.msra.mxu0 %v497
  %563 = vmatprep.subr.bf16.mxu0 %v500
  %564 = vmatpush1.bf16.msra.mxu0 %v499
  %565 = vmatprep.subr.bf16.mxu0 %v502
  %566 = vmatpush1.bf16.msra.mxu0 %v501
  %567 = vmatprep.subr.bf16.mxu0 %v504
  %568 = vmatpush1.bf16.msra.mxu0 %v503
  %569 = vmatprep.subr.bf16.mxu0 %v506
  %570 = vmatpush1.bf16.msra.mxu0 %v505
  %571 = vmatprep.subr.bf16.mxu0 %v508
  %572 = vmatpush1.bf16.msra.mxu0 %v507
  %573 = vmatprep.subr.bf16.mxu0 %v510
  %574 = vmatpush1.bf16.msra.mxu0 %v509
  %575 = vmatprep.subr.bf16.mxu0 %v512
  %576 = vmatpush1.bf16.msra.mxu0 %v511
  %577 = vmatprep.subr.bf16.mxu0 %v514
  %578 = vmatpush1.bf16.msra.mxu0 %v513
  %579 = vmatprep.subr.bf16.mxu0 %v516
  %580 = vmatpush1.bf16.msra.mxu0 %v515
  %581 = vmatprep.subr.bf16.mxu0 %v518
  %582 = vmatpush1.bf16.msra.mxu0 %v517
  %583 = vmatprep.subr.bf16.mxu0 %v520
  %584 = vmatpush1.bf16.msra.mxu0 %v519
  %585 = vmatprep.mubr.bf16.mxu0 %v330
  %586 = vmatmul.mubr.bf16.gmra.mrb[0].mxu0 %v329
  %v587 = vpop.f32.mrb[0].mxu0
  %v588 = vadd.f32 0.0, %v587
  %v589 = vpop.f32.mrb[0].mxu0
  %v590 = vadd.f32 0.0, %v589
  %v591 = vpop.f32.mrb[0].mxu0
  %v592 = vadd.f32 0.0, %v591
  %v593 = vpop.f32.mrb[0].mxu0
  %v594 = vadd.f32 0.0, %v593
  %595 = vmatprep.mubr.bf16.mxu0 %v332
  %596 = vmatmul.mubr.bf16.gmra.mrb[0].mxu0 %v331
  %v597 = vpop.f32.mrb[0].mxu0
  %v598 = vadd.f32 0.0, %v597
  %v599 = vpop.f32.mrb[0].mxu0
  %v600 = vadd.f32 0.0, %v599
  %v601 = vpop.f32.mrb[0].mxu0
  %v602 = vadd.f32 0.0, %v601
  %v603 = vpop.f32.mrb[0].mxu0
  %v604 = vadd.f32 0.0, %v603
  %605 = vmatprep.mubr.bf16.mxu0 %v334
  %606 = vmatmul.mubr.bf16.gmra.mrb[0].mxu0 %v333
  %v607 = vpop.f32.mrb[0].mxu0
  %v608 = vadd.f32 0.0, %v607
  %v609 = vpop.f32.mrb[0].mxu0
  %v610 = vadd.f32 0.0, %v609
  %v611 = vpop.f32.mrb[0].mxu0
  %v612 = vadd.f32 0.0, %v611
  %v613 = vpop.f32.mrb[0].mxu0
  %v614 = vadd.f32 0.0, %v613
  %615 = vmatprep.mubr.bf16.mxu0 %v336
  %616 = vmatmul.mubr.bf16.gmra.mrb[0].mxu0 %v335
  %v617 = vpop.f32.mrb[0].mxu0
  %v618 = vadd.f32 0.0, %v617
  %v619 = vpop.f32.mrb[0].mxu0
  %v620 = vadd.f32 0.0, %v619
  %v621 = vpop.f32.mrb[0].mxu0
  %v622 = vadd.f32 0.0, %v621
  %v623 = vpop.f32.mrb[0].mxu0
  %v624 = vadd.f32 0.0, %v623
  %625 = vmatprep.mubr.bf16.mxu0 %v338
  %626 = vmatmul.mubr.bf16.gmra.mrb[0].mxu0 %v337
  %v627 = vpop.f32.mrb[0].mxu0
  %v628 = vadd.f32 0.0, %v627
  %v629 = vpop.f32.mrb[0].mxu0
  %v630 = vadd.f32 0.0, %v629
  %v631 = vpop.f32.mrb[0].mxu0
  %v632 = vadd.f32 0.0, %v631
  %v633 = vpop.f32.mrb[0].mxu0
  %v634 = vadd.f32 0.0, %v633
  %635 = vmatprep.mubr.bf16.mxu0 %v340
  %636 = vmatmul.mubr.bf16.gmra.mrb[0].mxu0 %v339
  %v637 = vpop.f32.mrb[0].mxu0
  %v638 = vadd.f32 0.0, %v637
  %v639 = vpop.f32.mrb[0].mxu0
  %v640 = vadd.f32 0.0, %v639
  %v641 = vpop.f32.mrb[0].mxu0
  %v642 = vadd.f32 0.0, %v641
  %v643 = vpop.f32.mrb[0].mxu0
  %v644 = vadd.f32 0.0, %v643
  %645 = vmatprep.mubr.bf16.mxu0 %v342
  %646 = vmatmul.mubr.bf16.gmra.mrb[0].mxu0 %v341
  %v647 = vpop.f32.mrb[0].mxu0
  %v648 = vadd.f32 0.0, %v647
  %v649 = vpop.f32.mrb[0].mxu0
  %v650 = vadd.f32 0.0, %v649
  %v651 = vpop.f32.mrb[0].mxu0
  %v652 = vadd.f32 0.0, %v651
  %v653 = vpop.f32.mrb[0].mxu0
  %v654 = vadd.f32 0.0, %v653
  %655 = vmatprep.mubr.bf16.mxu0 %v344
  %656 = vmatmul.mubr.bf16.gmra.mrb[0].mxu0 %v343
  %v657 = vpop.f32.mrb[0].mxu0
  %v658 = vadd.f32 0.0, %v657
  %v659 = vpop.f32.mrb[0].mxu0
  %v660 = vadd.f32 0.0, %v659
  %v661 = vpop.f32.mrb[0].mxu0
  %v662 = vadd.f32 0.0, %v661
  %v663 = vpop.f32.mrb[0].mxu0
  %v664 = vadd.f32 0.0, %v663
  %665 = vmatprep.mubr.bf16.mxu0 %v346
  %666 = vmatmul.mubr.bf16.gmra.mrb[0].mxu0 %v345
  %v667 = vpop.f32.mrb[0].mxu0
  %v668 = vadd.f32 0.0, %v667
  %v669 = vpop.f32.mrb[0].mxu0
  %v670 = vadd.f32 0.0, %v669
  %v671 = vpop.f32.mrb[0].mxu0
  %v672 = vadd.f32 0.0, %v671
  %v673 = vpop.f32.mrb[0].mxu0
  %v674 = vadd.f32 0.0, %v673
  %675 = vmatprep.mubr.bf16.mxu0 %v348
  %676 = vmatmul.mubr.bf16.gmra.mrb[0].mxu0 %v347
  %v677 = vpop.f32.mrb[0].mxu0
  %v678 = vadd.f32 0.0, %v677
  %v679 = vpop.f32.mrb[0].mxu0
  %v680 = vadd.f32 0.0, %v679
  %v681 = vpop.f32.mrb[0].mxu0
  %v682 = vadd.f32 0.0, %v681
  %v683 = vpop.f32.mrb[0].mxu0
  %v684 = vadd.f32 0.0, %v683
  %685 = vmatprep.mubr.bf16.mxu0 %v350
  %686 = vmatmul.mubr.bf16.gmra.mrb[0].mxu0 %v349
  %v687 = vpop.f32.mrb[0].mxu0
  %v688 = vadd.f32 0.0, %v687
  %v689 = vpop.f32.mrb[0].mxu0
  %v690 = vadd.f32 0.0, %v689
  %v691 = vpop.f32.mrb[0].mxu0
  %v692 = vadd.f32 0.0, %v691
  %v693 = vpop.f32.mrb[0].mxu0
  %v694 = vadd.f32 0.0, %v693
  %695 = vmatprep.mubr.bf16.mxu0 %v352
  %696 = vmatmul.mubr.bf16.gmra.mrb[0].mxu0 %v351
  %v697 = vpop.f32.mrb[0].mxu0
  %v698 = vadd.f32 0.0, %v697
  %v699 = vpop.f32.mrb[0].mxu0
  %v700 = vadd.f32 0.0, %v699
  %v701 = vpop.f32.mrb[0].mxu0
  %v702 = vadd.f32 0.0, %v701
  %v703 = vpop.f32.mrb[0].mxu0
  %v704 = vadd.f32 0.0, %v703
  %705 = vmatprep.mubr.bf16.mxu0 %v354
  %706 = vmatmul.mubr.bf16.gmra.mrb[0].mxu0 %v353
  %v707 = vpop.f32.mrb[0].mxu0
  %v708 = vadd.f32 0.0, %v707
  %v709 = vpop.f32.mrb[0].mxu0
  %v710 = vadd.f32 0.0, %v709
  %v711 = vpop.f32.mrb[0].mxu0
  %v712 = vadd.f32 0.0, %v711
  %v713 = vpop.f32.mrb[0].mxu0
  %v714 = vadd.f32 0.0, %v713
  %715 = vmatprep.mubr.bf16.mxu0 %v356
  %716 = vmatmul.mubr.bf16.gmra.mrb[0].mxu0 %v355
  %v717 = vpop.f32.mrb[0].mxu0
  %v718 = vadd.f32 0.0, %v717
  %v719 = vpop.f32.mrb[0].mxu0
  %v720 = vadd.f32 0.0, %v719
  %v721 = vpop.f32.mrb[0].mxu0
  %v722 = vadd.f32 0.0, %v721
  %v723 = vpop.f32.mrb[0].mxu0
  %v724 = vadd.f32 0.0, %v723
  %725 = vmatprep.mubr.bf16.mxu0 %v358
  %726 = vmatmul.mubr.bf16.gmra.mrb[0].mxu0 %v357
  %v727 = vpop.f32.mrb[0].mxu0
  %v728 = vadd.f32 0.0, %v727
  %v729 = vpop.f32.mrb[0].mxu0
  %v730 = vadd.f32 0.0, %v729
  %v731 = vpop.f32.mrb[0].mxu0
  %v732 = vadd.f32 0.0, %v731
  %v733 = vpop.f32.mrb[0].mxu0
  %v734 = vadd.f32 0.0, %v733
  %735 = vmatprep.mubr.bf16.mxu0 %v360
  %736 = vmatmul.mubr.bf16.gmra.mrb[0].mxu0 %v359
  %v737 = vpop.f32.mrb[0].mxu0
  %v738 = vadd.f32 0.0, %v737
  %v739 = vpop.f32.mrb[0].mxu0
  %v740 = vadd.f32 0.0, %v739
  %v741 = vpop.f32.mrb[0].mxu0
  %v742 = vadd.f32 0.0, %v741
  %v743 = vpop.f32.mrb[0].mxu0
  %v744 = vadd.f32 0.0, %v743
  %745 = vdwg.mxu0
  %v746 = vpack.c.bf16 %v592, %v588
  %v747 = vpack.c.bf16 %v594, %v590
  %v748 = vpack.c.bf16 %v602, %v598
  %v749 = vpack.c.bf16 %v604, %v600
  %v750 = vpack.c.bf16 %v612, %v608
  %v751 = vpack.c.bf16 %v614, %v610
  %v752 = vpack.c.bf16 %v622, %v618
  %v753 = vpack.c.bf16 %v624, %v620
  %v754 = vpack.c.bf16 %v632, %v628
  %v755 = vpack.c.bf16 %v634, %v630
  %v756 = vpack.c.bf16 %v642, %v638
  %v757 = vpack.c.bf16 %v644, %v640
  %v758 = vpack.c.bf16 %v652, %v648
  %v759 = vpack.c.bf16 %v654, %v650
  %v760 = vpack.c.bf16 %v662, %v658
  %v761 = vpack.c.bf16 %v664, %v660
  %v762 = vpack.c.bf16 %v672, %v668
  %v763 = vpack.c.bf16 %v674, %v670
  %v764 = vpack.c.bf16 %v682, %v678
  %v765 = vpack.c.bf16 %v684, %v680
  %v766 = vpack.c.bf16 %v692, %v688
  %v767 = vpack.c.bf16 %v694, %v690
  %v768 = vpack.c.bf16 %v702, %v698
  %v769 = vpack.c.bf16 %v704, %v700
  %v770 = vpack.c.bf16 %v712, %v708
  %v771 = vpack.c.bf16 %v714, %v710
  %v772 = vpack.c.bf16 %v722, %v718
  %v773 = vpack.c.bf16 %v724, %v720
  %v774 = vpack.c.bf16 %v732, %v728
  %v775 = vpack.c.bf16 %v734, %v730
  %v776 = vpack.c.bf16 %v742, %v738
  %v777 = vpack.c.bf16 %v744, %v740
  %v810 = vunpack.c.l.b16 %v746
  %v811 = vunpack.c.l.b16 %v747
  %v812 = vunpack.c.h.b16 %v746
  %v813 = vunpack.c.h.b16 %v747
  %v814 = vunpack.c.l.b16 %v748
  %v815 = vunpack.c.l.b16 %v749
  %v816 = vunpack.c.h.b16 %v748
  %v817 = vunpack.c.h.b16 %v749
  %v818 = vunpack.c.l.b16 %v750
  %v819 = vunpack.c.l.b16 %v751
  %v820 = vunpack.c.h.b16 %v750
  %v821 = vunpack.c.h.b16 %v751
  %v822 = vunpack.c.l.b16 %v752
  %v823 = vunpack.c.l.b16 %v753
  %v824 = vunpack.c.h.b16 %v752
  %v825 = vunpack.c.h.b16 %v753
  %v826 = vunpack.c.l.b16 %v754
  %v827 = vunpack.c.l.b16 %v755
  %v828 = vunpack.c.h.b16 %v754
  %v829 = vunpack.c.h.b16 %v755
  %v830 = vunpack.c.l.b16 %v756
  %v831 = vunpack.c.l.b16 %v757
  %v832 = vunpack.c.h.b16 %v756
  %v833 = vunpack.c.h.b16 %v757
  %v834 = vunpack.c.l.b16 %v758
  %v835 = vunpack.c.l.b16 %v759
  %v836 = vunpack.c.h.b16 %v758
  %v837 = vunpack.c.h.b16 %v759
  %v838 = vunpack.c.l.b16 %v760
  %v839 = vunpack.c.l.b16 %v761
  %v840 = vunpack.c.h.b16 %v760
  %v841 = vunpack.c.h.b16 %v761
  %v842 = vunpack.c.l.b16 %v762
  %v843 = vunpack.c.l.b16 %v763
  %v844 = vunpack.c.h.b16 %v762
  %v845 = vunpack.c.h.b16 %v763
  %v846 = vunpack.c.l.b16 %v764
  %v847 = vunpack.c.l.b16 %v765
  %v848 = vunpack.c.h.b16 %v764
  %v849 = vunpack.c.h.b16 %v765
  %v850 = vunpack.c.l.b16 %v766
  %v851 = vunpack.c.l.b16 %v767
  %v852 = vunpack.c.h.b16 %v766
  %v853 = vunpack.c.h.b16 %v767
  %v854 = vunpack.c.l.b16 %v768
  %v855 = vunpack.c.l.b16 %v769
  %v856 = vunpack.c.h.b16 %v768
  %v857 = vunpack.c.h.b16 %v769
  %v858 = vunpack.c.l.b16 %v770
  %v859 = vunpack.c.l.b16 %v771
  %v860 = vunpack.c.h.b16 %v770
  %v861 = vunpack.c.h.b16 %v771
  %v862 = vunpack.c.l.b16 %v772
  %v863 = vunpack.c.l.b16 %v773
  %v864 = vunpack.c.h.b16 %v772
  %v865 = vunpack.c.h.b16 %v773
  %v866 = vunpack.c.l.b16 %v774
  %v867 = vunpack.c.l.b16 %v775
  %v868 = vunpack.c.h.b16 %v774
  %v869 = vunpack.c.h.b16 %v775
  %v870 = vunpack.c.l.b16 %v776
  %v871 = vunpack.c.l.b16 %v777
  %v872 = vunpack.c.h.b16 %v776
  %v873 = vunpack.c.h.b16 %v777
  %v874 = vpack.c.b16 %v811, %v810
  %v875 = vpack.c.b16 %v813, %v812
  %v876 = vpack.c.b16 %v815, %v814
  %v877 = vpack.c.b16 %v817, %v816
  %v878 = vpack.c.b16 %v819, %v818
  %v879 = vpack.c.b16 %v821, %v820
  %v880 = vpack.c.b16 %v823, %v822
  %v881 = vpack.c.b16 %v825, %v824
  %v882 = vpack.c.b16 %v827, %v826
  %v883 = vpack.c.b16 %v829, %v828
  %v884 = vpack.c.b16 %v831, %v830
  %v885 = vpack.c.b16 %v833, %v832
  %v886 = vpack.c.b16 %v835, %v834
  %v887 = vpack.c.b16 %v837, %v836
  %v888 = vpack.c.b16 %v839, %v838
  %v889 = vpack.c.b16 %v841, %v840
  %v890 = vpack.c.b16 %v843, %v842
  %v891 = vpack.c.b16 %v845, %v844
  %v892 = vpack.c.b16 %v847, %v846
  %v893 = vpack.c.b16 %v849, %v848
  %v894 = vpack.c.b16 %v851, %v850
  %v895 = vpack.c.b16 %v853, %v852
  %v896 = vpack.c.b16 %v855, %v854
  %v897 = vpack.c.b16 %v857, %v856
  %v898 = vpack.c.b16 %v859, %v858
  %v899 = vpack.c.b16 %v861, %v860
  %v900 = vpack.c.b16 %v863, %v862
  %v901 = vpack.c.b16 %v865, %v864
  %v902 = vpack.c.b16 %v867, %v866
  %v903 = vpack.c.b16 %v869, %v868
  %v904 = vpack.c.b16 %v871, %v870
  %v905 = vpack.c.b16 %v873, %v872
  %938 = vst [vmem:[%s4] sm:$0xff] %v874
  %939 = vst [vmem:[%s4 + $0x8] sm:$0xff] %v875
  %940 = vst [vmem:[%s4 + $0x10] sm:$0xff] %v876
  %941 = vst [vmem:[%s4 + $0x18] sm:$0xff] %v877
  %942 = vst [vmem:[%s4 + $0x20] sm:$0xff] %v878
  %943 = vst [vmem:[%s4 + $0x28] sm:$0xff] %v879
  %944 = vst [vmem:[%s4 + $0x30] sm:$0xff] %v880
  %945 = vst [vmem:[%s4 + $0x38] sm:$0xff] %v881
  %946 = vst [vmem:[%s4 + $0x40] sm:$0xff] %v882
  %947 = vst [vmem:[%s4 + $0x48] sm:$0xff] %v883
  %948 = vst [vmem:[%s4 + $0x50] sm:$0xff] %v884
  %949 = vst [vmem:[%s4 + $0x58] sm:$0xff] %v885
  %950 = vst [vmem:[%s4 + $0x60] sm:$0xff] %v886
  %951 = vst [vmem:[%s4 + $0x68] sm:$0xff] %v887
  %952 = vst [vmem:[%s4 + $0x70] sm:$0xff] %v888
  %953 = vst [vmem:[%s4 + $0x78] sm:$0xff] %v889
  %954 = vst [vmem:[%s4 + $0x80] sm:$0xff] %v890
  %955 = vst [vmem:[%s4 + $0x88] sm:$0xff] %v891
  %956 = vst [vmem:[%s4 + $0x90] sm:$0xff] %v892
  %957 = vst [vmem:[%s4 + $0x98] sm:$0xff] %v893
  %958 = vst [vmem:[%s4 + $0xa0] sm:$0xff] %v894
  %959 = vst [vmem:[%s4 + $0xa8] sm:$0xff] %v895
  %960 = vst [vmem:[%s4 + $0xb0] sm:$0xff] %v896
  %961 = vst [vmem:[%s4 + $0xb8] sm:$0xff] %v897
  %962 = vst [vmem:[%s4 + $0xc0] sm:$0xff] %v898
  %963 = vst [vmem:[%s4 + $0xc8] sm:$0xff] %v899
  %964 = vst [vmem:[%s4 + $0xd0] sm:$0xff] %v900
  %965 = vst [vmem:[%s4 + $0xd8] sm:$0xff] %v901
  %966 = vst [vmem:[%s4 + $0xe0] sm:$0xff] %v902
  %967 = vst [vmem:[%s4 + $0xe8] sm:$0xff] %v903
  %968 = vst [vmem:[%s4 + $0xf0] sm:$0xff] %v904
  %969 = vst [vmem:[%s4 + $0xf8] sm:$0xff] %v905
  // Predicated region
  $region18: #{_gcn_forward_impl.6} parent=0 // pred_check
    _
  $region19: #{_gcn_forward_impl.6} parent=0 // pred_check_branch
    %971 = sbr.rel (0) target = $region21
  $region20: #{_gcn_forward_impl.6} parent=0 // pred_region
    _
  $region21: #{_gcn_forward_impl.6} parent=0 // pred_fallthru
    _
  // Predicated region
  $region22: #{_gcn_forward_impl.6} parent=0 // pred_check
    _
  $region23: #{_gcn_forward_impl.6} parent=0 // pred_check_branch
    %973 = sbr.rel (0) target = $region25
  $region24: #{_gcn_forward_impl.6} parent=0 // pred_region
    _
  $region25: #{_gcn_forward_impl.6} parent=0 // pred_fallthru
    _

// kernel: _gcn_forward_impl.5
$region0: #{_gcn_forward_impl.5}
  #allocation0 [shape = 'u32[]', space=smem, size = 0x4, offset = 0x4, fixed_abs, tag = 'smem constant byte address 0x4 - core index']
  #allocation1 [shape = 'u32[144,128]{1,0:T(1,128)}', space=vmem, size = 0x12000, scoped, tag = 'internal scratch']
  #allocation2 [shape = 'f32[256,128]{1,0:T(8,128)}', space=vmem, size = 0x20000, scoped, tag = 'scratch operand']
  %s0 = inlined_call_operand.vmem [shape: bf16[256,256], index: 0, kind: input, shape index: {}]
  %s1 = inlined_call_operand.vmem [shape: bf16[256,128], index: 1, kind: input, shape index: {}]
  %s2 = inlined_call_operand.vmem [shape: bf16[128,256], index: 2, kind: input, shape index: {}]
  %s3 = inlined_call_operand.vmem [shape: f32[1,256], index: 3, kind: input, shape index: {}]
  %s4 = inlined_call_operand.vmem [shape: f32[256,1], index: 4, kind: input, shape index: {}]
  %s5 = inlined_call_operand.vmem [shape: bf16[256,256], index: 5, kind: output, shape index: {0}]
  %s6 = inlined_call_operand.vmem [shape: f32[1,1,256], index: 6, kind: output, shape index: {1}]
  %s7 = inlined_call_operand.vmem [shape: f32[1,1,256], index: 7, kind: output, shape index: {2}]
  %8 = xla_tuple %s5, %s6, %s7
  %s9 = sld [smem:[#allocation0]]
  $region54: #{_gcn_forward_impl.5} parent=0
    _
  %s11 = ssub.s32 1, %s9
  %s12 = scalar_select 0, %s11, %s9
  // Predicated region
  $region2: #{_gcn_forward_impl.5} parent=0 // pred_check
    _
  $region3: #{_gcn_forward_impl.5} parent=0 // pred_check_branch
    %14 = sbr.rel (0) target = $region5
  $region4: #{_gcn_forward_impl.5} parent=0 // pred_region
    _
  $region5: #{_gcn_forward_impl.5} parent=0 // pred_fallthru
    _
  // Predicated region
  $region6: #{_gcn_forward_impl.5} parent=0 // pred_check
    _
  $region7: #{_gcn_forward_impl.5} parent=0 // pred_check_branch
    %16 = sbr.rel (0) target = $region9
  $region8: #{_gcn_forward_impl.5} parent=0 // pred_region
    _
  $region9: #{_gcn_forward_impl.5} parent=0 // pred_fallthru
    _
  // Predicated region
  $region10: #{_gcn_forward_impl.5} parent=0 // pred_check
    _
  $region11: #{_gcn_forward_impl.5} parent=0 // pred_check_branch
    %18 = sbr.rel (0) target = $region13
  $region12: #{_gcn_forward_impl.5} parent=0 // pred_region
    _
  $region13: #{_gcn_forward_impl.5} parent=0 // pred_fallthru
    _
  // Predicated region
  $region14: #{_gcn_forward_impl.5} parent=0 // pred_check
    _
  $region15: #{_gcn_forward_impl.5} parent=0 // pred_check_branch
    %20 = sbr.rel (0) target = $region17
  $region16: #{_gcn_forward_impl.5} parent=0 // pred_region
    _
  $region17: #{_gcn_forward_impl.5} parent=0 // pred_fallthru
    _
  // Predicated region
  $region18: #{_gcn_forward_impl.5} parent=0 // pred_check
    _
  $region19: #{_gcn_forward_impl.5} parent=0 // pred_check_branch
    %22 = sbr.rel (0) target = $region21
  $region20: #{_gcn_forward_impl.5} parent=0 // pred_region
    _
  $region21: #{_gcn_forward_impl.5} parent=0 // pred_fallthru
    _
  %p24 = scmp.eq.s32.totalorder 0, 0
  // Predicated region
  $region22: #{_gcn_forward_impl.5} parent=0 // pred_check
    %p25 = pneg %p24
  $region23: #{_gcn_forward_impl.5} parent=0 // pred_check_branch
    %27 = sbr.rel (%p25) target = $region25
  $region24: #{_gcn_forward_impl.5} parent=0 // pred_region
    %28 = vst [vmem:[#allocation2] sm:$0xff] 0.0
    %29 = vst [vmem:[#allocation2 + $0x8] sm:$0xff] 0.0
    %30 = vst [vmem:[#allocation2 + $0x10] sm:$0xff] 0.0
    %31 = vst [vmem:[#allocation2 + $0x18] sm:$0xff] 0.0
    %32 = vst [vmem:[#allocation2 + $0x20] sm:$0xff] 0.0
    %33 = vst [vmem:[#allocation2 + $0x28] sm:$0xff] 0.0
    %34 = vst [vmem:[#allocation2 + $0x30] sm:$0xff] 0.0
    %35 = vst [vmem:[#allocation2 + $0x38] sm:$0xff] 0.0
    %36 = vst [vmem:[#allocation2 + $0x40] sm:$0xff] 0.0
    %37 = vst [vmem:[#allocation2 + $0x48] sm:$0xff] 0.0
    %38 = vst [vmem:[#allocation2 + $0x50] sm:$0xff] 0.0
    %39 = vst [vmem:[#allocation2 + $0x58] sm:$0xff] 0.0
    %40 = vst [vmem:[#allocation2 + $0x60] sm:$0xff] 0.0
    %41 = vst [vmem:[#allocation2 + $0x68] sm:$0xff] 0.0
    %42 = vst [vmem:[#allocation2 + $0x70] sm:$0xff] 0.0
    %43 = vst [vmem:[#allocation2 + $0x78] sm:$0xff] 0.0
    %44 = vst [vmem:[#allocation2 + $0x80] sm:$0xff] 0.0
    %45 = vst [vmem:[#allocation2 + $0x88] sm:$0xff] 0.0
    %46 = vst [vmem:[#allocation2 + $0x90] sm:$0xff] 0.0
    %47 = vst [vmem:[#allocation2 + $0x98] sm:$0xff] 0.0
    %48 = vst [vmem:[#allocation2 + $0xa0] sm:$0xff] 0.0
    %49 = vst [vmem:[#allocation2 + $0xa8] sm:$0xff] 0.0
    %50 = vst [vmem:[#allocation2 + $0xb0] sm:$0xff] 0.0
    %51 = vst [vmem:[#allocation2 + $0xb8] sm:$0xff] 0.0
    %52 = vst [vmem:[#allocation2 + $0xc0] sm:$0xff] 0.0
    %53 = vst [vmem:[#allocation2 + $0xc8] sm:$0xff] 0.0
    %54 = vst [vmem:[#allocation2 + $0xd0] sm:$0xff] 0.0
    %55 = vst [vmem:[#allocation2 + $0xd8] sm:$0xff] 0.0
    %56 = vst [vmem:[#allocation2 + $0xe0] sm:$0xff] 0.0
    %57 = vst [vmem:[#allocation2 + $0xe8] sm:$0xff] 0.0
    %58 = vst [vmem:[#allocation2 + $0xf0] sm:$0xff] 0.0
    %59 = vst [vmem:[#allocation2 + $0xf8] sm:$0xff] 0.0
  $region25: #{_gcn_forward_impl.5} parent=0 // pred_fallthru
    _
  %v60 = vld [vmem:[#allocation2] sm:$0xff]
  %v61 = vld [vmem:[#allocation2 + $0x8] sm:$0xff]
  %v62 = vld [vmem:[#allocation2 + $0x10] sm:$0xff]
  %v63 = vld [vmem:[#allocation2 + $0x18] sm:$0xff]
  %v64 = vld [vmem:[#allocation2 + $0x20] sm:$0xff]
  %v65 = vld [vmem:[#allocation2 + $0x28] sm:$0xff]
  %v66 = vld [vmem:[#allocation2 + $0x30] sm:$0xff]
  %v67 = vld [vmem:[#allocation2 + $0x38] sm:$0xff]
  %v68 = vld [vmem:[#allocation2 + $0x40] sm:$0xff]
  %v69 = vld [vmem:[#allocation2 + $0x48] sm:$0xff]
  %v70 = vld [vmem:[#allocation2 + $0x50] sm:$0xff]
  %v71 = vld [vmem:[#allocation2 + $0x58] sm:$0xff]
  %v72 = vld [vmem:[#allocation2 + $0x60] sm:$0xff]
  %v73 = vld [vmem:[#allocation2 + $0x68] sm:$0xff]
  %v74 = vld [vmem:[#allocation2 + $0x70] sm:$0xff]
  %v75 = vld [vmem:[#allocation2 + $0x78] sm:$0xff]
  %v76 = vld [vmem:[#allocation2 + $0x80] sm:$0xff]
  %v77 = vld [vmem:[#allocation2 + $0x88] sm:$0xff]
  %v78 = vld [vmem:[#allocation2 + $0x90] sm:$0xff]
  %v79 = vld [vmem:[#allocation2 + $0x98] sm:$0xff]
  %v80 = vld [vmem:[#allocation2 + $0xa0] sm:$0xff]
  %v81 = vld [vmem:[#allocation2 + $0xa8] sm:$0xff]
  %v82 = vld [vmem:[#allocation2 + $0xb0] sm:$0xff]
  %v83 = vld [vmem:[#allocation2 + $0xb8] sm:$0xff]
  %v84 = vld [vmem:[#allocation2 + $0xc0] sm:$0xff]
  %v85 = vld [vmem:[#allocation2 + $0xc8] sm:$0xff]
  %v86 = vld [vmem:[#allocation2 + $0xd0] sm:$0xff]
  %v87 = vld [vmem:[#allocation2 + $0xd8] sm:$0xff]
  %v88 = vld [vmem:[#allocation2 + $0xe0] sm:$0xff]
  %v89 = vld [vmem:[#allocation2 + $0xe8] sm:$0xff]
  %v90 = vld [vmem:[#allocation2 + $0xf0] sm:$0xff]
  %v91 = vld [vmem:[#allocation2 + $0xf8] sm:$0xff]
  %v92 = vld [vmem:[%s0] sm:$0xff]
  %v93 = vld [vmem:[%s0 + $0x8] sm:$0xff]
  %v94 = vld [vmem:[%s0 + $0x10] sm:$0xff]
  %v95 = vld [vmem:[%s0 + $0x18] sm:$0xff]
  %v96 = vld [vmem:[%s0 + $0x20] sm:$0xff]
  %v97 = vld [vmem:[%s0 + $0x28] sm:$0xff]
  %v98 = vld [vmem:[%s0 + $0x30] sm:$0xff]
  %v99 = vld [vmem:[%s0 + $0x38] sm:$0xff]
  %v100 = vld [vmem:[%s0 + $0x40] sm:$0xff]
  %v101 = vld [vmem:[%s0 + $0x48] sm:$0xff]
  %v102 = vld [vmem:[%s0 + $0x50] sm:$0xff]
  %v103 = vld [vmem:[%s0 + $0x58] sm:$0xff]
  %v104 = vld [vmem:[%s0 + $0x60] sm:$0xff]
  %v105 = vld [vmem:[%s0 + $0x68] sm:$0xff]
  %v106 = vld [vmem:[%s0 + $0x70] sm:$0xff]
  %v107 = vld [vmem:[%s0 + $0x78] sm:$0xff]
  %v108 = vld [vmem:[%s0 + $0x80] sm:$0xff]
  %v109 = vld [vmem:[%s0 + $0x88] sm:$0xff]
  %v110 = vld [vmem:[%s0 + $0x90] sm:$0xff]
  %v111 = vld [vmem:[%s0 + $0x98] sm:$0xff]
  %v112 = vld [vmem:[%s0 + $0xa0] sm:$0xff]
  %v113 = vld [vmem:[%s0 + $0xa8] sm:$0xff]
  %v114 = vld [vmem:[%s0 + $0xb0] sm:$0xff]
  %v115 = vld [vmem:[%s0 + $0xb8] sm:$0xff]
  %v116 = vld [vmem:[%s0 + $0xc0] sm:$0xff]
  %v117 = vld [vmem:[%s0 + $0xc8] sm:$0xff]
  %v118 = vld [vmem:[%s0 + $0xd0] sm:$0xff]
  %v119 = vld [vmem:[%s0 + $0xd8] sm:$0xff]
  %v120 = vld [vmem:[%s0 + $0xe0] sm:$0xff]
  %v121 = vld [vmem:[%s0 + $0xe8] sm:$0xff]
  %v122 = vld [vmem:[%s0 + $0xf0] sm:$0xff]
  %v123 = vld [vmem:[%s0 + $0xf8] sm:$0xff]
  %v124 = vld [vmem:[%s1] sm:$0xf]
  %v125 = vld [vmem:[%s1 + $0x4] sm:$0xf]
  %v126 = vld [vmem:[%s1 + $0x8] sm:$0xf]
  %v127 = vld [vmem:[%s1 + $0xc] sm:$0xf]
  %v128 = vld [vmem:[%s1 + $0x10] sm:$0xf]
  %v129 = vld [vmem:[%s1 + $0x14] sm:$0xf]
  %v130 = vld [vmem:[%s1 + $0x18] sm:$0xf]
  %v131 = vld [vmem:[%s1 + $0x1c] sm:$0xf]
  %v132 = vld [vmem:[%s1 + $0x20] sm:$0xf]
  %v133 = vld [vmem:[%s1 + $0x24] sm:$0xf]
  %v134 = vld [vmem:[%s1 + $0x28] sm:$0xf]
  %v135 = vld [vmem:[%s1 + $0x2c] sm:$0xf]
  %v136 = vld [vmem:[%s1 + $0x30] sm:$0xf]
  %v137 = vld [vmem:[%s1 + $0x34] sm:$0xf]
  %v138 = vld [vmem:[%s1 + $0x38] sm:$0xf]
  %v139 = vld [vmem:[%s1 + $0x3c] sm:$0xf]
  %v140 = vld [vmem:[%s1 + $0x40] sm:$0xf]
  %v141 = vld [vmem:[%s1 + $0x44] sm:$0xf]
  %v142 = vld [vmem:[%s1 + $0x48] sm:$0xf]
  %v143 = vld [vmem:[%s1 + $0x4c] sm:$0xf]
  %v144 = vld [vmem:[%s1 + $0x50] sm:$0xf]
  %v145 = vld [vmem:[%s1 + $0x54] sm:$0xf]
  %v146 = vld [vmem:[%s1 + $0x58] sm:$0xf]
  %v147 = vld [vmem:[%s1 + $0x5c] sm:$0xf]
  %v148 = vld [vmem:[%s1 + $0x60] sm:$0xf]
  %v149 = vld [vmem:[%s1 + $0x64] sm:$0xf]
  %v150 = vld [vmem:[%s1 + $0x68] sm:$0xf]
  %v151 = vld [vmem:[%s1 + $0x6c] sm:$0xf]
  %v152 = vld [vmem:[%s1 + $0x70] sm:$0xf]
  %v153 = vld [vmem:[%s1 + $0x74] sm:$0xf]
  %v154 = vld [vmem:[%s1 + $0x78] sm:$0xf]
  %v155 = vld [vmem:[%s1 + $0x7c] sm:$0xf]
  %v188 = vunpack.c.l.b16 %v92
  %v189 = vunpack.c.h.b16 %v92
  %v190 = vunpack.c.l.b16 %v93
  %v191 = vunpack.c.h.b16 %v93
  %v192 = vunpack.c.l.b16 %v94
  %v193 = vunpack.c.h.b16 %v94
  %v194 = vunpack.c.l.b16 %v95
  %v195 = vunpack.c.h.b16 %v95
  %v196 = vunpack.c.l.b16 %v96
  %v197 = vunpack.c.h.b16 %v96
  %v198 = vunpack.c.l.b16 %v97
  %v199 = vunpack.c.h.b16 %v97
  %v200 = vunpack.c.l.b16 %v98
  %v201 = vunpack.c.h.b16 %v98
  %v202 = vunpack.c.l.b16 %v99
  %v203 = vunpack.c.h.b16 %v99
  %v204 = vunpack.c.l.b16 %v100
  %v205 = vunpack.c.h.b16 %v100
  %v206 = vunpack.c.l.b16 %v101
  %v207 = vunpack.c.h.b16 %v101
  %v208 = vunpack.c.l.b16 %v102
  %v209 = vunpack.c.h.b16 %v102
  %v210 = vunpack.c.l.b16 %v103
  %v211 = vunpack.c.h.b16 %v103
  %v212 = vunpack.c.l.b16 %v104
  %v213 = vunpack.c.h.b16 %v104
  %v214 = vunpack.c.l.b16 %v105
  %v215 = vunpack.c.h.b16 %v105
  %v216 = vunpack.c.l.b16 %v106
  %v217 = vunpack.c.h.b16 %v106
  %v218 = vunpack.c.l.b16 %v107
  %v219 = vunpack.c.h.b16 %v107
  %v220 = vunpack.c.l.b16 %v108
  %v221 = vunpack.c.h.b16 %v108
  %v222 = vunpack.c.l.b16 %v109
  %v223 = vunpack.c.h.b16 %v109
  %v224 = vunpack.c.l.b16 %v110
  %v225 = vunpack.c.h.b16 %v110
  %v226 = vunpack.c.l.b16 %v111
  %v227 = vunpack.c.h.b16 %v111
  %v228 = vunpack.c.l.b16 %v112
  %v229 = vunpack.c.h.b16 %v112
  %v230 = vunpack.c.l.b16 %v113
  %v231 = vunpack.c.h.b16 %v113
  %v232 = vunpack.c.l.b16 %v114
  %v233 = vunpack.c.h.b16 %v114
  %v234 = vunpack.c.l.b16 %v115
  %v235 = vunpack.c.h.b16 %v115
  %v236 = vunpack.c.l.b16 %v116
  %v237 = vunpack.c.h.b16 %v116
  %v238 = vunpack.c.l.b16 %v117
  %v239 = vunpack.c.h.b16 %v117
  %v240 = vunpack.c.l.b16 %v118
  %v241 = vunpack.c.h.b16 %v118
  %v242 = vunpack.c.l.b16 %v119
  %v243 = vunpack.c.h.b16 %v119
  %v244 = vunpack.c.l.b16 %v120
  %v245 = vunpack.c.h.b16 %v120
  %v246 = vunpack.c.l.b16 %v121
  %v247 = vunpack.c.h.b16 %v121
  %v248 = vunpack.c.l.b16 %v122
  %v249 = vunpack.c.h.b16 %v122
  %v250 = vunpack.c.l.b16 %v123
  %v251 = vunpack.c.h.b16 %v123
  %v252 = vpack.c.b16 %v190, %v188
  %v253 = vpack.c.b16 %v191, %v189
  %v254 = vpack.c.b16 %v194, %v192
  %v255 = vpack.c.b16 %v195, %v193
  %v256 = vpack.c.b16 %v198, %v196
  %v257 = vpack.c.b16 %v199, %v197
  %v258 = vpack.c.b16 %v202, %v200
  %v259 = vpack.c.b16 %v203, %v201
  %v260 = vpack.c.b16 %v206, %v204
  %v261 = vpack.c.b16 %v207, %v205
  %v262 = vpack.c.b16 %v210, %v208
  %v263 = vpack.c.b16 %v211, %v209
  %v264 = vpack.c.b16 %v214, %v212
  %v265 = vpack.c.b16 %v215, %v213
  %v266 = vpack.c.b16 %v218, %v216
  %v267 = vpack.c.b16 %v219, %v217
  %v268 = vpack.c.b16 %v222, %v220
  %v269 = vpack.c.b16 %v223, %v221
  %v270 = vpack.c.b16 %v226, %v224
  %v271 = vpack.c.b16 %v227, %v225
  %v272 = vpack.c.b16 %v230, %v228
  %v273 = vpack.c.b16 %v231, %v229
  %v274 = vpack.c.b16 %v234, %v232
  %v275 = vpack.c.b16 %v235, %v233
  %v276 = vpack.c.b16 %v238, %v236
  %v277 = vpack.c.b16 %v239, %v237
  %v278 = vpack.c.b16 %v242, %v240
  %v279 = vpack.c.b16 %v243, %v241
  %v280 = vpack.c.b16 %v246, %v244
  %v281 = vpack.c.b16 %v247, %v245
  %v282 = vpack.c.b16 %v250, %v248
  %v283 = vpack.c.b16 %v251, %v249
  %v348 = vunpack.c.l.b16 %v124
  %v349 = vunpack.c.l.b16 %v125
  %v350 = vunpack.c.l.b16 %v126
  %v351 = vunpack.c.l.b16 %v127
  %v352 = vunpack.c.l.b16 %v128
  %v353 = vunpack.c.l.b16 %v129
  %v354 = vunpack.c.l.b16 %v130
  %v355 = vunpack.c.l.b16 %v131
  %v356 = vunpack.c.l.b16 %v132
  %v357 = vunpack.c.l.b16 %v133
  %v358 = vunpack.c.l.b16 %v134
  %v359 = vunpack.c.l.b16 %v135
  %v360 = vunpack.c.l.b16 %v136
  %v361 = vunpack.c.l.b16 %v137
  %v362 = vunpack.c.l.b16 %v138
  %v363 = vunpack.c.l.b16 %v139
  %v364 = vunpack.c.l.b16 %v140
  %v365 = vunpack.c.l.b16 %v141
  %v366 = vunpack.c.l.b16 %v142
  %v367 = vunpack.c.l.b16 %v143
  %v368 = vunpack.c.l.b16 %v144
  %v369 = vunpack.c.l.b16 %v145
  %v370 = vunpack.c.l.b16 %v146
  %v371 = vunpack.c.l.b16 %v147
  %v372 = vunpack.c.l.b16 %v148
  %v373 = vunpack.c.l.b16 %v149
  %v374 = vunpack.c.l.b16 %v150
  %v375 = vunpack.c.l.b16 %v151
  %v376 = vunpack.c.l.b16 %v152
  %v377 = vunpack.c.l.b16 %v153
  %v378 = vunpack.c.l.b16 %v154
  %v379 = vunpack.c.l.b16 %v155
  %v380 = vpack.c.b16 %v349, %v348
  %v381 = vpack.c.b16 %v351, %v350
  %v382 = vpack.c.b16 %v353, %v352
  %v383 = vpack.c.b16 %v355, %v354
  %v384 = vpack.c.b16 %v357, %v356
  %v385 = vpack.c.b16 %v359, %v358
  %v386 = vpack.c.b16 %v361, %v360
  %v387 = vpack.c.b16 %v363, %v362
  %v388 = vpack.c.b16 %v365, %v364
  %v389 = vpack.c.b16 %v367, %v366
  %v390 = vpack.c.b16 %v369, %v368
  %v391 = vpack.c.b16 %v371, %v370
  %v392 = vpack.c.b16 %v373, %v372
  %v393 = vpack.c.b16 %v375, %v374
  %v394 = vpack.c.b16 %v377, %v376
  %v395 = vpack.c.b16 %v379, %v378
  %412 = vmatprep.subr.bf16.mxu0 0
  %413 = vmatpush1.bf16.msra.mxu0 %v380
  %414 = vmatprep.subr.bf16.mxu0 0
  %415 = vmatpush1.bf16.msra.mxu0 %v381
  %416 = vmatprep.subr.bf16.mxu0 0
  %417 = vmatpush1.bf16.msra.mxu0 %v382
  %418 = vmatprep.subr.bf16.mxu0 0
  %419 = vmatpush1.bf16.msra.mxu0 %v383
  %420 = vmatprep.subr.bf16.mxu0 0
  %421 = vmatpush1.bf16.msra.mxu0 %v384
  %422 = vmatprep.subr.bf16.mxu0 0
  %423 = vmatpush1.bf16.msra.mxu0 %v385
  %424 = vmatprep.subr.bf16.mxu0 0
  %425 = vmatpush1.bf16.msra.mxu0 %v386
  %426 = vmatprep.subr.bf16.mxu0 0
  %427 = vmatpush1.bf16.msra.mxu0 %v387
  %428 = vmatprep.subr.bf16.mxu0 0
  %429 = vmatpush1.bf16.msra.mxu0 %v388
  %430 = vmatprep.subr.bf16.mxu0 0
  %431 = vmatpush1.bf16.msra.mxu0 %v389
  %432 = vmatprep.subr.bf16.mxu0 0
  %433 = vmatpush1.bf16.msra.mxu0 %v390
  %434 = vmatprep.subr.bf16.mxu0 0
  %435 = vmatpush1.bf16.msra.mxu0 %v391
  %436 = vmatprep.subr.bf16.mxu0 0
  %437 = vmatpush1.bf16.msra.mxu0 %v392
  %438 = vmatprep.subr.bf16.mxu0 0
  %439 = vmatpush1.bf16.msra.mxu0 %v393
  %440 = vmatprep.subr.bf16.mxu0 0
  %441 = vmatpush1.bf16.msra.mxu0 %v394
  %442 = vmatprep.subr.bf16.mxu0 0
  %443 = vmatpush1.bf16.msra.mxu0 %v395
  %444 = vmatprep.mubr.bf16.mxu0 %v253
  %445 = vmatmul.mubr.bf16.gmra.mrb[0].mxu0 %v252
  %v446 = vpop.f32.mrb[0].mxu0
  %v447 = vadd.f32 0.0, %v446
  %v448 = vpop.f32.mrb[0].mxu0
  %v449 = vpop.f32.mrb[0].mxu0
  %v450 = vadd.f32 0.0, %v449
  %v451 = vpop.f32.mrb[0].mxu0
  %452 = vmatprep.mubr.bf16.mxu0 %v255
  %453 = vmatmul.mubr.bf16.gmra.mrb[0].mxu0 %v254
  %v454 = vpop.f32.mrb[0].mxu0
  %v455 = vadd.f32 0.0, %v454
  %v456 = vpop.f32.mrb[0].mxu0
  %v457 = vpop.f32.mrb[0].mxu0
  %v458 = vadd.f32 0.0, %v457
  %v459 = vpop.f32.mrb[0].mxu0
  %460 = vmatprep.mubr.bf16.mxu0 %v257
  %461 = vmatmul.mubr.bf16.gmra.mrb[0].mxu0 %v256
  %v462 = vpop.f32.mrb[0].mxu0
  %v463 = vadd.f32 0.0, %v462
  %v464 = vpop.f32.mrb[0].mxu0
  %v465 = vpop.f32.mrb[0].mxu0
  %v466 = vadd.f32 0.0, %v465
  %v467 = vpop.f32.mrb[0].mxu0
  %468 = vmatprep.mubr.bf16.mxu0 %v259
  %469 = vmatmul.mubr.bf16.gmra.mrb[0].mxu0 %v258
  %v470 = vpop.f32.mrb[0].mxu0
  %v471 = vadd.f32 0.0, %v470
  %v472 = vpop.f32.mrb[0].mxu0
  %v473 = vpop.f32.mrb[0].mxu0
  %v474 = vadd.f32 0.0, %v473
  %v475 = vpop.f32.mrb[0].mxu0
  %476 = vmatprep.mubr.bf16.mxu0 %v261
  %477 = vmatmul.mubr.bf16.gmra.mrb[0].mxu0 %v260
  %v478 = vpop.f32.mrb[0].mxu0
  %v479 = vadd.f32 0.0, %v478
  %v480 = vpop.f32.mrb[0].mxu0
  %v481 = vpop.f32.mrb[0].mxu0
  %v482 = vadd.f32 0.0, %v481
  %v483 = vpop.f32.mrb[0].mxu0
  %484 = vmatprep.mubr.bf16.mxu0 %v263
  %485 = vmatmul.mubr.bf16.gmra.mrb[0].mxu0 %v262
  %v486 = vpop.f32.mrb[0].mxu0
  %v487 = vadd.f32 0.0, %v486
  %v488 = vpop.f32.mrb[0].mxu0
  %v489 = vpop.f32.mrb[0].mxu0
  %v490 = vadd.f32 0.0, %v489
  %v491 = vpop.f32.mrb[0].mxu0
  %492 = vmatprep.mubr.bf16.mxu0 %v265
  %493 = vmatmul.mubr.bf16.gmra.mrb[0].mxu0 %v264
  %v494 = vpop.f32.mrb[0].mxu0
  %v495 = vadd.f32 0.0, %v494
  %v496 = vpop.f32.mrb[0].mxu0
  %v497 = vpop.f32.mrb[0].mxu0
  %v498 = vadd.f32 0.0, %v497
  %v499 = vpop.f32.mrb[0].mxu0
  %500 = vmatprep.mubr.bf16.mxu0 %v267
  %501 = vmatmul.mubr.bf16.gmra.mrb[0].mxu0 %v266
  %v502 = vpop.f32.mrb[0].mxu0
  %v503 = vadd.f32 0.0, %v502
  %v504 = vpop.f32.mrb[0].mxu0
  %v505 = vpop.f32.mrb[0].mxu0
  %v506 = vadd.f32 0.0, %v505
  %v507 = vpop.f32.mrb[0].mxu0
  %508 = vmatprep.mubr.bf16.mxu0 %v269
  %509 = vmatmul.mubr.bf16.gmra.mrb[0].mxu0 %v268
  %v510 = vpop.f32.mrb[0].mxu0
  %v511 = vadd.f32 0.0, %v510
  %v512 = vpop.f32.mrb[0].mxu0
  %v513 = vpop.f32.mrb[0].mxu0
  %v514 = vadd.f32 0.0, %v513
  %v515 = vpop.f32.mrb[0].mxu0
  %516 = vmatprep.mubr.bf16.mxu0 %v271
  %517 = vmatmul.mubr.bf16.gmra.mrb[0].mxu0 %v270
  %v518 = vpop.f32.mrb[0].mxu0
  %v519 = vadd.f32 0.0, %v518
  %v520 = vpop.f32.mrb[0].mxu0
  %v521 = vpop.f32.mrb[0].mxu0
  %v522 = vadd.f32 0.0, %v521
  %v523 = vpop.f32.mrb[0].mxu0
  %524 = vmatprep.mubr.bf16.mxu0 %v273
  %525 = vmatmul.mubr.bf16.gmra.mrb[0].mxu0 %v272
  %v526 = vpop.f32.mrb[0].mxu0
  %v527 = vadd.f32 0.0, %v526
  %v528 = vpop.f32.mrb[0].mxu0
  %v529 = vpop.f32.mrb[0].mxu0
  %v530 = vadd.f32 0.0, %v529
  %v531 = vpop.f32.mrb[0].mxu0
  %532 = vmatprep.mubr.bf16.mxu0 %v275
  %533 = vmatmul.mubr.bf16.gmra.mrb[0].mxu0 %v274
  %v534 = vpop.f32.mrb[0].mxu0
  %v535 = vadd.f32 0.0, %v534
  %v536 = vpop.f32.mrb[0].mxu0
  %v537 = vpop.f32.mrb[0].mxu0
  %v538 = vadd.f32 0.0, %v537
  %v539 = vpop.f32.mrb[0].mxu0
  %540 = vmatprep.mubr.bf16.mxu0 %v277
  %541 = vmatmul.mubr.bf16.gmra.mrb[0].mxu0 %v276
  %v542 = vpop.f32.mrb[0].mxu0
  %v543 = vadd.f32 0.0, %v542
  %v544 = vpop.f32.mrb[0].mxu0
  %v545 = vpop.f32.mrb[0].mxu0
  %v546 = vadd.f32 0.0, %v545
  %v547 = vpop.f32.mrb[0].mxu0
  %548 = vmatprep.mubr.bf16.mxu0 %v279
  %549 = vmatmul.mubr.bf16.gmra.mrb[0].mxu0 %v278
  %v550 = vpop.f32.mrb[0].mxu0
  %v551 = vadd.f32 0.0, %v550
  %v552 = vpop.f32.mrb[0].mxu0
  %v553 = vpop.f32.mrb[0].mxu0
  %v554 = vadd.f32 0.0, %v553
  %v555 = vpop.f32.mrb[0].mxu0
  %556 = vmatprep.mubr.bf16.mxu0 %v281
  %557 = vmatmul.mubr.bf16.gmra.mrb[0].mxu0 %v280
  %v558 = vpop.f32.mrb[0].mxu0
  %v559 = vadd.f32 0.0, %v558
  %v560 = vpop.f32.mrb[0].mxu0
  %v561 = vpop.f32.mrb[0].mxu0
  %v562 = vadd.f32 0.0, %v561
  %v563 = vpop.f32.mrb[0].mxu0
  %564 = vmatprep.mubr.bf16.mxu0 %v283
  %565 = vmatmul.mubr.bf16.gmra.mrb[0].mxu0 %v282
  %v566 = vpop.f32.mrb[0].mxu0
  %v567 = vadd.f32 0.0, %v566
  %v568 = vpop.f32.mrb[0].mxu0
  %v569 = vpop.f32.mrb[0].mxu0
  %v570 = vadd.f32 0.0, %v569
  %v571 = vpop.f32.mrb[0].mxu0
  %572 = vdwg.mxu0
  %v573 = vadd.f32 %v60, %v447
  %v574 = vadd.f32 %v61, %v450
  %v575 = vadd.f32 %v62, %v455
  %v576 = vadd.f32 %v63, %v458
  %v577 = vadd.f32 %v64, %v463
  %v578 = vadd.f32 %v65, %v466
  %v579 = vadd.f32 %v66, %v471
  %v580 = vadd.f32 %v67, %v474
  %v581 = vadd.f32 %v68, %v479
  %v582 = vadd.f32 %v69, %v482
  %v583 = vadd.f32 %v70, %v487
  %v584 = vadd.f32 %v71, %v490
  %v585 = vadd.f32 %v72, %v495
  %v586 = vadd.f32 %v73, %v498
  %v587 = vadd.f32 %v74, %v503
  %v588 = vadd.f32 %v75, %v506
  %v589 = vadd.f32 %v76, %v511
  %v590 = vadd.f32 %v77, %v514
  %v591 = vadd.f32 %v78, %v519
  %v592 = vadd.f32 %v79, %v522
  %v593 = vadd.f32 %v80, %v527
  %v594 = vadd.f32 %v81, %v530
  %v595 = vadd.f32 %v82, %v535
  %v596 = vadd.f32 %v83, %v538
  %v597 = vadd.f32 %v84, %v543
  %v598 = vadd.f32 %v85, %v546
  %v599 = vadd.f32 %v86, %v551
  %v600 = vadd.f32 %v87, %v554
  %v601 = vadd.f32 %v88, %v559
  %v602 = vadd.f32 %v89, %v562
  %v603 = vadd.f32 %v90, %v567
  %v604 = vadd.f32 %v91, %v570
  %605 = vst [vmem:[#allocation2] sm:$0xff] %v573
  %606 = vst [vmem:[#allocation2 + $0x8] sm:$0xff] %v574
  %607 = vst [vmem:[#allocation2 + $0x10] sm:$0xff] %v575
  %608 = vst [vmem:[#allocation2 + $0x18] sm:$0xff] %v576
  %609 = vst [vmem:[#allocation2 + $0x20] sm:$0xff] %v577
  %610 = vst [vmem:[#allocation2 + $0x28] sm:$0xff] %v578
  %611 = vst [vmem:[#allocation2 + $0x30] sm:$0xff] %v579
  %612 = vst [vmem:[#allocation2 + $0x38] sm:$0xff] %v580
  %613 = vst [vmem:[#allocation2 + $0x40] sm:$0xff] %v581
  %614 = vst [vmem:[#allocation2 + $0x48] sm:$0xff] %v582
  %615 = vst [vmem:[#allocation2 + $0x50] sm:$0xff] %v583
  %616 = vst [vmem:[#allocation2 + $0x58] sm:$0xff] %v584
  %617 = vst [vmem:[#allocation2 + $0x60] sm:$0xff] %v585
  %618 = vst [vmem:[#allocation2 + $0x68] sm:$0xff] %v586
  %619 = vst [vmem:[#allocation2 + $0x70] sm:$0xff] %v587
  %620 = vst [vmem:[#allocation2 + $0x78] sm:$0xff] %v588
  %621 = vst [vmem:[#allocation2 + $0x80] sm:$0xff] %v589
  %622 = vst [vmem:[#allocation2 + $0x88] sm:$0xff] %v590
  %623 = vst [vmem:[#allocation2 + $0x90] sm:$0xff] %v591
  %624 = vst [vmem:[#allocation2 + $0x98] sm:$0xff] %v592
  %625 = vst [vmem:[#allocation2 + $0xa0] sm:$0xff] %v593
  %626 = vst [vmem:[#allocation2 + $0xa8] sm:$0xff] %v594
  %627 = vst [vmem:[#allocation2 + $0xb0] sm:$0xff] %v595
  %628 = vst [vmem:[#allocation2 + $0xb8] sm:$0xff] %v596
  %629 = vst [vmem:[#allocation2 + $0xc0] sm:$0xff] %v597
  %630 = vst [vmem:[#allocation2 + $0xc8] sm:$0xff] %v598
  %631 = vst [vmem:[#allocation2 + $0xd0] sm:$0xff] %v599
  %632 = vst [vmem:[#allocation2 + $0xd8] sm:$0xff] %v600
  %633 = vst [vmem:[#allocation2 + $0xe0] sm:$0xff] %v601
  %634 = vst [vmem:[#allocation2 + $0xe8] sm:$0xff] %v602
  %635 = vst [vmem:[#allocation2 + $0xf0] sm:$0xff] %v603
  %636 = vst [vmem:[#allocation2 + $0xf8] sm:$0xff] %v604
  // Predicated region
  $region26: #{_gcn_forward_impl.5} parent=0 // pred_check
    %p637 = pneg %p24
  $region27: #{_gcn_forward_impl.5} parent=0 // pred_check_branch
    %639 = sbr.rel (%p637) target = $region29
  $region28: #{_gcn_forward_impl.5} parent=0 // pred_region
    %v640 = vld [vmem:[#allocation2] sm:$0xff]
    %v641 = vld [vmem:[#allocation2 + $0x8] sm:$0xff]
    %v642 = vld [vmem:[#allocation2 + $0x10] sm:$0xff]
    %v643 = vld [vmem:[#allocation2 + $0x18] sm:$0xff]
    %v644 = vld [vmem:[#allocation2 + $0x20] sm:$0xff]
    %v645 = vld [vmem:[#allocation2 + $0x28] sm:$0xff]
    %v646 = vld [vmem:[#allocation2 + $0x30] sm:$0xff]
    %v647 = vld [vmem:[#allocation2 + $0x38] sm:$0xff]
    %v648 = vld [vmem:[#allocation2 + $0x40] sm:$0xff]
    %v649 = vld [vmem:[#allocation2 + $0x48] sm:$0xff]
    %v650 = vld [vmem:[#allocation2 + $0x50] sm:$0xff]
    %v651 = vld [vmem:[#allocation2 + $0x58] sm:$0xff]
    %v652 = vld [vmem:[#allocation2 + $0x60] sm:$0xff]
    %v653 = vld [vmem:[#allocation2 + $0x68] sm:$0xff]
    %v654 = vld [vmem:[#allocation2 + $0x70] sm:$0xff]
    %v655 = vld [vmem:[#allocation2 + $0x78] sm:$0xff]
    %v656 = vld [vmem:[#allocation2 + $0x80] sm:$0xff]
    %v657 = vld [vmem:[#allocation2 + $0x88] sm:$0xff]
    %v658 = vld [vmem:[#allocation2 + $0x90] sm:$0xff]
    %v659 = vld [vmem:[#allocation2 + $0x98] sm:$0xff]
    %v660 = vld [vmem:[#allocation2 + $0xa0] sm:$0xff]
    %v661 = vld [vmem:[#allocation2 + $0xa8] sm:$0xff]
    %v662 = vld [vmem:[#allocation2 + $0xb0] sm:$0xff]
    %v663 = vld [vmem:[#allocation2 + $0xb8] sm:$0xff]
    %v664 = vld [vmem:[#allocation2 + $0xc0] sm:$0xff]
    %v665 = vld [vmem:[#allocation2 + $0xc8] sm:$0xff]
    %v666 = vld [vmem:[#allocation2 + $0xd0] sm:$0xff]
    %v667 = vld [vmem:[#allocation2 + $0xd8] sm:$0xff]
    %v668 = vld [vmem:[#allocation2 + $0xe0] sm:$0xff]
    %v669 = vld [vmem:[#allocation2 + $0xe8] sm:$0xff]
    %v670 = vld [vmem:[#allocation2 + $0xf0] sm:$0xff]
    %v671 = vld [vmem:[#allocation2 + $0xf8] sm:$0xff]
    %v672 = vpack.c.bf16 %v641, %v640
    %v673 = vpack.c.bf16 %v643, %v642
    %v674 = vpack.c.bf16 %v645, %v644
    %v675 = vpack.c.bf16 %v647, %v646
    %v676 = vpack.c.bf16 %v649, %v648
    %v677 = vpack.c.bf16 %v651, %v650
    %v678 = vpack.c.bf16 %v653, %v652
    %v679 = vpack.c.bf16 %v655, %v654
    %v680 = vpack.c.bf16 %v657, %v656
    %v681 = vpack.c.bf16 %v659, %v658
    %v682 = vpack.c.bf16 %v661, %v660
    %v683 = vpack.c.bf16 %v663, %v662
    %v684 = vpack.c.bf16 %v665, %v664
    %v685 = vpack.c.bf16 %v667, %v666
    %v686 = vpack.c.bf16 %v669, %v668
    %v687 = vpack.c.bf16 %v671, %v670
    %v688 = vld [vmem:[%s2] sm:$0xff]
    %v689 = vld [vmem:[%s2 + $0x8] sm:$0xff]
    %v690 = vld [vmem:[%s2 + $0x10] sm:$0xff]
    %v691 = vld [vmem:[%s2 + $0x18] sm:$0xff]
    %v692 = vld [vmem:[%s2 + $0x20] sm:$0xff]
    %v693 = vld [vmem:[%s2 + $0x28] sm:$0xff]
    %v694 = vld [vmem:[%s2 + $0x30] sm:$0xff]
    %v695 = vld [vmem:[%s2 + $0x38] sm:$0xff]
    %v696 = vld [vmem:[%s2 + $0x40] sm:$0xff]
    %v697 = vld [vmem:[%s2 + $0x48] sm:$0xff]
    %v698 = vld [vmem:[%s2 + $0x50] sm:$0xff]
    %v699 = vld [vmem:[%s2 + $0x58] sm:$0xff]
    %v700 = vld [vmem:[%s2 + $0x60] sm:$0xff]
    %v701 = vld [vmem:[%s2 + $0x68] sm:$0xff]
    %v702 = vld [vmem:[%s2 + $0x70] sm:$0xff]
    %v703 = vld [vmem:[%s2 + $0x78] sm:$0xff]
    %v704 = vld [vmem:[%s3] sm:$0x3]
    %v706 = vlaneseq
    %v707 = vshrl.u32 %v706, 7
    %v708 = vsub.s32 0, %v707
    %v709 = vrot.slane %v704, %v708
    %v710 = vlaneseq
    %v711 = vshrl.u32 %v710, 7
    %v712 = vsub.s32 1, %v711
    %v713 = vrot.slane %v704, %v712
    %v732 = vunpack.c.l.b16 %v688
    %v733 = vunpack.c.h.b16 %v688
    %v734 = vunpack.c.l.b16 %v689
    %v735 = vunpack.c.h.b16 %v689
    %v736 = vunpack.c.l.b16 %v690
    %v737 = vunpack.c.h.b16 %v690
    %v738 = vunpack.c.l.b16 %v691
    %v739 = vunpack.c.h.b16 %v691
    %v740 = vunpack.c.l.b16 %v692
    %v741 = vunpack.c.h.b16 %v692
    %v742 = vunpack.c.l.b16 %v693
    %v743 = vunpack.c.h.b16 %v693
    %v744 = vunpack.c.l.b16 %v694
    %v745 = vunpack.c.h.b16 %v694
    %v746 = vunpack.c.l.b16 %v695
    %v747 = vunpack.c.h.b16 %v695
    %v748 = vunpack.c.l.b16 %v696
    %v749 = vunpack.c.h.b16 %v696
    %v750 = vunpack.c.l.b16 %v697
    %v751 = vunpack.c.h.b16 %v697
    %v752 = vunpack.c.l.b16 %v698
    %v753 = vunpack.c.h.b16 %v698
    %v754 = vunpack.c.l.b16 %v699
    %v755 = vunpack.c.h.b16 %v699
    %v756 = vunpack.c.l.b16 %v700
    %v757 = vunpack.c.h.b16 %v700
    %v758 = vunpack.c.l.b16 %v701
    %v759 = vunpack.c.h.b16 %v701
    %v760 = vunpack.c.l.b16 %v702
    %v761 = vunpack.c.h.b16 %v702
    %v762 = vunpack.c.l.b16 %v703
    %v763 = vunpack.c.h.b16 %v703
    %v764 = vpack.c.b16 %v734, %v732
    %v765 = vpack.c.b16 %v735, %v733
    %v766 = vpack.c.b16 %v738, %v736
    %v767 = vpack.c.b16 %v739, %v737
    %v768 = vpack.c.b16 %v742, %v740
    %v769 = vpack.c.b16 %v743, %v741
    %v770 = vpack.c.b16 %v746, %v744
    %v771 = vpack.c.b16 %v747, %v745
    %v772 = vpack.c.b16 %v750, %v748
    %v773 = vpack.c.b16 %v751, %v749
    %v774 = vpack.c.b16 %v754, %v752
    %v775 = vpack.c.b16 %v755, %v753
    %v776 = vpack.c.b16 %v758, %v756
    %v777 = vpack.c.b16 %v759, %v757
    %v778 = vpack.c.b16 %v762, %v760
    %v779 = vpack.c.b16 %v763, %v761
    %796 = vmatprep.subr.bf16.mxu0 %v765
    %797 = vmatpush1.bf16.msra.mxu0 %v764
    %798 = vmatprep.subr.bf16.mxu0 %v767
    %799 = vmatpush1.bf16.msra.mxu0 %v766
    %800 = vmatprep.subr.bf16.mxu0 %v769
    %801 = vmatpush1.bf16.msra.mxu0 %v768
    %802 = vmatprep.subr.bf16.mxu0 %v771
    %803 = vmatpush1.bf16.msra.mxu0 %v770
    %804 = vmatprep.subr.bf16.mxu0 %v773
    %805 = vmatpush1.bf16.msra.mxu0 %v772
    %806 = vmatprep.subr.bf16.mxu0 %v775
    %807 = vmatpush1.bf16.msra.mxu0 %v774
    %808 = vmatprep.subr.bf16.mxu0 %v777
    %809 = vmatpush1.bf16.msra.mxu0 %v776
    %810 = vmatprep.subr.bf16.mxu0 %v779
    %811 = vmatpush1.bf16.msra.mxu0 %v778
    %812 = vmatprep.subr.bf16.mxu0 0
    %813 = vmatpush1.bf16.msra.mxu0 0
    %814 = vmatprep.subr.bf16.mxu0 0
    %815 = vmatpush1.bf16.msra.mxu0 0
    %816 = vmatprep.subr.bf16.mxu0 0
    %817 = vmatpush1.bf16.msra.mxu0 0
    %818 = vmatprep.subr.bf16.mxu0 0
    %819 = vmatpush1.bf16.msra.mxu0 0
    %820 = vmatprep.subr.bf16.mxu0 0
    %821 = vmatpush1.bf16.msra.mxu0 0
    %822 = vmatprep.subr.bf16.mxu0 0
    %823 = vmatpush1.bf16.msra.mxu0 0
    %824 = vmatprep.subr.bf16.mxu0 0
    %825 = vmatpush1.bf16.msra.mxu0 0
    %826 = vmatprep.subr.bf16.mxu0 0
    %827 = vmatpush1.bf16.msra.mxu0 0
    %828 = vmatprep.mubr.bf16.mxu0 0
    %829 = vmatmul.mubr.bf16.gmra.mrb[0].mxu0 %v672
    %v830 = vpop.f32.mrb[0].mxu0
    %v831 = vadd.f32 %v709, %v830
    %v832 = vpop.f32.mrb[0].mxu0
    %v833 = vadd.f32 %v713, %v832
    %v834 = vpop.f32.mrb[0].mxu0
    %v835 = vadd.f32 %v709, %v834
    %v836 = vpop.f32.mrb[0].mxu0
    %v837 = vadd.f32 %v713, %v836
    %838 = vmatprep.mubr.bf16.mxu0 0
    %839 = vmatmul.mubr.bf16.gmra.mrb[0].mxu0 %v673
    %v840 = vpop.f32.mrb[0].mxu0
    %v841 = vadd.f32 %v709, %v840
    %v842 = vpop.f32.mrb[0].mxu0
    %v843 = vadd.f32 %v713, %v842
    %v844 = vpop.f32.mrb[0].mxu0
    %v845 = vadd.f32 %v709, %v844
    %v846 = vpop.f32.mrb[0].mxu0
    %v847 = vadd.f32 %v713, %v846
    %848 = vmatprep.mubr.bf16.mxu0 0
    %849 = vmatmul.mubr.bf16.gmra.mrb[0].mxu0 %v674
    %v850 = vpop.f32.mrb[0].mxu0
    %v851 = vadd.f32 %v709, %v850
    %v852 = vpop.f32.mrb[0].mxu0
    %v853 = vadd.f32 %v713, %v852
    %v854 = vpop.f32.mrb[0].mxu0
    %v855 = vadd.f32 %v709, %v854
    %v856 = vpop.f32.mrb[0].mxu0
    %v857 = vadd.f32 %v713, %v856
    %858 = vmatprep.mubr.bf16.mxu0 0
    %859 = vmatmul.mubr.bf16.gmra.mrb[0].mxu0 %v675
    %v860 = vpop.f32.mrb[0].mxu0
    %v861 = vadd.f32 %v709, %v860
    %v862 = vpop.f32.mrb[0].mxu0
    %v863 = vadd.f32 %v713, %v862
    %v864 = vpop.f32.mrb[0].mxu0
    %v865 = vadd.f32 %v709, %v864
    %v866 = vpop.f32.mrb[0].mxu0
    %v867 = vadd.f32 %v713, %v866
    %868 = vmatprep.mubr.bf16.mxu0 0
    %869 = vmatmul.mubr.bf16.gmra.mrb[0].mxu0 %v676
    %v870 = vpop.f32.mrb[0].mxu0
    %v871 = vadd.f32 %v709, %v870
    %v872 = vpop.f32.mrb[0].mxu0
    %v873 = vadd.f32 %v713, %v872
    %v874 = vpop.f32.mrb[0].mxu0
    %v875 = vadd.f32 %v709, %v874
    %v876 = vpop.f32.mrb[0].mxu0
    %v877 = vadd.f32 %v713, %v876
    %878 = vmatprep.mubr.bf16.mxu0 0
    %879 = vmatmul.mubr.bf16.gmra.mrb[0].mxu0 %v677
    %v880 = vpop.f32.mrb[0].mxu0
    %v881 = vadd.f32 %v709, %v880
    %v882 = vpop.f32.mrb[0].mxu0
    %v883 = vadd.f32 %v713, %v882
    %v884 = vpop.f32.mrb[0].mxu0
    %v885 = vadd.f32 %v709, %v884
    %v886 = vpop.f32.mrb[0].mxu0
    %v887 = vadd.f32 %v713, %v886
    %888 = vmatprep.mubr.bf16.mxu0 0
    %889 = vmatmul.mubr.bf16.gmra.mrb[0].mxu0 %v678
    %v890 = vpop.f32.mrb[0].mxu0
    %v891 = vadd.f32 %v709, %v890
    %v892 = vpop.f32.mrb[0].mxu0
    %v893 = vadd.f32 %v713, %v892
    %v894 = vpop.f32.mrb[0].mxu0
    %v895 = vadd.f32 %v709, %v894
    %v896 = vpop.f32.mrb[0].mxu0
    %v897 = vadd.f32 %v713, %v896
    %898 = vmatprep.mubr.bf16.mxu0 0
    %899 = vmatmul.mubr.bf16.gmra.mrb[0].mxu0 %v679
    %v900 = vpop.f32.mrb[0].mxu0
    %v901 = vadd.f32 %v709, %v900
    %v902 = vpop.f32.mrb[0].mxu0
    %v903 = vadd.f32 %v713, %v902
    %v904 = vpop.f32.mrb[0].mxu0
    %v905 = vadd.f32 %v709, %v904
    %v906 = vpop.f32.mrb[0].mxu0
    %v907 = vadd.f32 %v713, %v906
    %908 = vmatprep.mubr.bf16.mxu0 0
    %909 = vmatmul.mubr.bf16.gmra.mrb[0].mxu0 %v680
    %v910 = vpop.f32.mrb[0].mxu0
    %v911 = vadd.f32 %v709, %v910
    %v912 = vpop.f32.mrb[0].mxu0
    %v913 = vadd.f32 %v713, %v912
    %v914 = vpop.f32.mrb[0].mxu0
    %v915 = vadd.f32 %v709, %v914
    %v916 = vpop.f32.mrb[0].mxu0
    %v917 = vadd.f32 %v713, %v916
    %918 = vmatprep.mubr.bf16.mxu0 0
    %919 = vmatmul.mubr.bf16.gmra.mrb[0].mxu0 %v681
    %v920 = vpop.f32.mrb[0].mxu0
    %v921 = vadd.f32 %v709, %v920
    %v922 = vpop.f32.mrb[0].mxu0
    %v923 = vadd.f32 %v713, %v922
    %v924 = vpop.f32.mrb[0].mxu0
    %v925 = vadd.f32 %v709, %v924
    %v926 = vpop.f32.mrb[0].mxu0
    %v927 = vadd.f32 %v713, %v926
    %928 = vmatprep.mubr.bf16.mxu0 0
    %929 = vmatmul.mubr.bf16.gmra.mrb[0].mxu0 %v682
    %v930 = vpop.f32.mrb[0].mxu0
    %v931 = vadd.f32 %v709, %v930
    %v932 = vpop.f32.mrb[0].mxu0
    %v933 = vadd.f32 %v713, %v932
    %v934 = vpop.f32.mrb[0].mxu0
    %v935 = vadd.f32 %v709, %v934
    %v936 = vpop.f32.mrb[0].mxu0
    %v937 = vadd.f32 %v713, %v936
    %938 = vmatprep.mubr.bf16.mxu0 0
    %939 = vmatmul.mubr.bf16.gmra.mrb[0].mxu0 %v683
    %v940 = vpop.f32.mrb[0].mxu0
    %v941 = vadd.f32 %v709, %v940
    %v942 = vpop.f32.mrb[0].mxu0
    %v943 = vadd.f32 %v713, %v942
    %v944 = vpop.f32.mrb[0].mxu0
    %v945 = vadd.f32 %v709, %v944
    %v946 = vpop.f32.mrb[0].mxu0
    %v947 = vadd.f32 %v713, %v946
    %948 = vmatprep.mubr.bf16.mxu0 0
    %949 = vmatmul.mubr.bf16.gmra.mrb[0].mxu0 %v684
    %v950 = vpop.f32.mrb[0].mxu0
    %v951 = vadd.f32 %v709, %v950
    %v952 = vpop.f32.mrb[0].mxu0
    %v953 = vadd.f32 %v713, %v952
    %v954 = vpop.f32.mrb[0].mxu0
    %v955 = vadd.f32 %v709, %v954
    %v956 = vpop.f32.mrb[0].mxu0
    %v957 = vadd.f32 %v713, %v956
    %958 = vmatprep.mubr.bf16.mxu0 0
    %959 = vmatmul.mubr.bf16.gmra.mrb[0].mxu0 %v685
    %v960 = vpop.f32.mrb[0].mxu0
    %v961 = vadd.f32 %v709, %v960
    %v962 = vpop.f32.mrb[0].mxu0
    %v963 = vadd.f32 %v713, %v962
    %v964 = vpop.f32.mrb[0].mxu0
    %v965 = vadd.f32 %v709, %v964
    %v966 = vpop.f32.mrb[0].mxu0
    %v967 = vadd.f32 %v713, %v966
    %968 = vmatprep.mubr.bf16.mxu0 0
    %969 = vmatmul.mubr.bf16.gmra.mrb[0].mxu0 %v686
    %v970 = vpop.f32.mrb[0].mxu0
    %v971 = vadd.f32 %v709, %v970
    %v972 = vpop.f32.mrb[0].mxu0
    %v973 = vadd.f32 %v713, %v972
    %v974 = vpop.f32.mrb[0].mxu0
    %v975 = vadd.f32 %v709, %v974
    %v976 = vpop.f32.mrb[0].mxu0
    %v977 = vadd.f32 %v713, %v976
    %978 = vmatprep.mubr.bf16.mxu0 0
    %979 = vmatmul.mubr.bf16.gmra.mrb[0].mxu0 %v687
    %v980 = vpop.f32.mrb[0].mxu0
    %v981 = vadd.f32 %v709, %v980
    %v982 = vpop.f32.mrb[0].mxu0
    %v983 = vadd.f32 %v713, %v982
    %v984 = vpop.f32.mrb[0].mxu0
    %v985 = vadd.f32 %v709, %v984
    %v986 = vpop.f32.mrb[0].mxu0
    %v987 = vadd.f32 %v713, %v986
    %988 = vdwg.mxu0
    %v989 = vld [vmem:[%s4] sm:$0xff]
    %v990 = vld [vmem:[%s4 + $0x8] sm:$0xff]
    %v991 = vld [vmem:[%s4 + $0x10] sm:$0xff]
    %v992 = vld [vmem:[%s4 + $0x18] sm:$0xff]
    %v993 = vld [vmem:[%s4 + $0x20] sm:$0xff]
    %v994 = vld [vmem:[%s4 + $0x28] sm:$0xff]
    %v995 = vld [vmem:[%s4 + $0x30] sm:$0xff]
    %v996 = vld [vmem:[%s4 + $0x38] sm:$0xff]
    %v997 = vld [vmem:[%s4 + $0x40] sm:$0xff]
    %v998 = vld [vmem:[%s4 + $0x48] sm:$0xff]
    %v999 = vld [vmem:[%s4 + $0x50] sm:$0xff]
    %v1000 = vld [vmem:[%s4 + $0x58] sm:$0xff]
    %v1001 = vld [vmem:[%s4 + $0x60] sm:$0xff]
    %v1002 = vld [vmem:[%s4 + $0x68] sm:$0xff]
    %v1003 = vld [vmem:[%s4 + $0x70] sm:$0xff]
    %v1004 = vld [vmem:[%s4 + $0x78] sm:$0xff]
    %v1005 = vld [vmem:[%s4 + $0x80] sm:$0xff]
    %v1006 = vld [vmem:[%s4 + $0x88] sm:$0xff]
    %v1007 = vld [vmem:[%s4 + $0x90] sm:$0xff]
    %v1008 = vld [vmem:[%s4 + $0x98] sm:$0xff]
    %v1009 = vld [vmem:[%s4 + $0xa0] sm:$0xff]
    %v1010 = vld [vmem:[%s4 + $0xa8] sm:$0xff]
    %v1011 = vld [vmem:[%s4 + $0xb0] sm:$0xff]
    %v1012 = vld [vmem:[%s4 + $0xb8] sm:$0xff]
    %v1013 = vld [vmem:[%s4 + $0xc0] sm:$0xff]
    %v1014 = vld [vmem:[%s4 + $0xc8] sm:$0xff]
    %v1015 = vld [vmem:[%s4 + $0xd0] sm:$0xff]
    %v1016 = vld [vmem:[%s4 + $0xd8] sm:$0xff]
    %v1017 = vld [vmem:[%s4 + $0xe0] sm:$0xff]
    %v1018 = vld [vmem:[%s4 + $0xe8] sm:$0xff]
    %v1019 = vld [vmem:[%s4 + $0xf0] sm:$0xff]
    %v1020 = vld [vmem:[%s4 + $0xf8] sm:$0xff]
    %1022 = vset.pattern.permute.xlu0 0
    %1023 = vperm.xlu0 %1022, %v989
    %v1024 = vpop.permute.xlu0 %1023
    %1027 = vset.pattern.permute.xlu0 0
    %1028 = vperm.xlu0 %1027, %v990
    %v1029 = vpop.permute.xlu0 %1028
    %1032 = vset.pattern.permute.xlu0 0
    %1033 = vperm.xlu0 %1032, %v991
    %v1034 = vpop.permute.xlu0 %1033
    %1037 = vset.pattern.permute.xlu0 0
    %1038 = vperm.xlu0 %1037, %v992
    %v1039 = vpop.permute.xlu0 %1038
    %1042 = vset.pattern.permute.xlu0 0
    %1043 = vperm.xlu0 %1042, %v993
    %v1044 = vpop.permute.xlu0 %1043
    %1047 = vset.pattern.permute.xlu0 0
    %1048 = vperm.xlu0 %1047, %v994
    %v1049 = vpop.permute.xlu0 %1048
    %1052 = vset.pattern.permute.xlu0 0
    %1053 = vperm.xlu0 %1052, %v995
    %v1054 = vpop.permute.xlu0 %1053
    %1057 = vset.pattern.permute.xlu0 0
    %1058 = vperm.xlu0 %1057, %v996
    %v1059 = vpop.permute.xlu0 %1058
    %1062 = vset.pattern.permute.xlu0 0
    %1063 = vperm.xlu0 %1062, %v997
    %v1064 = vpop.permute.xlu0 %1063
    %1067 = vset.pattern.permute.xlu0 0
    %1068 = vperm.xlu0 %1067, %v998
    %v1069 = vpop.permute.xlu0 %1068
    %1072 = vset.pattern.permute.xlu0 0
    %1073 = vperm.xlu0 %1072, %v999
    %v1074 = vpop.permute.xlu0 %1073
    %1077 = vset.pattern.permute.xlu0 0
    %1078 = vperm.xlu0 %1077, %v1000
    %v1079 = vpop.permute.xlu0 %1078
    %1082 = vset.pattern.permute.xlu0 0
    %1083 = vperm.xlu0 %1082, %v1001
    %v1084 = vpop.permute.xlu0 %1083
    %1087 = vset.pattern.permute.xlu0 0
    %1088 = vperm.xlu0 %1087, %v1002
    %v1089 = vpop.permute.xlu0 %1088
    %1092 = vset.pattern.permute.xlu0 0
    %1093 = vperm.xlu0 %1092, %v1003
    %v1094 = vpop.permute.xlu0 %1093
    %1097 = vset.pattern.permute.xlu0 0
    %1098 = vperm.xlu0 %1097, %v1004
    %v1099 = vpop.permute.xlu0 %1098
    %1102 = vset.pattern.permute.xlu0 0
    %1103 = vperm.xlu0 %1102, %v1005
    %v1104 = vpop.permute.xlu0 %1103
    %1107 = vset.pattern.permute.xlu0 0
    %1108 = vperm.xlu0 %1107, %v1006
    %v1109 = vpop.permute.xlu0 %1108
    %1112 = vset.pattern.permute.xlu0 0
    %1113 = vperm.xlu0 %1112, %v1007
    %v1114 = vpop.permute.xlu0 %1113
    %1117 = vset.pattern.permute.xlu0 0
    %1118 = vperm.xlu0 %1117, %v1008
    %v1119 = vpop.permute.xlu0 %1118
    %1122 = vset.pattern.permute.xlu0 0
    %1123 = vperm.xlu0 %1122, %v1009
    %v1124 = vpop.permute.xlu0 %1123
    %1127 = vset.pattern.permute.xlu0 0
    %1128 = vperm.xlu0 %1127, %v1010
    %v1129 = vpop.permute.xlu0 %1128
    %1132 = vset.pattern.permute.xlu0 0
    %1133 = vperm.xlu0 %1132, %v1011
    %v1134 = vpop.permute.xlu0 %1133
    %1137 = vset.pattern.permute.xlu0 0
    %1138 = vperm.xlu0 %1137, %v1012
    %v1139 = vpop.permute.xlu0 %1138
    %1142 = vset.pattern.permute.xlu0 0
    %1143 = vperm.xlu0 %1142, %v1013
    %v1144 = vpop.permute.xlu0 %1143
    %1147 = vset.pattern.permute.xlu0 0
    %1148 = vperm.xlu0 %1147, %v1014
    %v1149 = vpop.permute.xlu0 %1148
    %1152 = vset.pattern.permute.xlu0 0
    %1153 = vperm.xlu0 %1152, %v1015
    %v1154 = vpop.permute.xlu0 %1153
    %1157 = vset.pattern.permute.xlu0 0
    %1158 = vperm.xlu0 %1157, %v1016
    %v1159 = vpop.permute.xlu0 %1158
    %1162 = vset.pattern.permute.xlu0 0
    %1163 = vperm.xlu0 %1162, %v1017
    %v1164 = vpop.permute.xlu0 %1163
    %1167 = vset.pattern.permute.xlu0 0
    %1168 = vperm.xlu0 %1167, %v1018
    %v1169 = vpop.permute.xlu0 %1168
    %1172 = vset.pattern.permute.xlu0 0
    %1173 = vperm.xlu0 %1172, %v1019
    %v1174 = vpop.permute.xlu0 %1173
    %1177 = vset.pattern.permute.xlu0 0
    %1178 = vperm.xlu0 %1177, %v1020
    %v1179 = vpop.permute.xlu0 %1178
    %v1181 = vmul.f32 %v831, %v1024
    %v1182 = vmul.f32 %v833, %v1024
    %v1183 = vmul.f32 %v835, %v1029
    %v1184 = vmul.f32 %v837, %v1029
    %v1185 = vmul.f32 %v841, %v1034
    %v1186 = vmul.f32 %v843, %v1034
    %v1187 = vmul.f32 %v845, %v1039
    %v1188 = vmul.f32 %v847, %v1039
    %v1189 = vmul.f32 %v851, %v1044
    %v1190 = vmul.f32 %v853, %v1044
    %v1191 = vmul.f32 %v855, %v1049
    %v1192 = vmul.f32 %v857, %v1049
    %v1193 = vmul.f32 %v861, %v1054
    %v1194 = vmul.f32 %v863, %v1054
    %v1195 = vmul.f32 %v865, %v1059
    %v1196 = vmul.f32 %v867, %v1059
    %v1197 = vmul.f32 %v871, %v1064
    %v1198 = vmul.f32 %v873, %v1064
    %v1199 = vmul.f32 %v875, %v1069
    %v1200 = vmul.f32 %v877, %v1069
    %v1201 = vmul.f32 %v881, %v1074
    %v1202 = vmul.f32 %v883, %v1074
    %v1203 = vmul.f32 %v885, %v1079
    %v1204 = vmul.f32 %v887, %v1079
    %v1205 = vmul.f32 %v891, %v1084
    %v1206 = vmul.f32 %v893, %v1084
    %v1207 = vmul.f32 %v895, %v1089
    %v1208 = vmul.f32 %v897, %v1089
    %v1209 = vmul.f32 %v901, %v1094
    %v1210 = vmul.f32 %v903, %v1094
    %v1211 = vmul.f32 %v905, %v1099
    %v1212 = vmul.f32 %v907, %v1099
    %v1213 = vmul.f32 %v911, %v1104
    %v1214 = vmul.f32 %v913, %v1104
    %v1215 = vmul.f32 %v915, %v1109
    %v1216 = vmul.f32 %v917, %v1109
    %v1217 = vmul.f32 %v921, %v1114
    %v1218 = vmul.f32 %v923, %v1114
    %v1219 = vmul.f32 %v925, %v1119
    %v1220 = vmul.f32 %v927, %v1119
    %v1221 = vmul.f32 %v931, %v1124
    %v1222 = vmul.f32 %v933, %v1124
    %v1223 = vmul.f32 %v935, %v1129
    %v1224 = vmul.f32 %v937, %v1129
    %v1225 = vmul.f32 %v941, %v1134
    %v1226 = vmul.f32 %v943, %v1134
    %v1227 = vmul.f32 %v945, %v1139
    %v1228 = vmul.f32 %v947, %v1139
    %v1229 = vmul.f32 %v951, %v1144
    %v1230 = vmul.f32 %v953, %v1144
    %v1231 = vmul.f32 %v955, %v1149
    %v1232 = vmul.f32 %v957, %v1149
    %v1233 = vmul.f32 %v961, %v1154
    %v1234 = vmul.f32 %v963, %v1154
    %v1235 = vmul.f32 %v965, %v1159
    %v1236 = vmul.f32 %v967, %v1159
    %v1237 = vmul.f32 %v971, %v1164
    %v1238 = vmul.f32 %v973, %v1164
    %v1239 = vmul.f32 %v975, %v1169
    %v1240 = vmul.f32 %v977, %v1169
    %v1241 = vmul.f32 %v981, %v1174
    %v1242 = vmul.f32 %v983, %v1174
    %v1243 = vmul.f32 %v985, %v1179
    %v1244 = vmul.f32 %v987, %v1179
    %v1245 = vpack.c.bf16 %v1183, %v1181
    %v1246 = vpack.c.bf16 %v1184, %v1182
    %v1247 = vpack.c.bf16 %v1187, %v1185
    %v1248 = vpack.c.bf16 %v1188, %v1186
    %v1249 = vpack.c.bf16 %v1191, %v1189
    %v1250 = vpack.c.bf16 %v1192, %v1190
    %v1251 = vpack.c.bf16 %v1195, %v1193
    %v1252 = vpack.c.bf16 %v1196, %v1194
    %v1253 = vpack.c.bf16 %v1199, %v1197
    %v1254 = vpack.c.bf16 %v1200, %v1198
    %v1255 = vpack.c.bf16 %v1203, %v1201
    %v1256 = vpack.c.bf16 %v1204, %v1202
    %v1257 = vpack.c.bf16 %v1207, %v1205
    %v1258 = vpack.c.bf16 %v1208, %v1206
    %v1259 = vpack.c.bf16 %v1211, %v1209
    %v1260 = vpack.c.bf16 %v1212, %v1210
    %v1261 = vpack.c.bf16 %v1215, %v1213
    %v1262 = vpack.c.bf16 %v1216, %v1214
    %v1263 = vpack.c.bf16 %v1219, %v1217
    %v1264 = vpack.c.bf16 %v1220, %v1218
    %v1265 = vpack.c.bf16 %v1223, %v1221
    %v1266 = vpack.c.bf16 %v1224, %v1222
    %v1267 = vpack.c.bf16 %v1227, %v1225
    %v1268 = vpack.c.bf16 %v1228, %v1226
    %v1269 = vpack.c.bf16 %v1231, %v1229
    %v1270 = vpack.c.bf16 %v1232, %v1230
    %v1271 = vpack.c.bf16 %v1235, %v1233
    %v1272 = vpack.c.bf16 %v1236, %v1234
    %v1273 = vpack.c.bf16 %v1239, %v1237
    %v1274 = vpack.c.bf16 %v1240, %v1238
    %v1275 = vpack.c.bf16 %v1243, %v1241
    %v1276 = vpack.c.bf16 %v1244, %v1242
    %v1309 = vunpack.c.l.b16 %v1245
    %v1310 = vunpack.c.l.b16 %v1246
    %v1311 = vunpack.c.h.b16 %v1245
    %v1312 = vunpack.c.h.b16 %v1246
    %v1313 = vunpack.c.l.b16 %v1247
    %v1314 = vunpack.c.l.b16 %v1248
    %v1315 = vunpack.c.h.b16 %v1247
    %v1316 = vunpack.c.h.b16 %v1248
    %v1317 = vunpack.c.l.b16 %v1249
    %v1318 = vunpack.c.l.b16 %v1250
    %v1319 = vunpack.c.h.b16 %v1249
    %v1320 = vunpack.c.h.b16 %v1250
    %v1321 = vunpack.c.l.b16 %v1251
    %v1322 = vunpack.c.l.b16 %v1252
    %v1323 = vunpack.c.h.b16 %v1251
    %v1324 = vunpack.c.h.b16 %v1252
    %v1325 = vunpack.c.l.b16 %v1253
    %v1326 = vunpack.c.l.b16 %v1254
    %v1327 = vunpack.c.h.b16 %v1253
    %v1328 = vunpack.c.h.b16 %v1254
    %v1329 = vunpack.c.l.b16 %v1255
    %v1330 = vunpack.c.l.b16 %v1256
    %v1331 = vunpack.c.h.b16 %v1255
    %v1332 = vunpack.c.h.b16 %v1256
    %v1333 = vunpack.c.l.b16 %v1257
    %v1334 = vunpack.c.l.b16 %v1258
    %v1335 = vunpack.c.h.b16 %v1257
    %v1336 = vunpack.c.h.b16 %v1258
    %v1337 = vunpack.c.l.b16 %v1259
    %v1338 = vunpack.c.l.b16 %v1260
    %v1339 = vunpack.c.h.b16 %v1259
    %v1340 = vunpack.c.h.b16 %v1260
    %v1341 = vunpack.c.l.b16 %v1261
    %v1342 = vunpack.c.l.b16 %v1262
    %v1343 = vunpack.c.h.b16 %v1261
    %v1344 = vunpack.c.h.b16 %v1262
    %v1345 = vunpack.c.l.b16 %v1263
    %v1346 = vunpack.c.l.b16 %v1264
    %v1347 = vunpack.c.h.b16 %v1263
    %v1348 = vunpack.c.h.b16 %v1264
    %v1349 = vunpack.c.l.b16 %v1265
    %v1350 = vunpack.c.l.b16 %v1266
    %v1351 = vunpack.c.h.b16 %v1265
    %v1352 = vunpack.c.h.b16 %v1266
    %v1353 = vunpack.c.l.b16 %v1267
    %v1354 = vunpack.c.l.b16 %v1268
    %v1355 = vunpack.c.h.b16 %v1267
    %v1356 = vunpack.c.h.b16 %v1268
    %v1357 = vunpack.c.l.b16 %v1269
    %v1358 = vunpack.c.l.b16 %v1270
    %v1359 = vunpack.c.h.b16 %v1269
    %v1360 = vunpack.c.h.b16 %v1270
    %v1361 = vunpack.c.l.b16 %v1271
    %v1362 = vunpack.c.l.b16 %v1272
    %v1363 = vunpack.c.h.b16 %v1271
    %v1364 = vunpack.c.h.b16 %v1272
    %v1365 = vunpack.c.l.b16 %v1273
    %v1366 = vunpack.c.l.b16 %v1274
    %v1367 = vunpack.c.h.b16 %v1273
    %v1368 = vunpack.c.h.b16 %v1274
    %v1369 = vunpack.c.l.b16 %v1275
    %v1370 = vunpack.c.l.b16 %v1276
    %v1371 = vunpack.c.h.b16 %v1275
    %v1372 = vunpack.c.h.b16 %v1276
    %v1373 = vpack.c.b16 %v1310, %v1309
    %v1374 = vpack.c.b16 %v1312, %v1311
    %v1375 = vpack.c.b16 %v1314, %v1313
    %v1376 = vpack.c.b16 %v1316, %v1315
    %v1377 = vpack.c.b16 %v1318, %v1317
    %v1378 = vpack.c.b16 %v1320, %v1319
    %v1379 = vpack.c.b16 %v1322, %v1321
    %v1380 = vpack.c.b16 %v1324, %v1323
    %v1381 = vpack.c.b16 %v1326, %v1325
    %v1382 = vpack.c.b16 %v1328, %v1327
    %v1383 = vpack.c.b16 %v1330, %v1329
    %v1384 = vpack.c.b16 %v1332, %v1331
    %v1385 = vpack.c.b16 %v1334, %v1333
    %v1386 = vpack.c.b16 %v1336, %v1335
    %v1387 = vpack.c.b16 %v1338, %v1337
    %v1388 = vpack.c.b16 %v1340, %v1339
    %v1389 = vpack.c.b16 %v1342, %v1341
    %v1390 = vpack.c.b16 %v1344, %v1343
    %v1391 = vpack.c.b16 %v1346, %v1345
    %v1392 = vpack.c.b16 %v1348, %v1347
    %v1393 = vpack.c.b16 %v1350, %v1349
    %v1394 = vpack.c.b16 %v1352, %v1351
    %v1395 = vpack.c.b16 %v1354, %v1353
    %v1396 = vpack.c.b16 %v1356, %v1355
    %v1397 = vpack.c.b16 %v1358, %v1357
    %v1398 = vpack.c.b16 %v1360, %v1359
    %v1399 = vpack.c.b16 %v1362, %v1361
    %v1400 = vpack.c.b16 %v1364, %v1363
    %v1401 = vpack.c.b16 %v1366, %v1365
    %v1402 = vpack.c.b16 %v1368, %v1367
    %v1403 = vpack.c.b16 %v1370, %v1369
    %v1404 = vpack.c.b16 %v1372, %v1371
    %1437 = vst [vmem:[%s5] sm:$0xff] %v1373
    %1438 = vst [vmem:[%s5 + $0x8] sm:$0xff] %v1374
    %1439 = vst [vmem:[%s5 + $0x10] sm:$0xff] %v1375
    %1440 = vst [vmem:[%s5 + $0x18] sm:$0xff] %v1376
    %1441 = vst [vmem:[%s5 + $0x20] sm:$0xff] %v1377
    %1442 = vst [vmem:[%s5 + $0x28] sm:$0xff] %v1378
    %1443 = vst [vmem:[%s5 + $0x30] sm:$0xff] %v1379
    %1444 = vst [vmem:[%s5 + $0x38] sm:$0xff] %v1380
    %1445 = vst [vmem:[%s5 + $0x40] sm:$0xff] %v1381
    %1446 = vst [vmem:[%s5 + $0x48] sm:$0xff] %v1382
    %1447 = vst [vmem:[%s5 + $0x50] sm:$0xff] %v1383
    %1448 = vst [vmem:[%s5 + $0x58] sm:$0xff] %v1384
    %1449 = vst [vmem:[%s5 + $0x60] sm:$0xff] %v1385
    %1450 = vst [vmem:[%s5 + $0x68] sm:$0xff] %v1386
    %1451 = vst [vmem:[%s5 + $0x70] sm:$0xff] %v1387
    %1452 = vst [vmem:[%s5 + $0x78] sm:$0xff] %v1388
    %1453 = vst [vmem:[%s5 + $0x80] sm:$0xff] %v1389
    %1454 = vst [vmem:[%s5 + $0x88] sm:$0xff] %v1390
    %1455 = vst [vmem:[%s5 + $0x90] sm:$0xff] %v1391
    %1456 = vst [vmem:[%s5 + $0x98] sm:$0xff] %v1392
    %1457 = vst [vmem:[%s5 + $0xa0] sm:$0xff] %v1393
    %1458 = vst [vmem:[%s5 + $0xa8] sm:$0xff] %v1394
    %1459 = vst [vmem:[%s5 + $0xb0] sm:$0xff] %v1395
    %1460 = vst [vmem:[%s5 + $0xb8] sm:$0xff] %v1396
    %1461 = vst [vmem:[%s5 + $0xc0] sm:$0xff] %v1397
    %1462 = vst [vmem:[%s5 + $0xc8] sm:$0xff] %v1398
    %1463 = vst [vmem:[%s5 + $0xd0] sm:$0xff] %v1399
    %1464 = vst [vmem:[%s5 + $0xd8] sm:$0xff] %v1400
    %1465 = vst [vmem:[%s5 + $0xe0] sm:$0xff] %v1401
    %1466 = vst [vmem:[%s5 + $0xe8] sm:$0xff] %v1402
    %1467 = vst [vmem:[%s5 + $0xf0] sm:$0xff] %v1403
    %1468 = vst [vmem:[%s5 + $0xf8] sm:$0xff] %v1404
    %v1469 = vadd.f32 %v1181, %v1183
    %v1470 = vadd.f32 %v1469, %v1185
    %v1471 = vadd.f32 %v1470, %v1187
    %v1472 = vadd.f32 %v1471, %v1189
    %v1473 = vadd.f32 %v1472, %v1191
    %v1474 = vadd.f32 %v1473, %v1193
    %v1475 = vadd.f32 %v1474, %v1195
    %v1476 = vadd.f32 %v1475, %v1197
    %v1477 = vadd.f32 %v1476, %v1199
    %v1478 = vadd.f32 %v1477, %v1201
    %v1479 = vadd.f32 %v1478, %v1203
    %v1480 = vadd.f32 %v1479, %v1205
    %v1481 = vadd.f32 %v1480, %v1207
    %v1482 = vadd.f32 %v1481, %v1209
    %v1483 = vadd.f32 %v1482, %v1211
    %v1484 = vadd.f32 %v1483, %v1213
    %v1485 = vadd.f32 %v1484, %v1215
    %v1486 = vadd.f32 %v1485, %v1217
    %v1487 = vadd.f32 %v1486, %v1219
    %v1488 = vadd.f32 %v1487, %v1221
    %v1489 = vadd.f32 %v1488, %v1223
    %v1490 = vadd.f32 %v1489, %v1225
    %v1491 = vadd.f32 %v1490, %v1227
    %v1492 = vadd.f32 %v1491, %v1229
    %v1493 = vadd.f32 %v1492, %v1231
    %v1494 = vadd.f32 %v1493, %v1233
    %v1495 = vadd.f32 %v1494, %v1235
    %v1496 = vadd.f32 %v1495, %v1237
    %v1497 = vadd.f32 %v1496, %v1239
    %v1498 = vadd.f32 %v1497, %v1241
    %v1499 = vadd.f32 %v1498, %v1243
    %v1500 = vrot.slane %v1499, 4
    %v1501 = vadd.f32 %v1499, %v1500
    %v1502 = vrot.slane %v1501, 2
    %v1503 = vadd.f32 %v1501, %v1502
    %v1504 = vrot.slane %v1503, 1
    %v1505 = vadd.f32 %v1503, %v1504
    %v1506 = vadd.f32 %v1182, %v1184
    %v1507 = vadd.f32 %v1506, %v1186
    %v1508 = vadd.f32 %v1507, %v1188
    %v1509 = vadd.f32 %v1508, %v1190
    %v1510 = vadd.f32 %v1509, %v1192
    %v1511 = vadd.f32 %v1510, %v1194
    %v1512 = vadd.f32 %v1511, %v1196
    %v1513 = vadd.f32 %v1512, %v1198
    %v1514 = vadd.f32 %v1513, %v1200
    %v1515 = vadd.f32 %v1514, %v1202
    %v1516 = vadd.f32 %v1515, %v1204
    %v1517 = vadd.f32 %v1516, %v1206
    %v1518 = vadd.f32 %v1517, %v1208
    %v1519 = vadd.f32 %v1518, %v1210
    %v1520 = vadd.f32 %v1519, %v1212
    %v1521 = vadd.f32 %v1520, %v1214
    %v1522 = vadd.f32 %v1521, %v1216
    %v1523 = vadd.f32 %v1522, %v1218
    %v1524 = vadd.f32 %v1523, %v1220
    %v1525 = vadd.f32 %v1524, %v1222
    %v1526 = vadd.f32 %v1525, %v1224
    %v1527 = vadd.f32 %v1526, %v1226
    %v1528 = vadd.f32 %v1527, %v1228
    %v1529 = vadd.f32 %v1528, %v1230
    %v1530 = vadd.f32 %v1529, %v1232
    %v1531 = vadd.f32 %v1530, %v1234
    %v1532 = vadd.f32 %v1531, %v1236
    %v1533 = vadd.f32 %v1532, %v1238
    %v1534 = vadd.f32 %v1533, %v1240
    %v1535 = vadd.f32 %v1534, %v1242
    %v1536 = vadd.f32 %v1535, %v1244
    %v1537 = vrot.slane %v1536, 4
    %v1538 = vadd.f32 %v1536, %v1537
    %v1539 = vrot.slane %v1538, 2
    %v1540 = vadd.f32 %v1538, %v1539
    %v1541 = vrot.slane %v1540, 1
    %v1542 = vadd.f32 %v1540, %v1541
    %v1545 = vcombine.low %v1505, %v1542
    %v1547 = vunpack.c.l.s4 1966171168
    %v1548 = vunpack.c.0.s8 %v1547
    %v1549 = vlaneseq
    %v1550 = vshrl.u32 %v1549, 7
    %v1551 = vsub.s32 %v1548, %v1550
    %v1552 = vrot.slane %v1545, %v1551
    %v1554 = vunpack.c.l.s4 1966171168
    %v1555 = vunpack.c.0.s8 %v1554
    %v1556 = vlaneseq
    %v1557 = vshrl.u32 %v1556, 7
    %v1558 = vsub.s32 %v1555, %v1557
    %v1559 = vrot.slane %v1552, %v1558
    %v1561 = vlaneseq
    %vm1562 = vcmp.ge.s32.totalorder %v1561, 0
    %vm1563 = vcmp.lt.s32.totalorder %v1561, 256
    %vm1564 = vmand %vm1562, %vm1563
    %1565 = vst.msk [vmem:[%s6] sm:$0x3] %vm1564, %v1559
    %v1566 = vmul.f32 %v1181, %v1181
    %v1567 = vmul.f32 %v1182, %v1182
    %v1568 = vmul.f32 %v1183, %v1183
    %v1569 = vmul.f32 %v1184, %v1184
    %v1570 = vmul.f32 %v1185, %v1185
    %v1571 = vmul.f32 %v1186, %v1186
    %v1572 = vmul.f32 %v1187, %v1187
    %v1573 = vmul.f32 %v1188, %v1188
    %v1574 = vmul.f32 %v1189, %v1189
    %v1575 = vmul.f32 %v1190, %v1190
    %v1576 = vmul.f32 %v1191, %v1191
    %v1577 = vmul.f32 %v1192, %v1192
    %v1578 = vmul.f32 %v1193, %v1193
    %v1579 = vmul.f32 %v1194, %v1194
    %v1580 = vmul.f32 %v1195, %v1195
    %v1581 = vmul.f32 %v1196, %v1196
    %v1582 = vmul.f32 %v1197, %v1197
    %v1583 = vmul.f32 %v1198, %v1198
    %v1584 = vmul.f32 %v1199, %v1199
    %v1585 = vmul.f32 %v1200, %v1200
    %v1586 = vmul.f32 %v1201, %v1201
    %v1587 = vmul.f32 %v1202, %v1202
    %v1588 = vmul.f32 %v1203, %v1203
    %v1589 = vmul.f32 %v1204, %v1204
    %v1590 = vmul.f32 %v1205, %v1205
    %v1591 = vmul.f32 %v1206, %v1206
    %v1592 = vmul.f32 %v1207, %v1207
    %v1593 = vmul.f32 %v1208, %v1208
    %v1594 = vmul.f32 %v1209, %v1209
    %v1595 = vmul.f32 %v1210, %v1210
    %v1596 = vmul.f32 %v1211, %v1211
    %v1597 = vmul.f32 %v1212, %v1212
    %v1598 = vmul.f32 %v1213, %v1213
    %v1599 = vmul.f32 %v1214, %v1214
    %v1600 = vmul.f32 %v1215, %v1215
    %v1601 = vmul.f32 %v1216, %v1216
    %v1602 = vmul.f32 %v1217, %v1217
    %v1603 = vmul.f32 %v1218, %v1218
    %v1604 = vmul.f32 %v1219, %v1219
    %v1605 = vmul.f32 %v1220, %v1220
    %v1606 = vmul.f32 %v1221, %v1221
    %v1607 = vmul.f32 %v1222, %v1222
    %v1608 = vmul.f32 %v1223, %v1223
    %v1609 = vmul.f32 %v1224, %v1224
    %v1610 = vmul.f32 %v1225, %v1225
    %v1611 = vmul.f32 %v1226, %v1226
    %v1612 = vmul.f32 %v1227, %v1227
    %v1613 = vmul.f32 %v1228, %v1228
    %v1614 = vmul.f32 %v1229, %v1229
    %v1615 = vmul.f32 %v1230, %v1230
    %v1616 = vmul.f32 %v1231, %v1231
    %v1617 = vmul.f32 %v1232, %v1232
    %v1618 = vmul.f32 %v1233, %v1233
    %v1619 = vmul.f32 %v1234, %v1234
    %v1620 = vmul.f32 %v1235, %v1235
    %v1621 = vmul.f32 %v1236, %v1236
    %v1622 = vmul.f32 %v1237, %v1237
    %v1623 = vmul.f32 %v1238, %v1238
    %v1624 = vmul.f32 %v1239, %v1239
    %v1625 = vmul.f32 %v1240, %v1240
    %v1626 = vmul.f32 %v1241, %v1241
    %v1627 = vmul.f32 %v1242, %v1242
    %v1628 = vmul.f32 %v1243, %v1243
    %v1629 = vmul.f32 %v1244, %v1244
    %v1630 = vadd.f32 %v1566, %v1568
    %v1631 = vadd.f32 %v1630, %v1570
    %v1632 = vadd.f32 %v1631, %v1572
    %v1633 = vadd.f32 %v1632, %v1574
    %v1634 = vadd.f32 %v1633, %v1576
    %v1635 = vadd.f32 %v1634, %v1578
    %v1636 = vadd.f32 %v1635, %v1580
    %v1637 = vadd.f32 %v1636, %v1582
    %v1638 = vadd.f32 %v1637, %v1584
    %v1639 = vadd.f32 %v1638, %v1586
    %v1640 = vadd.f32 %v1639, %v1588
    %v1641 = vadd.f32 %v1640, %v1590
    %v1642 = vadd.f32 %v1641, %v1592
    %v1643 = vadd.f32 %v1642, %v1594
    %v1644 = vadd.f32 %v1643, %v1596
    %v1645 = vadd.f32 %v1644, %v1598
    %v1646 = vadd.f32 %v1645, %v1600
    %v1647 = vadd.f32 %v1646, %v1602
    %v1648 = vadd.f32 %v1647, %v1604
    %v1649 = vadd.f32 %v1648, %v1606
    %v1650 = vadd.f32 %v1649, %v1608
    %v1651 = vadd.f32 %v1650, %v1610
    %v1652 = vadd.f32 %v1651, %v1612
    %v1653 = vadd.f32 %v1652, %v1614
    %v1654 = vadd.f32 %v1653, %v1616
    %v1655 = vadd.f32 %v1654, %v1618
    %v1656 = vadd.f32 %v1655, %v1620
    %v1657 = vadd.f32 %v1656, %v1622
    %v1658 = vadd.f32 %v1657, %v1624
    %v1659 = vadd.f32 %v1658, %v1626
    %v1660 = vadd.f32 %v1659, %v1628
    %v1661 = vrot.slane %v1660, 4
    %v1662 = vadd.f32 %v1660, %v1661
    %v1663 = vrot.slane %v1662, 2
    %v1664 = vadd.f32 %v1662, %v1663
    %v1665 = vrot.slane %v1664, 1
    %v1666 = vadd.f32 %v1664, %v1665
    %v1667 = vadd.f32 %v1567, %v1569
    %v1668 = vadd.f32 %v1667, %v1571
    %v1669 = vadd.f32 %v1668, %v1573
    %v1670 = vadd.f32 %v1669, %v1575
    %v1671 = vadd.f32 %v1670, %v1577
    %v1672 = vadd.f32 %v1671, %v1579
    %v1673 = vadd.f32 %v1672, %v1581
    %v1674 = vadd.f32 %v1673, %v1583
    %v1675 = vadd.f32 %v1674, %v1585
    %v1676 = vadd.f32 %v1675, %v1587
    %v1677 = vadd.f32 %v1676, %v1589
    %v1678 = vadd.f32 %v1677, %v1591
    %v1679 = vadd.f32 %v1678, %v1593
    %v1680 = vadd.f32 %v1679, %v1595
    %v1681 = vadd.f32 %v1680, %v1597
    %v1682 = vadd.f32 %v1681, %v1599
    %v1683 = vadd.f32 %v1682, %v1601
    %v1684 = vadd.f32 %v1683, %v1603
    %v1685 = vadd.f32 %v1684, %v1605
    %v1686 = vadd.f32 %v1685, %v1607
    %v1687 = vadd.f32 %v1686, %v1609
    %v1688 = vadd.f32 %v1687, %v1611
    %v1689 = vadd.f32 %v1688, %v1613
    %v1690 = vadd.f32 %v1689, %v1615
    %v1691 = vadd.f32 %v1690, %v1617
    %v1692 = vadd.f32 %v1691, %v1619
    %v1693 = vadd.f32 %v1692, %v1621
    %v1694 = vadd.f32 %v1693, %v1623
    %v1695 = vadd.f32 %v1694, %v1625
    %v1696 = vadd.f32 %v1695, %v1627
    %v1697 = vadd.f32 %v1696, %v1629
    %v1698 = vrot.slane %v1697, 4
    %v1699 = vadd.f32 %v1697, %v1698
    %v1700 = vrot.slane %v1699, 2
    %v1701 = vadd.f32 %v1699, %v1700
    %v1702 = vrot.slane %v1701, 1
    %v1703 = vadd.f32 %v1701, %v1702
    %v1706 = vcombine.low %v1666, %v1703
    %v1708 = vunpack.c.l.s4 1966171168
    %v1709 = vunpack.c.0.s8 %v1708
    %v1710 = vlaneseq
    %v1711 = vshrl.u32 %v1710, 7
    %v1712 = vsub.s32 %v1709, %v1711
    %v1713 = vrot.slane %v1706, %v1712
    %v1715 = vunpack.c.l.s4 1966171168
    %v1716 = vunpack.c.0.s8 %v1715
    %v1717 = vlaneseq
    %v1718 = vshrl.u32 %v1717, 7
    %v1719 = vsub.s32 %v1716, %v1718
    %v1720 = vrot.slane %v1713, %v1719
    %1722 = vst.msk [vmem:[%s7] sm:$0x3] %vm1564, %v1720
  $region29: #{_gcn_forward_impl.5} parent=0 // pred_fallthru
    _
  // Predicated region
  $region30: #{_gcn_forward_impl.5} parent=0 // pred_check
    _
  $region31: #{_gcn_forward_impl.5} parent=0 // pred_check_branch
    %1724 = sbr.rel (0) target = $region33
  $region32: #{_gcn_forward_impl.5} parent=0 // pred_region
    _
  $region33: #{_gcn_forward_impl.5} parent=0 // pred_fallthru
    _
  // Predicated region
  $region34: #{_gcn_forward_impl.5} parent=0 // pred_check
    _
  $region35: #{_gcn_forward_impl.5} parent=0 // pred_check_branch
    %1726 = sbr.rel (0) target = $region37
  $region36: #{_gcn_forward_impl.5} parent=0 // pred_region
    _
  $region37: #{_gcn_forward_impl.5} parent=0 // pred_fallthru
    _
  // Predicated region
  $region38: #{_gcn_forward_impl.5} parent=0 // pred_check
    _
  $region39: #{_gcn_forward_impl.5} parent=0 // pred_check_branch
    %1728 = sbr.rel (0) target = $region41
  $region40: #{_gcn_forward_impl.5} parent=0 // pred_region
    _
  $region41: #{_gcn_forward_impl.5} parent=0 // pred_fallthru
    _
  // Predicated region
  $region42: #{_gcn_forward_impl.5} parent=0 // pred_check
    _
  $region43: #{_gcn_forward_impl.5} parent=0 // pred_check_branch
    %1730 = sbr.rel (0) target = $region45
  $region44: #{_gcn_forward_impl.5} parent=0 // pred_region
    _
  $region45: #{_gcn_forward_impl.5} parent=0 // pred_fallthru
    _
  // Predicated region
  $region46: #{_gcn_forward_impl.5} parent=0 // pred_check
    _
  $region47: #{_gcn_forward_impl.5} parent=0 // pred_check_branch
    %1732 = sbr.rel (0) target = $region49
  $region48: #{_gcn_forward_impl.5} parent=0 // pred_region
    _
  $region49: #{_gcn_forward_impl.5} parent=0 // pred_fallthru
    _
  // Predicated region
  $region50: #{_gcn_forward_impl.5} parent=0 // pred_check
    _
  $region51: #{_gcn_forward_impl.5} parent=0 // pred_check_branch
    %1734 = sbr.rel (0) target = $region53
  $region52: #{_gcn_forward_impl.5} parent=0 // pred_region
    _
  $region53: #{_gcn_forward_impl.5} parent=0 // pred_fallthru
    _

// kernel: _gcn_forward_impl.7
$region0: #{_gcn_forward_impl.7}
  #allocation0 [shape = 'u32[]', space=smem, size = 0x4, offset = 0x4, fixed_abs, tag = 'smem constant byte address 0x4 - core index']
  #allocation1 [shape = 'u32[144,128]{1,0:T(1,128)}', space=vmem, size = 0x12000, scoped, tag = 'internal scratch']
  #allocation2 [shape = 'f32[256,256]{1,0:T(8,128)}', space=vmem, size = 0x40000, scoped, tag = 'scratch operand']
  %s0 = inlined_call_operand.vmem [shape: bf16[256,256], index: 0, kind: input, shape index: {}]
  %s1 = inlined_call_operand.vmem [shape: bf16[256,256], index: 1, kind: input, shape index: {}]
  %s2 = inlined_call_operand.vmem [shape: f32[1,256], index: 2, kind: input, shape index: {}]
  %s3 = inlined_call_operand.vmem [shape: f32[256,1], index: 3, kind: input, shape index: {}]
  %s4 = inlined_call_operand.vmem [shape: bf16[256,256], index: 4, kind: output, shape index: {0}]
  %s5 = inlined_call_operand.vmem [shape: f32[1,1,256], index: 5, kind: output, shape index: {1}]
  %s6 = inlined_call_operand.vmem [shape: f32[1,1,256], index: 6, kind: output, shape index: {2}]
  %7 = xla_tuple %s4, %s5, %s6
  %s8 = sld [smem:[#allocation0]]
  $region50: #{_gcn_forward_impl.7} parent=0
    _
  %s10 = ssub.s32 1, %s8
  %s11 = scalar_select 0, %s10, %s8
  // Predicated region
  $region2: #{_gcn_forward_impl.7} parent=0 // pred_check
    _
  $region3: #{_gcn_forward_impl.7} parent=0 // pred_check_branch
    %13 = sbr.rel (0) target = $region5
  $region4: #{_gcn_forward_impl.7} parent=0 // pred_region
    _
  $region5: #{_gcn_forward_impl.7} parent=0 // pred_fallthru
    _
  // Predicated region
  $region6: #{_gcn_forward_impl.7} parent=0 // pred_check
    _
  $region7: #{_gcn_forward_impl.7} parent=0 // pred_check_branch
    %15 = sbr.rel (0) target = $region9
  $region8: #{_gcn_forward_impl.7} parent=0 // pred_region
    _
  $region9: #{_gcn_forward_impl.7} parent=0 // pred_fallthru
    _
  // Predicated region
  $region10: #{_gcn_forward_impl.7} parent=0 // pred_check
    _
  $region11: #{_gcn_forward_impl.7} parent=0 // pred_check_branch
    %17 = sbr.rel (0) target = $region13
  $region12: #{_gcn_forward_impl.7} parent=0 // pred_region
    _
  $region13: #{_gcn_forward_impl.7} parent=0 // pred_fallthru
    _
  // Predicated region
  $region14: #{_gcn_forward_impl.7} parent=0 // pred_check
    _
  $region15: #{_gcn_forward_impl.7} parent=0 // pred_check_branch
    %19 = sbr.rel (0) target = $region17
  $region16: #{_gcn_forward_impl.7} parent=0 // pred_region
    _
  $region17: #{_gcn_forward_impl.7} parent=0 // pred_fallthru
    _
  %p20 = scmp.eq.s32.totalorder 0, 0
  // Predicated region
  $region18: #{_gcn_forward_impl.7} parent=0 // pred_check
    %p21 = pneg %p20
  $region19: #{_gcn_forward_impl.7} parent=0 // pred_check_branch
    %23 = sbr.rel (%p21) target = $region21
  $region20: #{_gcn_forward_impl.7} parent=0 // pred_region
    %24 = vst [vmem:[#allocation2] sm:$0xff] 0.0
    %25 = vst [vmem:[#allocation2 + $0x8] sm:$0xff] 0.0
    %26 = vst [vmem:[#allocation2 + $0x10] sm:$0xff] 0.0
    %27 = vst [vmem:[#allocation2 + $0x18] sm:$0xff] 0.0
    %28 = vst [vmem:[#allocation2 + $0x20] sm:$0xff] 0.0
    %29 = vst [vmem:[#allocation2 + $0x28] sm:$0xff] 0.0
    %30 = vst [vmem:[#allocation2 + $0x30] sm:$0xff] 0.0
    %31 = vst [vmem:[#allocation2 + $0x38] sm:$0xff] 0.0
    %32 = vst [vmem:[#allocation2 + $0x40] sm:$0xff] 0.0
    %33 = vst [vmem:[#allocation2 + $0x48] sm:$0xff] 0.0
    %34 = vst [vmem:[#allocation2 + $0x50] sm:$0xff] 0.0
    %35 = vst [vmem:[#allocation2 + $0x58] sm:$0xff] 0.0
    %36 = vst [vmem:[#allocation2 + $0x60] sm:$0xff] 0.0
    %37 = vst [vmem:[#allocation2 + $0x68] sm:$0xff] 0.0
    %38 = vst [vmem:[#allocation2 + $0x70] sm:$0xff] 0.0
    %39 = vst [vmem:[#allocation2 + $0x78] sm:$0xff] 0.0
    %40 = vst [vmem:[#allocation2 + $0x80] sm:$0xff] 0.0
    %41 = vst [vmem:[#allocation2 + $0x88] sm:$0xff] 0.0
    %42 = vst [vmem:[#allocation2 + $0x90] sm:$0xff] 0.0
    %43 = vst [vmem:[#allocation2 + $0x98] sm:$0xff] 0.0
    %44 = vst [vmem:[#allocation2 + $0xa0] sm:$0xff] 0.0
    %45 = vst [vmem:[#allocation2 + $0xa8] sm:$0xff] 0.0
    %46 = vst [vmem:[#allocation2 + $0xb0] sm:$0xff] 0.0
    %47 = vst [vmem:[#allocation2 + $0xb8] sm:$0xff] 0.0
    %48 = vst [vmem:[#allocation2 + $0xc0] sm:$0xff] 0.0
    %49 = vst [vmem:[#allocation2 + $0xc8] sm:$0xff] 0.0
    %50 = vst [vmem:[#allocation2 + $0xd0] sm:$0xff] 0.0
    %51 = vst [vmem:[#allocation2 + $0xd8] sm:$0xff] 0.0
    %52 = vst [vmem:[#allocation2 + $0xe0] sm:$0xff] 0.0
    %53 = vst [vmem:[#allocation2 + $0xe8] sm:$0xff] 0.0
    %54 = vst [vmem:[#allocation2 + $0xf0] sm:$0xff] 0.0
    %55 = vst [vmem:[#allocation2 + $0xf8] sm:$0xff] 0.0
    %56 = vst [vmem:[#allocation2 + $0x100] sm:$0xff] 0.0
    %57 = vst [vmem:[#allocation2 + $0x108] sm:$0xff] 0.0
    %58 = vst [vmem:[#allocation2 + $0x110] sm:$0xff] 0.0
    %59 = vst [vmem:[#allocation2 + $0x118] sm:$0xff] 0.0
    %60 = vst [vmem:[#allocation2 + $0x120] sm:$0xff] 0.0
    %61 = vst [vmem:[#allocation2 + $0x128] sm:$0xff] 0.0
    %62 = vst [vmem:[#allocation2 + $0x130] sm:$0xff] 0.0
    %63 = vst [vmem:[#allocation2 + $0x138] sm:$0xff] 0.0
    %64 = vst [vmem:[#allocation2 + $0x140] sm:$0xff] 0.0
    %65 = vst [vmem:[#allocation2 + $0x148] sm:$0xff] 0.0
    %66 = vst [vmem:[#allocation2 + $0x150] sm:$0xff] 0.0
    %67 = vst [vmem:[#allocation2 + $0x158] sm:$0xff] 0.0
    %68 = vst [vmem:[#allocation2 + $0x160] sm:$0xff] 0.0
    %69 = vst [vmem:[#allocation2 + $0x168] sm:$0xff] 0.0
    %70 = vst [vmem:[#allocation2 + $0x170] sm:$0xff] 0.0
    %71 = vst [vmem:[#allocation2 + $0x178] sm:$0xff] 0.0
    %72 = vst [vmem:[#allocation2 + $0x180] sm:$0xff] 0.0
    %73 = vst [vmem:[#allocation2 + $0x188] sm:$0xff] 0.0
    %74 = vst [vmem:[#allocation2 + $0x190] sm:$0xff] 0.0
    %75 = vst [vmem:[#allocation2 + $0x198] sm:$0xff] 0.0
    %76 = vst [vmem:[#allocation2 + $0x1a0] sm:$0xff] 0.0
    %77 = vst [vmem:[#allocation2 + $0x1a8] sm:$0xff] 0.0
    %78 = vst [vmem:[#allocation2 + $0x1b0] sm:$0xff] 0.0
    %79 = vst [vmem:[#allocation2 + $0x1b8] sm:$0xff] 0.0
    %80 = vst [vmem:[#allocation2 + $0x1c0] sm:$0xff] 0.0
    %81 = vst [vmem:[#allocation2 + $0x1c8] sm:$0xff] 0.0
    %82 = vst [vmem:[#allocation2 + $0x1d0] sm:$0xff] 0.0
    %83 = vst [vmem:[#allocation2 + $0x1d8] sm:$0xff] 0.0
    %84 = vst [vmem:[#allocation2 + $0x1e0] sm:$0xff] 0.0
    %85 = vst [vmem:[#allocation2 + $0x1e8] sm:$0xff] 0.0
    %86 = vst [vmem:[#allocation2 + $0x1f0] sm:$0xff] 0.0
    %87 = vst [vmem:[#allocation2 + $0x1f8] sm:$0xff] 0.0
  $region21: #{_gcn_forward_impl.7} parent=0 // pred_fallthru
    _
  %v88 = vld [vmem:[#allocation2] sm:$0xff]
  %v89 = vld [vmem:[#allocation2 + $0x8] sm:$0xff]
  %v90 = vld [vmem:[#allocation2 + $0x10] sm:$0xff]
  %v91 = vld [vmem:[#allocation2 + $0x18] sm:$0xff]
  %v92 = vld [vmem:[#allocation2 + $0x20] sm:$0xff]
  %v93 = vld [vmem:[#allocation2 + $0x28] sm:$0xff]
  %v94 = vld [vmem:[#allocation2 + $0x30] sm:$0xff]
  %v95 = vld [vmem:[#allocation2 + $0x38] sm:$0xff]
  %v96 = vld [vmem:[#allocation2 + $0x40] sm:$0xff]
  %v97 = vld [vmem:[#allocation2 + $0x48] sm:$0xff]
  %v98 = vld [vmem:[#allocation2 + $0x50] sm:$0xff]
  %v99 = vld [vmem:[#allocation2 + $0x58] sm:$0xff]
  %v100 = vld [vmem:[#allocation2 + $0x60] sm:$0xff]
  %v101 = vld [vmem:[#allocation2 + $0x68] sm:$0xff]
  %v102 = vld [vmem:[#allocation2 + $0x70] sm:$0xff]
  %v103 = vld [vmem:[#allocation2 + $0x78] sm:$0xff]
  %v104 = vld [vmem:[#allocation2 + $0x80] sm:$0xff]
  %v105 = vld [vmem:[#allocation2 + $0x88] sm:$0xff]
  %v106 = vld [vmem:[#allocation2 + $0x90] sm:$0xff]
  %v107 = vld [vmem:[#allocation2 + $0x98] sm:$0xff]
  %v108 = vld [vmem:[#allocation2 + $0xa0] sm:$0xff]
  %v109 = vld [vmem:[#allocation2 + $0xa8] sm:$0xff]
  %v110 = vld [vmem:[#allocation2 + $0xb0] sm:$0xff]
  %v111 = vld [vmem:[#allocation2 + $0xb8] sm:$0xff]
  %v112 = vld [vmem:[#allocation2 + $0xc0] sm:$0xff]
  %v113 = vld [vmem:[#allocation2 + $0xc8] sm:$0xff]
  %v114 = vld [vmem:[#allocation2 + $0xd0] sm:$0xff]
  %v115 = vld [vmem:[#allocation2 + $0xd8] sm:$0xff]
  %v116 = vld [vmem:[#allocation2 + $0xe0] sm:$0xff]
  %v117 = vld [vmem:[#allocation2 + $0xe8] sm:$0xff]
  %v118 = vld [vmem:[#allocation2 + $0xf0] sm:$0xff]
  %v119 = vld [vmem:[#allocation2 + $0xf8] sm:$0xff]
  %v120 = vld [vmem:[#allocation2 + $0x100] sm:$0xff]
  %v121 = vld [vmem:[#allocation2 + $0x108] sm:$0xff]
  %v122 = vld [vmem:[#allocation2 + $0x110] sm:$0xff]
  %v123 = vld [vmem:[#allocation2 + $0x118] sm:$0xff]
  %v124 = vld [vmem:[#allocation2 + $0x120] sm:$0xff]
  %v125 = vld [vmem:[#allocation2 + $0x128] sm:$0xff]
  %v126 = vld [vmem:[#allocation2 + $0x130] sm:$0xff]
  %v127 = vld [vmem:[#allocation2 + $0x138] sm:$0xff]
  %v128 = vld [vmem:[#allocation2 + $0x140] sm:$0xff]
  %v129 = vld [vmem:[#allocation2 + $0x148] sm:$0xff]
  %v130 = vld [vmem:[#allocation2 + $0x150] sm:$0xff]
  %v131 = vld [vmem:[#allocation2 + $0x158] sm:$0xff]
  %v132 = vld [vmem:[#allocation2 + $0x160] sm:$0xff]
  %v133 = vld [vmem:[#allocation2 + $0x168] sm:$0xff]
  %v134 = vld [vmem:[#allocation2 + $0x170] sm:$0xff]
  %v135 = vld [vmem:[#allocation2 + $0x178] sm:$0xff]
  %v136 = vld [vmem:[#allocation2 + $0x180] sm:$0xff]
  %v137 = vld [vmem:[#allocation2 + $0x188] sm:$0xff]
  %v138 = vld [vmem:[#allocation2 + $0x190] sm:$0xff]
  %v139 = vld [vmem:[#allocation2 + $0x198] sm:$0xff]
  %v140 = vld [vmem:[#allocation2 + $0x1a0] sm:$0xff]
  %v141 = vld [vmem:[#allocation2 + $0x1a8] sm:$0xff]
  %v142 = vld [vmem:[#allocation2 + $0x1b0] sm:$0xff]
  %v143 = vld [vmem:[#allocation2 + $0x1b8] sm:$0xff]
  %v144 = vld [vmem:[#allocation2 + $0x1c0] sm:$0xff]
  %v145 = vld [vmem:[#allocation2 + $0x1c8] sm:$0xff]
  %v146 = vld [vmem:[#allocation2 + $0x1d0] sm:$0xff]
  %v147 = vld [vmem:[#allocation2 + $0x1d8] sm:$0xff]
  %v148 = vld [vmem:[#allocation2 + $0x1e0] sm:$0xff]
  %v149 = vld [vmem:[#allocation2 + $0x1e8] sm:$0xff]
  %v150 = vld [vmem:[#allocation2 + $0x1f0] sm:$0xff]
  %v151 = vld [vmem:[#allocation2 + $0x1f8] sm:$0xff]
  %v152 = vld [vmem:[%s0] sm:$0xff]
  %v153 = vld [vmem:[%s0 + $0x8] sm:$0xff]
  %v154 = vld [vmem:[%s0 + $0x10] sm:$0xff]
  %v155 = vld [vmem:[%s0 + $0x18] sm:$0xff]
  %v156 = vld [vmem:[%s0 + $0x20] sm:$0xff]
  %v157 = vld [vmem:[%s0 + $0x28] sm:$0xff]
  %v158 = vld [vmem:[%s0 + $0x30] sm:$0xff]
  %v159 = vld [vmem:[%s0 + $0x38] sm:$0xff]
  %v160 = vld [vmem:[%s0 + $0x40] sm:$0xff]
  %v161 = vld [vmem:[%s0 + $0x48] sm:$0xff]
  %v162 = vld [vmem:[%s0 + $0x50] sm:$0xff]
  %v163 = vld [vmem:[%s0 + $0x58] sm:$0xff]
  %v164 = vld [vmem:[%s0 + $0x60] sm:$0xff]
  %v165 = vld [vmem:[%s0 + $0x68] sm:$0xff]
  %v166 = vld [vmem:[%s0 + $0x70] sm:$0xff]
  %v167 = vld [vmem:[%s0 + $0x78] sm:$0xff]
  %v168 = vld [vmem:[%s0 + $0x80] sm:$0xff]
  %v169 = vld [vmem:[%s0 + $0x88] sm:$0xff]
  %v170 = vld [vmem:[%s0 + $0x90] sm:$0xff]
  %v171 = vld [vmem:[%s0 + $0x98] sm:$0xff]
  %v172 = vld [vmem:[%s0 + $0xa0] sm:$0xff]
  %v173 = vld [vmem:[%s0 + $0xa8] sm:$0xff]
  %v174 = vld [vmem:[%s0 + $0xb0] sm:$0xff]
  %v175 = vld [vmem:[%s0 + $0xb8] sm:$0xff]
  %v176 = vld [vmem:[%s0 + $0xc0] sm:$0xff]
  %v177 = vld [vmem:[%s0 + $0xc8] sm:$0xff]
  %v178 = vld [vmem:[%s0 + $0xd0] sm:$0xff]
  %v179 = vld [vmem:[%s0 + $0xd8] sm:$0xff]
  %v180 = vld [vmem:[%s0 + $0xe0] sm:$0xff]
  %v181 = vld [vmem:[%s0 + $0xe8] sm:$0xff]
  %v182 = vld [vmem:[%s0 + $0xf0] sm:$0xff]
  %v183 = vld [vmem:[%s0 + $0xf8] sm:$0xff]
  %v184 = vld [vmem:[%s1] sm:$0xff]
  %v185 = vld [vmem:[%s1 + $0x8] sm:$0xff]
  %v186 = vld [vmem:[%s1 + $0x10] sm:$0xff]
  %v187 = vld [vmem:[%s1 + $0x18] sm:$0xff]
  %v188 = vld [vmem:[%s1 + $0x20] sm:$0xff]
  %v189 = vld [vmem:[%s1 + $0x28] sm:$0xff]
  %v190 = vld [vmem:[%s1 + $0x30] sm:$0xff]
  %v191 = vld [vmem:[%s1 + $0x38] sm:$0xff]
  %v192 = vld [vmem:[%s1 + $0x40] sm:$0xff]
  %v193 = vld [vmem:[%s1 + $0x48] sm:$0xff]
  %v194 = vld [vmem:[%s1 + $0x50] sm:$0xff]
  %v195 = vld [vmem:[%s1 + $0x58] sm:$0xff]
  %v196 = vld [vmem:[%s1 + $0x60] sm:$0xff]
  %v197 = vld [vmem:[%s1 + $0x68] sm:$0xff]
  %v198 = vld [vmem:[%s1 + $0x70] sm:$0xff]
  %v199 = vld [vmem:[%s1 + $0x78] sm:$0xff]
  %v200 = vld [vmem:[%s1 + $0x80] sm:$0xff]
  %v201 = vld [vmem:[%s1 + $0x88] sm:$0xff]
  %v202 = vld [vmem:[%s1 + $0x90] sm:$0xff]
  %v203 = vld [vmem:[%s1 + $0x98] sm:$0xff]
  %v204 = vld [vmem:[%s1 + $0xa0] sm:$0xff]
  %v205 = vld [vmem:[%s1 + $0xa8] sm:$0xff]
  %v206 = vld [vmem:[%s1 + $0xb0] sm:$0xff]
  %v207 = vld [vmem:[%s1 + $0xb8] sm:$0xff]
  %v208 = vld [vmem:[%s1 + $0xc0] sm:$0xff]
  %v209 = vld [vmem:[%s1 + $0xc8] sm:$0xff]
  %v210 = vld [vmem:[%s1 + $0xd0] sm:$0xff]
  %v211 = vld [vmem:[%s1 + $0xd8] sm:$0xff]
  %v212 = vld [vmem:[%s1 + $0xe0] sm:$0xff]
  %v213 = vld [vmem:[%s1 + $0xe8] sm:$0xff]
  %v214 = vld [vmem:[%s1 + $0xf0] sm:$0xff]
  %v215 = vld [vmem:[%s1 + $0xf8] sm:$0xff]
  %v248 = vunpack.c.l.b16 %v152
  %v249 = vunpack.c.h.b16 %v152
  %v250 = vunpack.c.l.b16 %v153
  %v251 = vunpack.c.h.b16 %v153
  %v252 = vunpack.c.l.b16 %v154
  %v253 = vunpack.c.h.b16 %v154
  %v254 = vunpack.c.l.b16 %v155
  %v255 = vunpack.c.h.b16 %v155
  %v256 = vunpack.c.l.b16 %v156
  %v257 = vunpack.c.h.b16 %v156
  %v258 = vunpack.c.l.b16 %v157
  %v259 = vunpack.c.h.b16 %v157
  %v260 = vunpack.c.l.b16 %v158
  %v261 = vunpack.c.h.b16 %v158
  %v262 = vunpack.c.l.b16 %v159
  %v263 = vunpack.c.h.b16 %v159
  %v264 = vunpack.c.l.b16 %v160
  %v265 = vunpack.c.h.b16 %v160
  %v266 = vunpack.c.l.b16 %v161
  %v267 = vunpack.c.h.b16 %v161
  %v268 = vunpack.c.l.b16 %v162
  %v269 = vunpack.c.h.b16 %v162
  %v270 = vunpack.c.l.b16 %v163
  %v271 = vunpack.c.h.b16 %v163
  %v272 = vunpack.c.l.b16 %v164
  %v273 = vunpack.c.h.b16 %v164
  %v274 = vunpack.c.l.b16 %v165
  %v275 = vunpack.c.h.b16 %v165
  %v276 = vunpack.c.l.b16 %v166
  %v277 = vunpack.c.h.b16 %v166
  %v278 = vunpack.c.l.b16 %v167
  %v279 = vunpack.c.h.b16 %v167
  %v280 = vunpack.c.l.b16 %v168
  %v281 = vunpack.c.h.b16 %v168
  %v282 = vunpack.c.l.b16 %v169
  %v283 = vunpack.c.h.b16 %v169
  %v284 = vunpack.c.l.b16 %v170
  %v285 = vunpack.c.h.b16 %v170
  %v286 = vunpack.c.l.b16 %v171
  %v287 = vunpack.c.h.b16 %v171
  %v288 = vunpack.c.l.b16 %v172
  %v289 = vunpack.c.h.b16 %v172
  %v290 = vunpack.c.l.b16 %v173
  %v291 = vunpack.c.h.b16 %v173
  %v292 = vunpack.c.l.b16 %v174
  %v293 = vunpack.c.h.b16 %v174
  %v294 = vunpack.c.l.b16 %v175
  %v295 = vunpack.c.h.b16 %v175
  %v296 = vunpack.c.l.b16 %v176
  %v297 = vunpack.c.h.b16 %v176
  %v298 = vunpack.c.l.b16 %v177
  %v299 = vunpack.c.h.b16 %v177
  %v300 = vunpack.c.l.b16 %v178
  %v301 = vunpack.c.h.b16 %v178
  %v302 = vunpack.c.l.b16 %v179
  %v303 = vunpack.c.h.b16 %v179
  %v304 = vunpack.c.l.b16 %v180
  %v305 = vunpack.c.h.b16 %v180
  %v306 = vunpack.c.l.b16 %v181
  %v307 = vunpack.c.h.b16 %v181
  %v308 = vunpack.c.l.b16 %v182
  %v309 = vunpack.c.h.b16 %v182
  %v310 = vunpack.c.l.b16 %v183
  %v311 = vunpack.c.h.b16 %v183
  %v312 = vpack.c.b16 %v250, %v248
  %v313 = vpack.c.b16 %v251, %v249
  %v314 = vpack.c.b16 %v254, %v252
  %v315 = vpack.c.b16 %v255, %v253
  %v316 = vpack.c.b16 %v258, %v256
  %v317 = vpack.c.b16 %v259, %v257
  %v318 = vpack.c.b16 %v262, %v260
  %v319 = vpack.c.b16 %v263, %v261
  %v320 = vpack.c.b16 %v266, %v264
  %v321 = vpack.c.b16 %v267, %v265
  %v322 = vpack.c.b16 %v270, %v268
  %v323 = vpack.c.b16 %v271, %v269
  %v324 = vpack.c.b16 %v274, %v272
  %v325 = vpack.c.b16 %v275, %v273
  %v326 = vpack.c.b16 %v278, %v276
  %v327 = vpack.c.b16 %v279, %v277
  %v328 = vpack.c.b16 %v282, %v280
  %v329 = vpack.c.b16 %v283, %v281
  %v330 = vpack.c.b16 %v286, %v284
  %v331 = vpack.c.b16 %v287, %v285
  %v332 = vpack.c.b16 %v290, %v288
  %v333 = vpack.c.b16 %v291, %v289
  %v334 = vpack.c.b16 %v294, %v292
  %v335 = vpack.c.b16 %v295, %v293
  %v336 = vpack.c.b16 %v298, %v296
  %v337 = vpack.c.b16 %v299, %v297
  %v338 = vpack.c.b16 %v302, %v300
  %v339 = vpack.c.b16 %v303, %v301
  %v340 = vpack.c.b16 %v306, %v304
  %v341 = vpack.c.b16 %v307, %v305
  %v342 = vpack.c.b16 %v310, %v308
  %v343 = vpack.c.b16 %v311, %v309
  %v408 = vunpack.c.l.b16 %v184
  %v409 = vunpack.c.h.b16 %v184
  %v410 = vunpack.c.l.b16 %v185
  %v411 = vunpack.c.h.b16 %v185
  %v412 = vunpack.c.l.b16 %v186
  %v413 = vunpack.c.h.b16 %v186
  %v414 = vunpack.c.l.b16 %v187
  %v415 = vunpack.c.h.b16 %v187
  %v416 = vunpack.c.l.b16 %v188
  %v417 = vunpack.c.h.b16 %v188
  %v418 = vunpack.c.l.b16 %v189
  %v419 = vunpack.c.h.b16 %v189
  %v420 = vunpack.c.l.b16 %v190
  %v421 = vunpack.c.h.b16 %v190
  %v422 = vunpack.c.l.b16 %v191
  %v423 = vunpack.c.h.b16 %v191
  %v424 = vunpack.c.l.b16 %v192
  %v425 = vunpack.c.h.b16 %v192
  %v426 = vunpack.c.l.b16 %v193
  %v427 = vunpack.c.h.b16 %v193
  %v428 = vunpack.c.l.b16 %v194
  %v429 = vunpack.c.h.b16 %v194
  %v430 = vunpack.c.l.b16 %v195
  %v431 = vunpack.c.h.b16 %v195
  %v432 = vunpack.c.l.b16 %v196
  %v433 = vunpack.c.h.b16 %v196
  %v434 = vunpack.c.l.b16 %v197
  %v435 = vunpack.c.h.b16 %v197
  %v436 = vunpack.c.l.b16 %v198
  %v437 = vunpack.c.h.b16 %v198
  %v438 = vunpack.c.l.b16 %v199
  %v439 = vunpack.c.h.b16 %v199
  %v440 = vunpack.c.l.b16 %v200
  %v441 = vunpack.c.h.b16 %v200
  %v442 = vunpack.c.l.b16 %v201
  %v443 = vunpack.c.h.b16 %v201
  %v444 = vunpack.c.l.b16 %v202
  %v445 = vunpack.c.h.b16 %v202
  %v446 = vunpack.c.l.b16 %v203
  %v447 = vunpack.c.h.b16 %v203
  %v448 = vunpack.c.l.b16 %v204
  %v449 = vunpack.c.h.b16 %v204
  %v450 = vunpack.c.l.b16 %v205
  %v451 = vunpack.c.h.b16 %v205
  %v452 = vunpack.c.l.b16 %v206
  %v453 = vunpack.c.h.b16 %v206
  %v454 = vunpack.c.l.b16 %v207
  %v455 = vunpack.c.h.b16 %v207
  %v456 = vunpack.c.l.b16 %v208
  %v457 = vunpack.c.h.b16 %v208
  %v458 = vunpack.c.l.b16 %v209
  %v459 = vunpack.c.h.b16 %v209
  %v460 = vunpack.c.l.b16 %v210
  %v461 = vunpack.c.h.b16 %v210
  %v462 = vunpack.c.l.b16 %v211
  %v463 = vunpack.c.h.b16 %v211
  %v464 = vunpack.c.l.b16 %v212
  %v465 = vunpack.c.h.b16 %v212
  %v466 = vunpack.c.l.b16 %v213
  %v467 = vunpack.c.h.b16 %v213
  %v468 = vunpack.c.l.b16 %v214
  %v469 = vunpack.c.h.b16 %v214
  %v470 = vunpack.c.l.b16 %v215
  %v471 = vunpack.c.h.b16 %v215
  %v472 = vpack.c.b16 %v410, %v408
  %v473 = vpack.c.b16 %v411, %v409
  %v474 = vpack.c.b16 %v414, %v412
  %v475 = vpack.c.b16 %v415, %v413
  %v476 = vpack.c.b16 %v418, %v416
  %v477 = vpack.c.b16 %v419, %v417
  %v478 = vpack.c.b16 %v422, %v420
  %v479 = vpack.c.b16 %v423, %v421
  %v480 = vpack.c.b16 %v426, %v424
  %v481 = vpack.c.b16 %v427, %v425
  %v482 = vpack.c.b16 %v430, %v428
  %v483 = vpack.c.b16 %v431, %v429
  %v484 = vpack.c.b16 %v434, %v432
  %v485 = vpack.c.b16 %v435, %v433
  %v486 = vpack.c.b16 %v438, %v436
  %v487 = vpack.c.b16 %v439, %v437
  %v488 = vpack.c.b16 %v442, %v440
  %v489 = vpack.c.b16 %v443, %v441
  %v490 = vpack.c.b16 %v446, %v444
  %v491 = vpack.c.b16 %v447, %v445
  %v492 = vpack.c.b16 %v450, %v448
  %v493 = vpack.c.b16 %v451, %v449
  %v494 = vpack.c.b16 %v454, %v452
  %v495 = vpack.c.b16 %v455, %v453
  %v496 = vpack.c.b16 %v458, %v456
  %v497 = vpack.c.b16 %v459, %v457
  %v498 = vpack.c.b16 %v462, %v460
  %v499 = vpack.c.b16 %v463, %v461
  %v500 = vpack.c.b16 %v466, %v464
  %v501 = vpack.c.b16 %v467, %v465
  %v502 = vpack.c.b16 %v470, %v468
  %v503 = vpack.c.b16 %v471, %v469
  %536 = vmatprep.subr.bf16.mxu0 %v473
  %537 = vmatpush1.bf16.msra.mxu0 %v472
  %538 = vmatprep.subr.bf16.mxu0 %v475
  %539 = vmatpush1.bf16.msra.mxu0 %v474
  %540 = vmatprep.subr.bf16.mxu0 %v477
  %541 = vmatpush1.bf16.msra.mxu0 %v476
  %542 = vmatprep.subr.bf16.mxu0 %v479
  %543 = vmatpush1.bf16.msra.mxu0 %v478
  %544 = vmatprep.subr.bf16.mxu0 %v481
  %545 = vmatpush1.bf16.msra.mxu0 %v480
  %546 = vmatprep.subr.bf16.mxu0 %v483
  %547 = vmatpush1.bf16.msra.mxu0 %v482
  %548 = vmatprep.subr.bf16.mxu0 %v485
  %549 = vmatpush1.bf16.msra.mxu0 %v484
  %550 = vmatprep.subr.bf16.mxu0 %v487
  %551 = vmatpush1.bf16.msra.mxu0 %v486
  %552 = vmatprep.subr.bf16.mxu0 %v489
  %553 = vmatpush1.bf16.msra.mxu0 %v488
  %554 = vmatprep.subr.bf16.mxu0 %v491
  %555 = vmatpush1.bf16.msra.mxu0 %v490
  %556 = vmatprep.subr.bf16.mxu0 %v493
  %557 = vmatpush1.bf16.msra.mxu0 %v492
  %558 = vmatprep.subr.bf16.mxu0 %v495
  %559 = vmatpush1.bf16.msra.mxu0 %v494
  %560 = vmatprep.subr.bf16.mxu0 %v497
  %561 = vmatpush1.bf16.msra.mxu0 %v496
  %562 = vmatprep.subr.bf16.mxu0 %v499
  %563 = vmatpush1.bf16.msra.mxu0 %v498
  %564 = vmatprep.subr.bf16.mxu0 %v501
  %565 = vmatpush1.bf16.msra.mxu0 %v500
  %566 = vmatprep.subr.bf16.mxu0 %v503
  %567 = vmatpush1.bf16.msra.mxu0 %v502
  %568 = vmatprep.mubr.bf16.mxu0 %v313
  %569 = vmatmul.mubr.bf16.gmra.mrb[0].mxu0 %v312
  %v570 = vpop.f32.mrb[0].mxu0
  %v571 = vadd.f32 0.0, %v570
  %v572 = vpop.f32.mrb[0].mxu0
  %v573 = vadd.f32 0.0, %v572
  %v574 = vpop.f32.mrb[0].mxu0
  %v575 = vadd.f32 0.0, %v574
  %v576 = vpop.f32.mrb[0].mxu0
  %v577 = vadd.f32 0.0, %v576
  %578 = vmatprep.mubr.bf16.mxu0 %v315
  %579 = vmatmul.mubr.bf16.gmra.mrb[0].mxu0 %v314
  %v580 = vpop.f32.mrb[0].mxu0
  %v581 = vadd.f32 0.0, %v580
  %v582 = vpop.f32.mrb[0].mxu0
  %v583 = vadd.f32 0.0, %v582
  %v584 = vpop.f32.mrb[0].mxu0
  %v585 = vadd.f32 0.0, %v584
  %v586 = vpop.f32.mrb[0].mxu0
  %v587 = vadd.f32 0.0, %v586
  %588 = vmatprep.mubr.bf16.mxu0 %v317
  %589 = vmatmul.mubr.bf16.gmra.mrb[0].mxu0 %v316
  %v590 = vpop.f32.mrb[0].mxu0
  %v591 = vadd.f32 0.0, %v590
  %v592 = vpop.f32.mrb[0].mxu0
  %v593 = vadd.f32 0.0, %v592
  %v594 = vpop.f32.mrb[0].mxu0
  %v595 = vadd.f32 0.0, %v594
  %v596 = vpop.f32.mrb[0].mxu0
  %v597 = vadd.f32 0.0, %v596
  %598 = vmatprep.mubr.bf16.mxu0 %v319
  %599 = vmatmul.mubr.bf16.gmra.mrb[0].mxu0 %v318
  %v600 = vpop.f32.mrb[0].mxu0
  %v601 = vadd.f32 0.0, %v600
  %v602 = vpop.f32.mrb[0].mxu0
  %v603 = vadd.f32 0.0, %v602
  %v604 = vpop.f32.mrb[0].mxu0
  %v605 = vadd.f32 0.0, %v604
  %v606 = vpop.f32.mrb[0].mxu0
  %v607 = vadd.f32 0.0, %v606
  %608 = vmatprep.mubr.bf16.mxu0 %v321
  %609 = vmatmul.mubr.bf16.gmra.mrb[0].mxu0 %v320
  %v610 = vpop.f32.mrb[0].mxu0
  %v611 = vadd.f32 0.0, %v610
  %v612 = vpop.f32.mrb[0].mxu0
  %v613 = vadd.f32 0.0, %v612
  %v614 = vpop.f32.mrb[0].mxu0
  %v615 = vadd.f32 0.0, %v614
  %v616 = vpop.f32.mrb[0].mxu0
  %v617 = vadd.f32 0.0, %v616
  %618 = vmatprep.mubr.bf16.mxu0 %v323
  %619 = vmatmul.mubr.bf16.gmra.mrb[0].mxu0 %v322
  %v620 = vpop.f32.mrb[0].mxu0
  %v621 = vadd.f32 0.0, %v620
  %v622 = vpop.f32.mrb[0].mxu0
  %v623 = vadd.f32 0.0, %v622
  %v624 = vpop.f32.mrb[0].mxu0
  %v625 = vadd.f32 0.0, %v624
  %v626 = vpop.f32.mrb[0].mxu0
  %v627 = vadd.f32 0.0, %v626
  %628 = vmatprep.mubr.bf16.mxu0 %v325
  %629 = vmatmul.mubr.bf16.gmra.mrb[0].mxu0 %v324
  %v630 = vpop.f32.mrb[0].mxu0
  %v631 = vadd.f32 0.0, %v630
  %v632 = vpop.f32.mrb[0].mxu0
  %v633 = vadd.f32 0.0, %v632
  %v634 = vpop.f32.mrb[0].mxu0
  %v635 = vadd.f32 0.0, %v634
  %v636 = vpop.f32.mrb[0].mxu0
  %v637 = vadd.f32 0.0, %v636
  %638 = vmatprep.mubr.bf16.mxu0 %v327
  %639 = vmatmul.mubr.bf16.gmra.mrb[0].mxu0 %v326
  %v640 = vpop.f32.mrb[0].mxu0
  %v641 = vadd.f32 0.0, %v640
  %v642 = vpop.f32.mrb[0].mxu0
  %v643 = vadd.f32 0.0, %v642
  %v644 = vpop.f32.mrb[0].mxu0
  %v645 = vadd.f32 0.0, %v644
  %v646 = vpop.f32.mrb[0].mxu0
  %v647 = vadd.f32 0.0, %v646
  %648 = vmatprep.mubr.bf16.mxu0 %v329
  %649 = vmatmul.mubr.bf16.gmra.mrb[0].mxu0 %v328
  %v650 = vpop.f32.mrb[0].mxu0
  %v651 = vadd.f32 0.0, %v650
  %v652 = vpop.f32.mrb[0].mxu0
  %v653 = vadd.f32 0.0, %v652
  %v654 = vpop.f32.mrb[0].mxu0
  %v655 = vadd.f32 0.0, %v654
  %v656 = vpop.f32.mrb[0].mxu0
  %v657 = vadd.f32 0.0, %v656
  %658 = vmatprep.mubr.bf16.mxu0 %v331
  %659 = vmatmul.mubr.bf16.gmra.mrb[0].mxu0 %v330
  %v660 = vpop.f32.mrb[0].mxu0
  %v661 = vadd.f32 0.0, %v660
  %v662 = vpop.f32.mrb[0].mxu0
  %v663 = vadd.f32 0.0, %v662
  %v664 = vpop.f32.mrb[0].mxu0
  %v665 = vadd.f32 0.0, %v664
  %v666 = vpop.f32.mrb[0].mxu0
  %v667 = vadd.f32 0.0, %v666
  %668 = vmatprep.mubr.bf16.mxu0 %v333
  %669 = vmatmul.mubr.bf16.gmra.mrb[0].mxu0 %v332
  %v670 = vpop.f32.mrb[0].mxu0
  %v671 = vadd.f32 0.0, %v670
  %v672 = vpop.f32.mrb[0].mxu0
  %v673 = vadd.f32 0.0, %v672
  %v674 = vpop.f32.mrb[0].mxu0
  %v675 = vadd.f32 0.0, %v674
  %v676 = vpop.f32.mrb[0].mxu0
  %v677 = vadd.f32 0.0, %v676
  %678 = vmatprep.mubr.bf16.mxu0 %v335
  %679 = vmatmul.mubr.bf16.gmra.mrb[0].mxu0 %v334
  %v680 = vpop.f32.mrb[0].mxu0
  %v681 = vadd.f32 0.0, %v680
  %v682 = vpop.f32.mrb[0].mxu0
  %v683 = vadd.f32 0.0, %v682
  %v684 = vpop.f32.mrb[0].mxu0
  %v685 = vadd.f32 0.0, %v684
  %v686 = vpop.f32.mrb[0].mxu0
  %v687 = vadd.f32 0.0, %v686
  %688 = vmatprep.mubr.bf16.mxu0 %v337
  %689 = vmatmul.mubr.bf16.gmra.mrb[0].mxu0 %v336
  %v690 = vpop.f32.mrb[0].mxu0
  %v691 = vadd.f32 0.0, %v690
  %v692 = vpop.f32.mrb[0].mxu0
  %v693 = vadd.f32 0.0, %v692
  %v694 = vpop.f32.mrb[0].mxu0
  %v695 = vadd.f32 0.0, %v694
  %v696 = vpop.f32.mrb[0].mxu0
  %v697 = vadd.f32 0.0, %v696
  %698 = vmatprep.mubr.bf16.mxu0 %v339
  %699 = vmatmul.mubr.bf16.gmra.mrb[0].mxu0 %v338
  %v700 = vpop.f32.mrb[0].mxu0
  %v701 = vadd.f32 0.0, %v700
  %v702 = vpop.f32.mrb[0].mxu0
  %v703 = vadd.f32 0.0, %v702
  %v704 = vpop.f32.mrb[0].mxu0
  %v705 = vadd.f32 0.0, %v704
  %v706 = vpop.f32.mrb[0].mxu0
  %v707 = vadd.f32 0.0, %v706
  %708 = vmatprep.mubr.bf16.mxu0 %v341
  %709 = vmatmul.mubr.bf16.gmra.mrb[0].mxu0 %v340
  %v710 = vpop.f32.mrb[0].mxu0
  %v711 = vadd.f32 0.0, %v710
  %v712 = vpop.f32.mrb[0].mxu0
  %v713 = vadd.f32 0.0, %v712
  %v714 = vpop.f32.mrb[0].mxu0
  %v715 = vadd.f32 0.0, %v714
  %v716 = vpop.f32.mrb[0].mxu0
  %v717 = vadd.f32 0.0, %v716
  %718 = vmatprep.mubr.bf16.mxu0 %v343
  %719 = vmatmul.mubr.bf16.gmra.mrb[0].mxu0 %v342
  %v720 = vpop.f32.mrb[0].mxu0
  %v721 = vadd.f32 0.0, %v720
  %v722 = vpop.f32.mrb[0].mxu0
  %v723 = vadd.f32 0.0, %v722
  %v724 = vpop.f32.mrb[0].mxu0
  %v725 = vadd.f32 0.0, %v724
  %v726 = vpop.f32.mrb[0].mxu0
  %v727 = vadd.f32 0.0, %v726
  %728 = vdwg.mxu0
  %v729 = vadd.f32 %v88, %v571
  %v730 = vadd.f32 %v89, %v573
  %v731 = vadd.f32 %v90, %v575
  %v732 = vadd.f32 %v91, %v577
  %v733 = vadd.f32 %v92, %v581
  %v734 = vadd.f32 %v93, %v583
  %v735 = vadd.f32 %v94, %v585
  %v736 = vadd.f32 %v95, %v587
  %v737 = vadd.f32 %v96, %v591
  %v738 = vadd.f32 %v97, %v593
  %v739 = vadd.f32 %v98, %v595
  %v740 = vadd.f32 %v99, %v597
  %v741 = vadd.f32 %v100, %v601
  %v742 = vadd.f32 %v101, %v603
  %v743 = vadd.f32 %v102, %v605
  %v744 = vadd.f32 %v103, %v607
  %v745 = vadd.f32 %v104, %v611
  %v746 = vadd.f32 %v105, %v613
  %v747 = vadd.f32 %v106, %v615
  %v748 = vadd.f32 %v107, %v617
  %v749 = vadd.f32 %v108, %v621
  %v750 = vadd.f32 %v109, %v623
  %v751 = vadd.f32 %v110, %v625
  %v752 = vadd.f32 %v111, %v627
  %v753 = vadd.f32 %v112, %v631
  %v754 = vadd.f32 %v113, %v633
  %v755 = vadd.f32 %v114, %v635
  %v756 = vadd.f32 %v115, %v637
  %v757 = vadd.f32 %v116, %v641
  %v758 = vadd.f32 %v117, %v643
  %v759 = vadd.f32 %v118, %v645
  %v760 = vadd.f32 %v119, %v647
  %v761 = vadd.f32 %v120, %v651
  %v762 = vadd.f32 %v121, %v653
  %v763 = vadd.f32 %v122, %v655
  %v764 = vadd.f32 %v123, %v657
  %v765 = vadd.f32 %v124, %v661
  %v766 = vadd.f32 %v125, %v663
  %v767 = vadd.f32 %v126, %v665
  %v768 = vadd.f32 %v127, %v667
  %v769 = vadd.f32 %v128, %v671
  %v770 = vadd.f32 %v129, %v673
  %v771 = vadd.f32 %v130, %v675
  %v772 = vadd.f32 %v131, %v677
  %v773 = vadd.f32 %v132, %v681
  %v774 = vadd.f32 %v133, %v683
  %v775 = vadd.f32 %v134, %v685
  %v776 = vadd.f32 %v135, %v687
  %v777 = vadd.f32 %v136, %v691
  %v778 = vadd.f32 %v137, %v693
  %v779 = vadd.f32 %v138, %v695
  %v780 = vadd.f32 %v139, %v697
  %v781 = vadd.f32 %v140, %v701
  %v782 = vadd.f32 %v141, %v703
  %v783 = vadd.f32 %v142, %v705
  %v784 = vadd.f32 %v143, %v707
  %v785 = vadd.f32 %v144, %v711
  %v786 = vadd.f32 %v145, %v713
  %v787 = vadd.f32 %v146, %v715
  %v788 = vadd.f32 %v147, %v717
  %v789 = vadd.f32 %v148, %v721
  %v790 = vadd.f32 %v149, %v723
  %v791 = vadd.f32 %v150, %v725
  %v792 = vadd.f32 %v151, %v727
  %793 = vst [vmem:[#allocation2] sm:$0xff] %v729
  %794 = vst [vmem:[#allocation2 + $0x8] sm:$0xff] %v730
  %795 = vst [vmem:[#allocation2 + $0x10] sm:$0xff] %v731
  %796 = vst [vmem:[#allocation2 + $0x18] sm:$0xff] %v732
  %797 = vst [vmem:[#allocation2 + $0x20] sm:$0xff] %v733
  %798 = vst [vmem:[#allocation2 + $0x28] sm:$0xff] %v734
  %799 = vst [vmem:[#allocation2 + $0x30] sm:$0xff] %v735
  %800 = vst [vmem:[#allocation2 + $0x38] sm:$0xff] %v736
  %801 = vst [vmem:[#allocation2 + $0x40] sm:$0xff] %v737
  %802 = vst [vmem:[#allocation2 + $0x48] sm:$0xff] %v738
  %803 = vst [vmem:[#allocation2 + $0x50] sm:$0xff] %v739
  %804 = vst [vmem:[#allocation2 + $0x58] sm:$0xff] %v740
  %805 = vst [vmem:[#allocation2 + $0x60] sm:$0xff] %v741
  %806 = vst [vmem:[#allocation2 + $0x68] sm:$0xff] %v742
  %807 = vst [vmem:[#allocation2 + $0x70] sm:$0xff] %v743
  %808 = vst [vmem:[#allocation2 + $0x78] sm:$0xff] %v744
  %809 = vst [vmem:[#allocation2 + $0x80] sm:$0xff] %v745
  %810 = vst [vmem:[#allocation2 + $0x88] sm:$0xff] %v746
  %811 = vst [vmem:[#allocation2 + $0x90] sm:$0xff] %v747
  %812 = vst [vmem:[#allocation2 + $0x98] sm:$0xff] %v748
  %813 = vst [vmem:[#allocation2 + $0xa0] sm:$0xff] %v749
  %814 = vst [vmem:[#allocation2 + $0xa8] sm:$0xff] %v750
  %815 = vst [vmem:[#allocation2 + $0xb0] sm:$0xff] %v751
  %816 = vst [vmem:[#allocation2 + $0xb8] sm:$0xff] %v752
  %817 = vst [vmem:[#allocation2 + $0xc0] sm:$0xff] %v753
  %818 = vst [vmem:[#allocation2 + $0xc8] sm:$0xff] %v754
  %819 = vst [vmem:[#allocation2 + $0xd0] sm:$0xff] %v755
  %820 = vst [vmem:[#allocation2 + $0xd8] sm:$0xff] %v756
  %821 = vst [vmem:[#allocation2 + $0xe0] sm:$0xff] %v757
  %822 = vst [vmem:[#allocation2 + $0xe8] sm:$0xff] %v758
  %823 = vst [vmem:[#allocation2 + $0xf0] sm:$0xff] %v759
  %824 = vst [vmem:[#allocation2 + $0xf8] sm:$0xff] %v760
  %825 = vst [vmem:[#allocation2 + $0x100] sm:$0xff] %v761
  %826 = vst [vmem:[#allocation2 + $0x108] sm:$0xff] %v762
  %827 = vst [vmem:[#allocation2 + $0x110] sm:$0xff] %v763
  %828 = vst [vmem:[#allocation2 + $0x118] sm:$0xff] %v764
  %829 = vst [vmem:[#allocation2 + $0x120] sm:$0xff] %v765
  %830 = vst [vmem:[#allocation2 + $0x128] sm:$0xff] %v766
  %831 = vst [vmem:[#allocation2 + $0x130] sm:$0xff] %v767
  %832 = vst [vmem:[#allocation2 + $0x138] sm:$0xff] %v768
  %833 = vst [vmem:[#allocation2 + $0x140] sm:$0xff] %v769
  %834 = vst [vmem:[#allocation2 + $0x148] sm:$0xff] %v770
  %835 = vst [vmem:[#allocation2 + $0x150] sm:$0xff] %v771
  %836 = vst [vmem:[#allocation2 + $0x158] sm:$0xff] %v772
  %837 = vst [vmem:[#allocation2 + $0x160] sm:$0xff] %v773
  %838 = vst [vmem:[#allocation2 + $0x168] sm:$0xff] %v774
  %839 = vst [vmem:[#allocation2 + $0x170] sm:$0xff] %v775
  %840 = vst [vmem:[#allocation2 + $0x178] sm:$0xff] %v776
  %841 = vst [vmem:[#allocation2 + $0x180] sm:$0xff] %v777
  %842 = vst [vmem:[#allocation2 + $0x188] sm:$0xff] %v778
  %843 = vst [vmem:[#allocation2 + $0x190] sm:$0xff] %v779
  %844 = vst [vmem:[#allocation2 + $0x198] sm:$0xff] %v780
  %845 = vst [vmem:[#allocation2 + $0x1a0] sm:$0xff] %v781
  %846 = vst [vmem:[#allocation2 + $0x1a8] sm:$0xff] %v782
  %847 = vst [vmem:[#allocation2 + $0x1b0] sm:$0xff] %v783
  %848 = vst [vmem:[#allocation2 + $0x1b8] sm:$0xff] %v784
  %849 = vst [vmem:[#allocation2 + $0x1c0] sm:$0xff] %v785
  %850 = vst [vmem:[#allocation2 + $0x1c8] sm:$0xff] %v786
  %851 = vst [vmem:[#allocation2 + $0x1d0] sm:$0xff] %v787
  %852 = vst [vmem:[#allocation2 + $0x1d8] sm:$0xff] %v788
  %853 = vst [vmem:[#allocation2 + $0x1e0] sm:$0xff] %v789
  %854 = vst [vmem:[#allocation2 + $0x1e8] sm:$0xff] %v790
  %855 = vst [vmem:[#allocation2 + $0x1f0] sm:$0xff] %v791
  %856 = vst [vmem:[#allocation2 + $0x1f8] sm:$0xff] %v792
  // Predicated region
  $region22: #{_gcn_forward_impl.7} parent=0 // pred_check
    %p857 = pneg %p20
  $region23: #{_gcn_forward_impl.7} parent=0 // pred_check_branch
    %859 = sbr.rel (%p857) target = $region25
  $region24: #{_gcn_forward_impl.7} parent=0 // pred_region
    %v860 = vld [vmem:[#allocation2] sm:$0xff]
    %v861 = vld [vmem:[#allocation2 + $0x8] sm:$0xff]
    %v862 = vld [vmem:[#allocation2 + $0x10] sm:$0xff]
    %v863 = vld [vmem:[#allocation2 + $0x18] sm:$0xff]
    %v864 = vld [vmem:[#allocation2 + $0x20] sm:$0xff]
    %v865 = vld [vmem:[#allocation2 + $0x28] sm:$0xff]
    %v866 = vld [vmem:[#allocation2 + $0x30] sm:$0xff]
    %v867 = vld [vmem:[#allocation2 + $0x38] sm:$0xff]
    %v868 = vld [vmem:[#allocation2 + $0x40] sm:$0xff]
    %v869 = vld [vmem:[#allocation2 + $0x48] sm:$0xff]
    %v870 = vld [vmem:[#allocation2 + $0x50] sm:$0xff]
    %v871 = vld [vmem:[#allocation2 + $0x58] sm:$0xff]
    %v872 = vld [vmem:[#allocation2 + $0x60] sm:$0xff]
    %v873 = vld [vmem:[#allocation2 + $0x68] sm:$0xff]
    %v874 = vld [vmem:[#allocation2 + $0x70] sm:$0xff]
    %v875 = vld [vmem:[#allocation2 + $0x78] sm:$0xff]
    %v876 = vld [vmem:[#allocation2 + $0x80] sm:$0xff]
    %v877 = vld [vmem:[#allocation2 + $0x88] sm:$0xff]
    %v878 = vld [vmem:[#allocation2 + $0x90] sm:$0xff]
    %v879 = vld [vmem:[#allocation2 + $0x98] sm:$0xff]
    %v880 = vld [vmem:[#allocation2 + $0xa0] sm:$0xff]
    %v881 = vld [vmem:[#allocation2 + $0xa8] sm:$0xff]
    %v882 = vld [vmem:[#allocation2 + $0xb0] sm:$0xff]
    %v883 = vld [vmem:[#allocation2 + $0xb8] sm:$0xff]
    %v884 = vld [vmem:[#allocation2 + $0xc0] sm:$0xff]
    %v885 = vld [vmem:[#allocation2 + $0xc8] sm:$0xff]
    %v886 = vld [vmem:[#allocation2 + $0xd0] sm:$0xff]
    %v887 = vld [vmem:[#allocation2 + $0xd8] sm:$0xff]
    %v888 = vld [vmem:[#allocation2 + $0xe0] sm:$0xff]
    %v889 = vld [vmem:[#allocation2 + $0xe8] sm:$0xff]
    %v890 = vld [vmem:[#allocation2 + $0xf0] sm:$0xff]
    %v891 = vld [vmem:[#allocation2 + $0xf8] sm:$0xff]
    %v892 = vld [vmem:[#allocation2 + $0x100] sm:$0xff]
    %v893 = vld [vmem:[#allocation2 + $0x108] sm:$0xff]
    %v894 = vld [vmem:[#allocation2 + $0x110] sm:$0xff]
    %v895 = vld [vmem:[#allocation2 + $0x118] sm:$0xff]
    %v896 = vld [vmem:[#allocation2 + $0x120] sm:$0xff]
    %v897 = vld [vmem:[#allocation2 + $0x128] sm:$0xff]
    %v898 = vld [vmem:[#allocation2 + $0x130] sm:$0xff]
    %v899 = vld [vmem:[#allocation2 + $0x138] sm:$0xff]
    %v900 = vld [vmem:[#allocation2 + $0x140] sm:$0xff]
    %v901 = vld [vmem:[#allocation2 + $0x148] sm:$0xff]
    %v902 = vld [vmem:[#allocation2 + $0x150] sm:$0xff]
    %v903 = vld [vmem:[#allocation2 + $0x158] sm:$0xff]
    %v904 = vld [vmem:[#allocation2 + $0x160] sm:$0xff]
    %v905 = vld [vmem:[#allocation2 + $0x168] sm:$0xff]
    %v906 = vld [vmem:[#allocation2 + $0x170] sm:$0xff]
    %v907 = vld [vmem:[#allocation2 + $0x178] sm:$0xff]
    %v908 = vld [vmem:[#allocation2 + $0x180] sm:$0xff]
    %v909 = vld [vmem:[#allocation2 + $0x188] sm:$0xff]
    %v910 = vld [vmem:[#allocation2 + $0x190] sm:$0xff]
    %v911 = vld [vmem:[#allocation2 + $0x198] sm:$0xff]
    %v912 = vld [vmem:[#allocation2 + $0x1a0] sm:$0xff]
    %v913 = vld [vmem:[#allocation2 + $0x1a8] sm:$0xff]
    %v914 = vld [vmem:[#allocation2 + $0x1b0] sm:$0xff]
    %v915 = vld [vmem:[#allocation2 + $0x1b8] sm:$0xff]
    %v916 = vld [vmem:[#allocation2 + $0x1c0] sm:$0xff]
    %v917 = vld [vmem:[#allocation2 + $0x1c8] sm:$0xff]
    %v918 = vld [vmem:[#allocation2 + $0x1d0] sm:$0xff]
    %v919 = vld [vmem:[#allocation2 + $0x1d8] sm:$0xff]
    %v920 = vld [vmem:[#allocation2 + $0x1e0] sm:$0xff]
    %v921 = vld [vmem:[#allocation2 + $0x1e8] sm:$0xff]
    %v922 = vld [vmem:[#allocation2 + $0x1f0] sm:$0xff]
    %v923 = vld [vmem:[#allocation2 + $0x1f8] sm:$0xff]
    %v924 = vld [vmem:[%s2] sm:$0x3]
    %v926 = vlaneseq
    %v927 = vshrl.u32 %v926, 7
    %v928 = vsub.s32 0, %v927
    %v929 = vrot.slane %v924, %v928
    %v930 = vlaneseq
    %v931 = vshrl.u32 %v930, 7
    %v932 = vsub.s32 1, %v931
    %v933 = vrot.slane %v924, %v932
    %v936 = vadd.f32 %v860, %v929
    %v937 = vadd.f32 %v861, %v933
    %v938 = vadd.f32 %v862, %v929
    %v939 = vadd.f32 %v863, %v933
    %v940 = vadd.f32 %v864, %v929
    %v941 = vadd.f32 %v865, %v933
    %v942 = vadd.f32 %v866, %v929
    %v943 = vadd.f32 %v867, %v933
    %v944 = vadd.f32 %v868, %v929
    %v945 = vadd.f32 %v869, %v933
    %v946 = vadd.f32 %v870, %v929
    %v947 = vadd.f32 %v871, %v933
    %v948 = vadd.f32 %v872, %v929
    %v949 = vadd.f32 %v873, %v933
    %v950 = vadd.f32 %v874, %v929
    %v951 = vadd.f32 %v875, %v933
    %v952 = vadd.f32 %v876, %v929
    %v953 = vadd.f32 %v877, %v933
    %v954 = vadd.f32 %v878, %v929
    %v955 = vadd.f32 %v879, %v933
    %v956 = vadd.f32 %v880, %v929
    %v957 = vadd.f32 %v881, %v933
    %v958 = vadd.f32 %v882, %v929
    %v959 = vadd.f32 %v883, %v933
    %v960 = vadd.f32 %v884, %v929
    %v961 = vadd.f32 %v885, %v933
    %v962 = vadd.f32 %v886, %v929
    %v963 = vadd.f32 %v887, %v933
    %v964 = vadd.f32 %v888, %v929
    %v965 = vadd.f32 %v889, %v933
    %v966 = vadd.f32 %v890, %v929
    %v967 = vadd.f32 %v891, %v933
    %v968 = vadd.f32 %v892, %v929
    %v969 = vadd.f32 %v893, %v933
    %v970 = vadd.f32 %v894, %v929
    %v971 = vadd.f32 %v895, %v933
    %v972 = vadd.f32 %v896, %v929
    %v973 = vadd.f32 %v897, %v933
    %v974 = vadd.f32 %v898, %v929
    %v975 = vadd.f32 %v899, %v933
    %v976 = vadd.f32 %v900, %v929
    %v977 = vadd.f32 %v901, %v933
    %v978 = vadd.f32 %v902, %v929
    %v979 = vadd.f32 %v903, %v933
    %v980 = vadd.f32 %v904, %v929
    %v981 = vadd.f32 %v905, %v933
    %v982 = vadd.f32 %v906, %v929
    %v983 = vadd.f32 %v907, %v933
    %v984 = vadd.f32 %v908, %v929
    %v985 = vadd.f32 %v909, %v933
    %v986 = vadd.f32 %v910, %v929
    %v987 = vadd.f32 %v911, %v933
    %v988 = vadd.f32 %v912, %v929
    %v989 = vadd.f32 %v913, %v933
    %v990 = vadd.f32 %v914, %v929
    %v991 = vadd.f32 %v915, %v933
    %v992 = vadd.f32 %v916, %v929
    %v993 = vadd.f32 %v917, %v933
    %v994 = vadd.f32 %v918, %v929
    %v995 = vadd.f32 %v919, %v933
    %v996 = vadd.f32 %v920, %v929
    %v997 = vadd.f32 %v921, %v933
    %v998 = vadd.f32 %v922, %v929
    %v999 = vadd.f32 %v923, %v933
    %v1000 = vld [vmem:[%s3] sm:$0xff]
    %v1001 = vld [vmem:[%s3 + $0x8] sm:$0xff]
    %v1002 = vld [vmem:[%s3 + $0x10] sm:$0xff]
    %v1003 = vld [vmem:[%s3 + $0x18] sm:$0xff]
    %v1004 = vld [vmem:[%s3 + $0x20] sm:$0xff]
    %v1005 = vld [vmem:[%s3 + $0x28] sm:$0xff]
    %v1006 = vld [vmem:[%s3 + $0x30] sm:$0xff]
    %v1007 = vld [vmem:[%s3 + $0x38] sm:$0xff]
    %v1008 = vld [vmem:[%s3 + $0x40] sm:$0xff]
    %v1009 = vld [vmem:[%s3 + $0x48] sm:$0xff]
    %v1010 = vld [vmem:[%s3 + $0x50] sm:$0xff]
    %v1011 = vld [vmem:[%s3 + $0x58] sm:$0xff]
    %v1012 = vld [vmem:[%s3 + $0x60] sm:$0xff]
    %v1013 = vld [vmem:[%s3 + $0x68] sm:$0xff]
    %v1014 = vld [vmem:[%s3 + $0x70] sm:$0xff]
    %v1015 = vld [vmem:[%s3 + $0x78] sm:$0xff]
    %v1016 = vld [vmem:[%s3 + $0x80] sm:$0xff]
    %v1017 = vld [vmem:[%s3 + $0x88] sm:$0xff]
    %v1018 = vld [vmem:[%s3 + $0x90] sm:$0xff]
    %v1019 = vld [vmem:[%s3 + $0x98] sm:$0xff]
    %v1020 = vld [vmem:[%s3 + $0xa0] sm:$0xff]
    %v1021 = vld [vmem:[%s3 + $0xa8] sm:$0xff]
    %v1022 = vld [vmem:[%s3 + $0xb0] sm:$0xff]
    %v1023 = vld [vmem:[%s3 + $0xb8] sm:$0xff]
    %v1024 = vld [vmem:[%s3 + $0xc0] sm:$0xff]
    %v1025 = vld [vmem:[%s3 + $0xc8] sm:$0xff]
    %v1026 = vld [vmem:[%s3 + $0xd0] sm:$0xff]
    %v1027 = vld [vmem:[%s3 + $0xd8] sm:$0xff]
    %v1028 = vld [vmem:[%s3 + $0xe0] sm:$0xff]
    %v1029 = vld [vmem:[%s3 + $0xe8] sm:$0xff]
    %v1030 = vld [vmem:[%s3 + $0xf0] sm:$0xff]
    %v1031 = vld [vmem:[%s3 + $0xf8] sm:$0xff]
    %1033 = vset.pattern.permute.xlu0 0
    %1034 = vperm.xlu0 %1033, %v1000
    %v1035 = vpop.permute.xlu0 %1034
    %1038 = vset.pattern.permute.xlu0 0
    %1039 = vperm.xlu0 %1038, %v1001
    %v1040 = vpop.permute.xlu0 %1039
    %1043 = vset.pattern.permute.xlu0 0
    %1044 = vperm.xlu0 %1043, %v1002
    %v1045 = vpop.permute.xlu0 %1044
    %1048 = vset.pattern.permute.xlu0 0
    %1049 = vperm.xlu0 %1048, %v1003
    %v1050 = vpop.permute.xlu0 %1049
    %1053 = vset.pattern.permute.xlu0 0
    %1054 = vperm.xlu0 %1053, %v1004
    %v1055 = vpop.permute.xlu0 %1054
    %1058 = vset.pattern.permute.xlu0 0
    %1059 = vperm.xlu0 %1058, %v1005
    %v1060 = vpop.permute.xlu0 %1059
    %1063 = vset.pattern.permute.xlu0 0
    %1064 = vperm.xlu0 %1063, %v1006
    %v1065 = vpop.permute.xlu0 %1064
    %1068 = vset.pattern.permute.xlu0 0
    %1069 = vperm.xlu0 %1068, %v1007
    %v1070 = vpop.permute.xlu0 %1069
    %1073 = vset.pattern.permute.xlu0 0
    %1074 = vperm.xlu0 %1073, %v1008
    %v1075 = vpop.permute.xlu0 %1074
    %1078 = vset.pattern.permute.xlu0 0
    %1079 = vperm.xlu0 %1078, %v1009
    %v1080 = vpop.permute.xlu0 %1079
    %1083 = vset.pattern.permute.xlu0 0
    %1084 = vperm.xlu0 %1083, %v1010
    %v1085 = vpop.permute.xlu0 %1084
    %1088 = vset.pattern.permute.xlu0 0
    %1089 = vperm.xlu0 %1088, %v1011
    %v1090 = vpop.permute.xlu0 %1089
    %1093 = vset.pattern.permute.xlu0 0
    %1094 = vperm.xlu0 %1093, %v1012
    %v1095 = vpop.permute.xlu0 %1094
    %1098 = vset.pattern.permute.xlu0 0
    %1099 = vperm.xlu0 %1098, %v1013
    %v1100 = vpop.permute.xlu0 %1099
    %1103 = vset.pattern.permute.xlu0 0
    %1104 = vperm.xlu0 %1103, %v1014
    %v1105 = vpop.permute.xlu0 %1104
    %1108 = vset.pattern.permute.xlu0 0
    %1109 = vperm.xlu0 %1108, %v1015
    %v1110 = vpop.permute.xlu0 %1109
    %1113 = vset.pattern.permute.xlu0 0
    %1114 = vperm.xlu0 %1113, %v1016
    %v1115 = vpop.permute.xlu0 %1114
    %1118 = vset.pattern.permute.xlu0 0
    %1119 = vperm.xlu0 %1118, %v1017
    %v1120 = vpop.permute.xlu0 %1119
    %1123 = vset.pattern.permute.xlu0 0
    %1124 = vperm.xlu0 %1123, %v1018
    %v1125 = vpop.permute.xlu0 %1124
    %1128 = vset.pattern.permute.xlu0 0
    %1129 = vperm.xlu0 %1128, %v1019
    %v1130 = vpop.permute.xlu0 %1129
    %1133 = vset.pattern.permute.xlu0 0
    %1134 = vperm.xlu0 %1133, %v1020
    %v1135 = vpop.permute.xlu0 %1134
    %1138 = vset.pattern.permute.xlu0 0
    %1139 = vperm.xlu0 %1138, %v1021
    %v1140 = vpop.permute.xlu0 %1139
    %1143 = vset.pattern.permute.xlu0 0
    %1144 = vperm.xlu0 %1143, %v1022
    %v1145 = vpop.permute.xlu0 %1144
    %1148 = vset.pattern.permute.xlu0 0
    %1149 = vperm.xlu0 %1148, %v1023
    %v1150 = vpop.permute.xlu0 %1149
    %1153 = vset.pattern.permute.xlu0 0
    %1154 = vperm.xlu0 %1153, %v1024
    %v1155 = vpop.permute.xlu0 %1154
    %1158 = vset.pattern.permute.xlu0 0
    %1159 = vperm.xlu0 %1158, %v1025
    %v1160 = vpop.permute.xlu0 %1159
    %1163 = vset.pattern.permute.xlu0 0
    %1164 = vperm.xlu0 %1163, %v1026
    %v1165 = vpop.permute.xlu0 %1164
    %1168 = vset.pattern.permute.xlu0 0
    %1169 = vperm.xlu0 %1168, %v1027
    %v1170 = vpop.permute.xlu0 %1169
    %1173 = vset.pattern.permute.xlu0 0
    %1174 = vperm.xlu0 %1173, %v1028
    %v1175 = vpop.permute.xlu0 %1174
    %1178 = vset.pattern.permute.xlu0 0
    %1179 = vperm.xlu0 %1178, %v1029
    %v1180 = vpop.permute.xlu0 %1179
    %1183 = vset.pattern.permute.xlu0 0
    %1184 = vperm.xlu0 %1183, %v1030
    %v1185 = vpop.permute.xlu0 %1184
    %1188 = vset.pattern.permute.xlu0 0
    %1189 = vperm.xlu0 %1188, %v1031
    %v1190 = vpop.permute.xlu0 %1189
    %v1192 = vmul.f32 %v936, %v1035
    %v1193 = vmul.f32 %v937, %v1035
    %v1194 = vmul.f32 %v938, %v1040
    %v1195 = vmul.f32 %v939, %v1040
    %v1196 = vmul.f32 %v940, %v1045
    %v1197 = vmul.f32 %v941, %v1045
    %v1198 = vmul.f32 %v942, %v1050
    %v1199 = vmul.f32 %v943, %v1050
    %v1200 = vmul.f32 %v944, %v1055
    %v1201 = vmul.f32 %v945, %v1055
    %v1202 = vmul.f32 %v946, %v1060
    %v1203 = vmul.f32 %v947, %v1060
    %v1204 = vmul.f32 %v948, %v1065
    %v1205 = vmul.f32 %v949, %v1065
    %v1206 = vmul.f32 %v950, %v1070
    %v1207 = vmul.f32 %v951, %v1070
    %v1208 = vmul.f32 %v952, %v1075
    %v1209 = vmul.f32 %v953, %v1075
    %v1210 = vmul.f32 %v954, %v1080
    %v1211 = vmul.f32 %v955, %v1080
    %v1212 = vmul.f32 %v956, %v1085
    %v1213 = vmul.f32 %v957, %v1085
    %v1214 = vmul.f32 %v958, %v1090
    %v1215 = vmul.f32 %v959, %v1090
    %v1216 = vmul.f32 %v960, %v1095
    %v1217 = vmul.f32 %v961, %v1095
    %v1218 = vmul.f32 %v962, %v1100
    %v1219 = vmul.f32 %v963, %v1100
    %v1220 = vmul.f32 %v964, %v1105
    %v1221 = vmul.f32 %v965, %v1105
    %v1222 = vmul.f32 %v966, %v1110
    %v1223 = vmul.f32 %v967, %v1110
    %v1224 = vmul.f32 %v968, %v1115
    %v1225 = vmul.f32 %v969, %v1115
    %v1226 = vmul.f32 %v970, %v1120
    %v1227 = vmul.f32 %v971, %v1120
    %v1228 = vmul.f32 %v972, %v1125
    %v1229 = vmul.f32 %v973, %v1125
    %v1230 = vmul.f32 %v974, %v1130
    %v1231 = vmul.f32 %v975, %v1130
    %v1232 = vmul.f32 %v976, %v1135
    %v1233 = vmul.f32 %v977, %v1135
    %v1234 = vmul.f32 %v978, %v1140
    %v1235 = vmul.f32 %v979, %v1140
    %v1236 = vmul.f32 %v980, %v1145
    %v1237 = vmul.f32 %v981, %v1145
    %v1238 = vmul.f32 %v982, %v1150
    %v1239 = vmul.f32 %v983, %v1150
    %v1240 = vmul.f32 %v984, %v1155
    %v1241 = vmul.f32 %v985, %v1155
    %v1242 = vmul.f32 %v986, %v1160
    %v1243 = vmul.f32 %v987, %v1160
    %v1244 = vmul.f32 %v988, %v1165
    %v1245 = vmul.f32 %v989, %v1165
    %v1246 = vmul.f32 %v990, %v1170
    %v1247 = vmul.f32 %v991, %v1170
    %v1248 = vmul.f32 %v992, %v1175
    %v1249 = vmul.f32 %v993, %v1175
    %v1250 = vmul.f32 %v994, %v1180
    %v1251 = vmul.f32 %v995, %v1180
    %v1252 = vmul.f32 %v996, %v1185
    %v1253 = vmul.f32 %v997, %v1185
    %v1254 = vmul.f32 %v998, %v1190
    %v1255 = vmul.f32 %v999, %v1190
    %v1256 = vpack.c.bf16 %v1194, %v1192
    %v1257 = vpack.c.bf16 %v1195, %v1193
    %v1258 = vpack.c.bf16 %v1198, %v1196
    %v1259 = vpack.c.bf16 %v1199, %v1197
    %v1260 = vpack.c.bf16 %v1202, %v1200
    %v1261 = vpack.c.bf16 %v1203, %v1201
    %v1262 = vpack.c.bf16 %v1206, %v1204
    %v1263 = vpack.c.bf16 %v1207, %v1205
    %v1264 = vpack.c.bf16 %v1210, %v1208
    %v1265 = vpack.c.bf16 %v1211, %v1209
    %v1266 = vpack.c.bf16 %v1214, %v1212
    %v1267 = vpack.c.bf16 %v1215, %v1213
    %v1268 = vpack.c.bf16 %v1218, %v1216
    %v1269 = vpack.c.bf16 %v1219, %v1217
    %v1270 = vpack.c.bf16 %v1222, %v1220
    %v1271 = vpack.c.bf16 %v1223, %v1221
    %v1272 = vpack.c.bf16 %v1226, %v1224
    %v1273 = vpack.c.bf16 %v1227, %v1225
    %v1274 = vpack.c.bf16 %v1230, %v1228
    %v1275 = vpack.c.bf16 %v1231, %v1229
    %v1276 = vpack.c.bf16 %v1234, %v1232
    %v1277 = vpack.c.bf16 %v1235, %v1233
    %v1278 = vpack.c.bf16 %v1238, %v1236
    %v1279 = vpack.c.bf16 %v1239, %v1237
    %v1280 = vpack.c.bf16 %v1242, %v1240
    %v1281 = vpack.c.bf16 %v1243, %v1241
    %v1282 = vpack.c.bf16 %v1246, %v1244
    %v1283 = vpack.c.bf16 %v1247, %v1245
    %v1284 = vpack.c.bf16 %v1250, %v1248
    %v1285 = vpack.c.bf16 %v1251, %v1249
    %v1286 = vpack.c.bf16 %v1254, %v1252
    %v1287 = vpack.c.bf16 %v1255, %v1253
    %v1320 = vunpack.c.l.b16 %v1256
    %v1321 = vunpack.c.l.b16 %v1257
    %v1322 = vunpack.c.h.b16 %v1256
    %v1323 = vunpack.c.h.b16 %v1257
    %v1324 = vunpack.c.l.b16 %v1258
    %v1325 = vunpack.c.l.b16 %v1259
    %v1326 = vunpack.c.h.b16 %v1258
    %v1327 = vunpack.c.h.b16 %v1259
    %v1328 = vunpack.c.l.b16 %v1260
    %v1329 = vunpack.c.l.b16 %v1261
    %v1330 = vunpack.c.h.b16 %v1260
    %v1331 = vunpack.c.h.b16 %v1261
    %v1332 = vunpack.c.l.b16 %v1262
    %v1333 = vunpack.c.l.b16 %v1263
    %v1334 = vunpack.c.h.b16 %v1262
    %v1335 = vunpack.c.h.b16 %v1263
    %v1336 = vunpack.c.l.b16 %v1264
    %v1337 = vunpack.c.l.b16 %v1265
    %v1338 = vunpack.c.h.b16 %v1264
    %v1339 = vunpack.c.h.b16 %v1265
    %v1340 = vunpack.c.l.b16 %v1266
    %v1341 = vunpack.c.l.b16 %v1267
    %v1342 = vunpack.c.h.b16 %v1266
    %v1343 = vunpack.c.h.b16 %v1267
    %v1344 = vunpack.c.l.b16 %v1268
    %v1345 = vunpack.c.l.b16 %v1269
    %v1346 = vunpack.c.h.b16 %v1268
    %v1347 = vunpack.c.h.b16 %v1269
    %v1348 = vunpack.c.l.b16 %v1270
    %v1349 = vunpack.c.l.b16 %v1271
    %v1350 = vunpack.c.h.b16 %v1270
    %v1351 = vunpack.c.h.b16 %v1271
    %v1352 = vunpack.c.l.b16 %v1272
    %v1353 = vunpack.c.l.b16 %v1273
    %v1354 = vunpack.c.h.b16 %v1272
    %v1355 = vunpack.c.h.b16 %v1273
    %v1356 = vunpack.c.l.b16 %v1274
    %v1357 = vunpack.c.l.b16 %v1275
    %v1358 = vunpack.c.h.b16 %v1274
    %v1359 = vunpack.c.h.b16 %v1275
    %v1360 = vunpack.c.l.b16 %v1276
    %v1361 = vunpack.c.l.b16 %v1277
    %v1362 = vunpack.c.h.b16 %v1276
    %v1363 = vunpack.c.h.b16 %v1277
    %v1364 = vunpack.c.l.b16 %v1278
    %v1365 = vunpack.c.l.b16 %v1279
    %v1366 = vunpack.c.h.b16 %v1278
    %v1367 = vunpack.c.h.b16 %v1279
    %v1368 = vunpack.c.l.b16 %v1280
    %v1369 = vunpack.c.l.b16 %v1281
    %v1370 = vunpack.c.h.b16 %v1280
    %v1371 = vunpack.c.h.b16 %v1281
    %v1372 = vunpack.c.l.b16 %v1282
    %v1373 = vunpack.c.l.b16 %v1283
    %v1374 = vunpack.c.h.b16 %v1282
    %v1375 = vunpack.c.h.b16 %v1283
    %v1376 = vunpack.c.l.b16 %v1284
    %v1377 = vunpack.c.l.b16 %v1285
    %v1378 = vunpack.c.h.b16 %v1284
    %v1379 = vunpack.c.h.b16 %v1285
    %v1380 = vunpack.c.l.b16 %v1286
    %v1381 = vunpack.c.l.b16 %v1287
    %v1382 = vunpack.c.h.b16 %v1286
    %v1383 = vunpack.c.h.b16 %v1287
    %v1384 = vpack.c.b16 %v1321, %v1320
    %v1385 = vpack.c.b16 %v1323, %v1322
    %v1386 = vpack.c.b16 %v1325, %v1324
    %v1387 = vpack.c.b16 %v1327, %v1326
    %v1388 = vpack.c.b16 %v1329, %v1328
    %v1389 = vpack.c.b16 %v1331, %v1330
    %v1390 = vpack.c.b16 %v1333, %v1332
    %v1391 = vpack.c.b16 %v1335, %v1334
    %v1392 = vpack.c.b16 %v1337, %v1336
    %v1393 = vpack.c.b16 %v1339, %v1338
    %v1394 = vpack.c.b16 %v1341, %v1340
    %v1395 = vpack.c.b16 %v1343, %v1342
    %v1396 = vpack.c.b16 %v1345, %v1344
    %v1397 = vpack.c.b16 %v1347, %v1346
    %v1398 = vpack.c.b16 %v1349, %v1348
    %v1399 = vpack.c.b16 %v1351, %v1350
    %v1400 = vpack.c.b16 %v1353, %v1352
    %v1401 = vpack.c.b16 %v1355, %v1354
    %v1402 = vpack.c.b16 %v1357, %v1356
    %v1403 = vpack.c.b16 %v1359, %v1358
    %v1404 = vpack.c.b16 %v1361, %v1360
    %v1405 = vpack.c.b16 %v1363, %v1362
    %v1406 = vpack.c.b16 %v1365, %v1364
    %v1407 = vpack.c.b16 %v1367, %v1366
    %v1408 = vpack.c.b16 %v1369, %v1368
    %v1409 = vpack.c.b16 %v1371, %v1370
    %v1410 = vpack.c.b16 %v1373, %v1372
    %v1411 = vpack.c.b16 %v1375, %v1374
    %v1412 = vpack.c.b16 %v1377, %v1376
    %v1413 = vpack.c.b16 %v1379, %v1378
    %v1414 = vpack.c.b16 %v1381, %v1380
    %v1415 = vpack.c.b16 %v1383, %v1382
    %1448 = vst [vmem:[%s4] sm:$0xff] %v1384
    %1449 = vst [vmem:[%s4 + $0x8] sm:$0xff] %v1385
    %1450 = vst [vmem:[%s4 + $0x10] sm:$0xff] %v1386
    %1451 = vst [vmem:[%s4 + $0x18] sm:$0xff] %v1387
    %1452 = vst [vmem:[%s4 + $0x20] sm:$0xff] %v1388
    %1453 = vst [vmem:[%s4 + $0x28] sm:$0xff] %v1389
    %1454 = vst [vmem:[%s4 + $0x30] sm:$0xff] %v1390
    %1455 = vst [vmem:[%s4 + $0x38] sm:$0xff] %v1391
    %1456 = vst [vmem:[%s4 + $0x40] sm:$0xff] %v1392
    %1457 = vst [vmem:[%s4 + $0x48] sm:$0xff] %v1393
    %1458 = vst [vmem:[%s4 + $0x50] sm:$0xff] %v1394
    %1459 = vst [vmem:[%s4 + $0x58] sm:$0xff] %v1395
    %1460 = vst [vmem:[%s4 + $0x60] sm:$0xff] %v1396
    %1461 = vst [vmem:[%s4 + $0x68] sm:$0xff] %v1397
    %1462 = vst [vmem:[%s4 + $0x70] sm:$0xff] %v1398
    %1463 = vst [vmem:[%s4 + $0x78] sm:$0xff] %v1399
    %1464 = vst [vmem:[%s4 + $0x80] sm:$0xff] %v1400
    %1465 = vst [vmem:[%s4 + $0x88] sm:$0xff] %v1401
    %1466 = vst [vmem:[%s4 + $0x90] sm:$0xff] %v1402
    %1467 = vst [vmem:[%s4 + $0x98] sm:$0xff] %v1403
    %1468 = vst [vmem:[%s4 + $0xa0] sm:$0xff] %v1404
    %1469 = vst [vmem:[%s4 + $0xa8] sm:$0xff] %v1405
    %1470 = vst [vmem:[%s4 + $0xb0] sm:$0xff] %v1406
    %1471 = vst [vmem:[%s4 + $0xb8] sm:$0xff] %v1407
    %1472 = vst [vmem:[%s4 + $0xc0] sm:$0xff] %v1408
    %1473 = vst [vmem:[%s4 + $0xc8] sm:$0xff] %v1409
    %1474 = vst [vmem:[%s4 + $0xd0] sm:$0xff] %v1410
    %1475 = vst [vmem:[%s4 + $0xd8] sm:$0xff] %v1411
    %1476 = vst [vmem:[%s4 + $0xe0] sm:$0xff] %v1412
    %1477 = vst [vmem:[%s4 + $0xe8] sm:$0xff] %v1413
    %1478 = vst [vmem:[%s4 + $0xf0] sm:$0xff] %v1414
    %1479 = vst [vmem:[%s4 + $0xf8] sm:$0xff] %v1415
    %v1480 = vadd.f32 %v1192, %v1194
    %v1481 = vadd.f32 %v1480, %v1196
    %v1482 = vadd.f32 %v1481, %v1198
    %v1483 = vadd.f32 %v1482, %v1200
    %v1484 = vadd.f32 %v1483, %v1202
    %v1485 = vadd.f32 %v1484, %v1204
    %v1486 = vadd.f32 %v1485, %v1206
    %v1487 = vadd.f32 %v1486, %v1208
    %v1488 = vadd.f32 %v1487, %v1210
    %v1489 = vadd.f32 %v1488, %v1212
    %v1490 = vadd.f32 %v1489, %v1214
    %v1491 = vadd.f32 %v1490, %v1216
    %v1492 = vadd.f32 %v1491, %v1218
    %v1493 = vadd.f32 %v1492, %v1220
    %v1494 = vadd.f32 %v1493, %v1222
    %v1495 = vadd.f32 %v1494, %v1224
    %v1496 = vadd.f32 %v1495, %v1226
    %v1497 = vadd.f32 %v1496, %v1228
    %v1498 = vadd.f32 %v1497, %v1230
    %v1499 = vadd.f32 %v1498, %v1232
    %v1500 = vadd.f32 %v1499, %v1234
    %v1501 = vadd.f32 %v1500, %v1236
    %v1502 = vadd.f32 %v1501, %v1238
    %v1503 = vadd.f32 %v1502, %v1240
    %v1504 = vadd.f32 %v1503, %v1242
    %v1505 = vadd.f32 %v1504, %v1244
    %v1506 = vadd.f32 %v1505, %v1246
    %v1507 = vadd.f32 %v1506, %v1248
    %v1508 = vadd.f32 %v1507, %v1250
    %v1509 = vadd.f32 %v1508, %v1252
    %v1510 = vadd.f32 %v1509, %v1254
    %v1511 = vrot.slane %v1510, 4
    %v1512 = vadd.f32 %v1510, %v1511
    %v1513 = vrot.slane %v1512, 2
    %v1514 = vadd.f32 %v1512, %v1513
    %v1515 = vrot.slane %v1514, 1
    %v1516 = vadd.f32 %v1514, %v1515
    %v1517 = vadd.f32 %v1193, %v1195
    %v1518 = vadd.f32 %v1517, %v1197
    %v1519 = vadd.f32 %v1518, %v1199
    %v1520 = vadd.f32 %v1519, %v1201
    %v1521 = vadd.f32 %v1520, %v1203
    %v1522 = vadd.f32 %v1521, %v1205
    %v1523 = vadd.f32 %v1522, %v1207
    %v1524 = vadd.f32 %v1523, %v1209
    %v1525 = vadd.f32 %v1524, %v1211
    %v1526 = vadd.f32 %v1525, %v1213
    %v1527 = vadd.f32 %v1526, %v1215
    %v1528 = vadd.f32 %v1527, %v1217
    %v1529 = vadd.f32 %v1528, %v1219
    %v1530 = vadd.f32 %v1529, %v1221
    %v1531 = vadd.f32 %v1530, %v1223
    %v1532 = vadd.f32 %v1531, %v1225
    %v1533 = vadd.f32 %v1532, %v1227
    %v1534 = vadd.f32 %v1533, %v1229
    %v1535 = vadd.f32 %v1534, %v1231
    %v1536 = vadd.f32 %v1535, %v1233
    %v1537 = vadd.f32 %v1536, %v1235
    %v1538 = vadd.f32 %v1537, %v1237
    %v1539 = vadd.f32 %v1538, %v1239
    %v1540 = vadd.f32 %v1539, %v1241
    %v1541 = vadd.f32 %v1540, %v1243
    %v1542 = vadd.f32 %v1541, %v1245
    %v1543 = vadd.f32 %v1542, %v1247
    %v1544 = vadd.f32 %v1543, %v1249
    %v1545 = vadd.f32 %v1544, %v1251
    %v1546 = vadd.f32 %v1545, %v1253
    %v1547 = vadd.f32 %v1546, %v1255
    %v1548 = vrot.slane %v1547, 4
    %v1549 = vadd.f32 %v1547, %v1548
    %v1550 = vrot.slane %v1549, 2
    %v1551 = vadd.f32 %v1549, %v1550
    %v1552 = vrot.slane %v1551, 1
    %v1553 = vadd.f32 %v1551, %v1552
    %v1556 = vcombine.low %v1516, %v1553
    %v1558 = vunpack.c.l.s4 1966171168
    %v1559 = vunpack.c.0.s8 %v1558
    %v1560 = vlaneseq
    %v1561 = vshrl.u32 %v1560, 7
    %v1562 = vsub.s32 %v1559, %v1561
    %v1563 = vrot.slane %v1556, %v1562
    %v1565 = vunpack.c.l.s4 1966171168
    %v1566 = vunpack.c.0.s8 %v1565
    %v1567 = vlaneseq
    %v1568 = vshrl.u32 %v1567, 7
    %v1569 = vsub.s32 %v1566, %v1568
    %v1570 = vrot.slane %v1563, %v1569
    %v1572 = vlaneseq
    %vm1573 = vcmp.ge.s32.totalorder %v1572, 0
    %vm1574 = vcmp.lt.s32.totalorder %v1572, 256
    %vm1575 = vmand %vm1573, %vm1574
    %1576 = vst.msk [vmem:[%s5] sm:$0x3] %vm1575, %v1570
    %v1577 = vmul.f32 %v1192, %v1192
    %v1578 = vmul.f32 %v1193, %v1193
    %v1579 = vmul.f32 %v1194, %v1194
    %v1580 = vmul.f32 %v1195, %v1195
    %v1581 = vmul.f32 %v1196, %v1196
    %v1582 = vmul.f32 %v1197, %v1197
    %v1583 = vmul.f32 %v1198, %v1198
    %v1584 = vmul.f32 %v1199, %v1199
    %v1585 = vmul.f32 %v1200, %v1200
    %v1586 = vmul.f32 %v1201, %v1201
    %v1587 = vmul.f32 %v1202, %v1202
    %v1588 = vmul.f32 %v1203, %v1203
    %v1589 = vmul.f32 %v1204, %v1204
    %v1590 = vmul.f32 %v1205, %v1205
    %v1591 = vmul.f32 %v1206, %v1206
    %v1592 = vmul.f32 %v1207, %v1207
    %v1593 = vmul.f32 %v1208, %v1208
    %v1594 = vmul.f32 %v1209, %v1209
    %v1595 = vmul.f32 %v1210, %v1210
    %v1596 = vmul.f32 %v1211, %v1211
    %v1597 = vmul.f32 %v1212, %v1212
    %v1598 = vmul.f32 %v1213, %v1213
    %v1599 = vmul.f32 %v1214, %v1214
    %v1600 = vmul.f32 %v1215, %v1215
    %v1601 = vmul.f32 %v1216, %v1216
    %v1602 = vmul.f32 %v1217, %v1217
    %v1603 = vmul.f32 %v1218, %v1218
    %v1604 = vmul.f32 %v1219, %v1219
    %v1605 = vmul.f32 %v1220, %v1220
    %v1606 = vmul.f32 %v1221, %v1221
    %v1607 = vmul.f32 %v1222, %v1222
    %v1608 = vmul.f32 %v1223, %v1223
    %v1609 = vmul.f32 %v1224, %v1224
    %v1610 = vmul.f32 %v1225, %v1225
    %v1611 = vmul.f32 %v1226, %v1226
    %v1612 = vmul.f32 %v1227, %v1227
    %v1613 = vmul.f32 %v1228, %v1228
    %v1614 = vmul.f32 %v1229, %v1229
    %v1615 = vmul.f32 %v1230, %v1230
    %v1616 = vmul.f32 %v1231, %v1231
    %v1617 = vmul.f32 %v1232, %v1232
    %v1618 = vmul.f32 %v1233, %v1233
    %v1619 = vmul.f32 %v1234, %v1234
    %v1620 = vmul.f32 %v1235, %v1235
    %v1621 = vmul.f32 %v1236, %v1236
    %v1622 = vmul.f32 %v1237, %v1237
    %v1623 = vmul.f32 %v1238, %v1238
    %v1624 = vmul.f32 %v1239, %v1239
    %v1625 = vmul.f32 %v1240, %v1240
    %v1626 = vmul.f32 %v1241, %v1241
    %v1627 = vmul.f32 %v1242, %v1242
    %v1628 = vmul.f32 %v1243, %v1243
    %v1629 = vmul.f32 %v1244, %v1244
    %v1630 = vmul.f32 %v1245, %v1245
    %v1631 = vmul.f32 %v1246, %v1246
    %v1632 = vmul.f32 %v1247, %v1247
    %v1633 = vmul.f32 %v1248, %v1248
    %v1634 = vmul.f32 %v1249, %v1249
    %v1635 = vmul.f32 %v1250, %v1250
    %v1636 = vmul.f32 %v1251, %v1251
    %v1637 = vmul.f32 %v1252, %v1252
    %v1638 = vmul.f32 %v1253, %v1253
    %v1639 = vmul.f32 %v1254, %v1254
    %v1640 = vmul.f32 %v1255, %v1255
    %v1641 = vadd.f32 %v1577, %v1579
    %v1642 = vadd.f32 %v1641, %v1581
    %v1643 = vadd.f32 %v1642, %v1583
    %v1644 = vadd.f32 %v1643, %v1585
    %v1645 = vadd.f32 %v1644, %v1587
    %v1646 = vadd.f32 %v1645, %v1589
    %v1647 = vadd.f32 %v1646, %v1591
    %v1648 = vadd.f32 %v1647, %v1593
    %v1649 = vadd.f32 %v1648, %v1595
    %v1650 = vadd.f32 %v1649, %v1597
    %v1651 = vadd.f32 %v1650, %v1599
    %v1652 = vadd.f32 %v1651, %v1601
    %v1653 = vadd.f32 %v1652, %v1603
    %v1654 = vadd.f32 %v1653, %v1605
    %v1655 = vadd.f32 %v1654, %v1607
    %v1656 = vadd.f32 %v1655, %v1609
    %v1657 = vadd.f32 %v1656, %v1611
    %v1658 = vadd.f32 %v1657, %v1613
    %v1659 = vadd.f32 %v1658, %v1615
    %v1660 = vadd.f32 %v1659, %v1617
    %v1661 = vadd.f32 %v1660, %v1619
    %v1662 = vadd.f32 %v1661, %v1621
    %v1663 = vadd.f32 %v1662, %v1623
    %v1664 = vadd.f32 %v1663, %v1625
    %v1665 = vadd.f32 %v1664, %v1627
    %v1666 = vadd.f32 %v1665, %v1629
    %v1667 = vadd.f32 %v1666, %v1631
    %v1668 = vadd.f32 %v1667, %v1633
    %v1669 = vadd.f32 %v1668, %v1635
    %v1670 = vadd.f32 %v1669, %v1637
    %v1671 = vadd.f32 %v1670, %v1639
    %v1672 = vrot.slane %v1671, 4
    %v1673 = vadd.f32 %v1671, %v1672
    %v1674 = vrot.slane %v1673, 2
    %v1675 = vadd.f32 %v1673, %v1674
    %v1676 = vrot.slane %v1675, 1
    %v1677 = vadd.f32 %v1675, %v1676
    %v1678 = vadd.f32 %v1578, %v1580
    %v1679 = vadd.f32 %v1678, %v1582
    %v1680 = vadd.f32 %v1679, %v1584
    %v1681 = vadd.f32 %v1680, %v1586
    %v1682 = vadd.f32 %v1681, %v1588
    %v1683 = vadd.f32 %v1682, %v1590
    %v1684 = vadd.f32 %v1683, %v1592
    %v1685 = vadd.f32 %v1684, %v1594
    %v1686 = vadd.f32 %v1685, %v1596
    %v1687 = vadd.f32 %v1686, %v1598
    %v1688 = vadd.f32 %v1687, %v1600
    %v1689 = vadd.f32 %v1688, %v1602
    %v1690 = vadd.f32 %v1689, %v1604
    %v1691 = vadd.f32 %v1690, %v1606
    %v1692 = vadd.f32 %v1691, %v1608
    %v1693 = vadd.f32 %v1692, %v1610
    %v1694 = vadd.f32 %v1693, %v1612
    %v1695 = vadd.f32 %v1694, %v1614
    %v1696 = vadd.f32 %v1695, %v1616
    %v1697 = vadd.f32 %v1696, %v1618
    %v1698 = vadd.f32 %v1697, %v1620
    %v1699 = vadd.f32 %v1698, %v1622
    %v1700 = vadd.f32 %v1699, %v1624
    %v1701 = vadd.f32 %v1700, %v1626
    %v1702 = vadd.f32 %v1701, %v1628
    %v1703 = vadd.f32 %v1702, %v1630
    %v1704 = vadd.f32 %v1703, %v1632
    %v1705 = vadd.f32 %v1704, %v1634
    %v1706 = vadd.f32 %v1705, %v1636
    %v1707 = vadd.f32 %v1706, %v1638
    %v1708 = vadd.f32 %v1707, %v1640
    %v1709 = vrot.slane %v1708, 4
    %v1710 = vadd.f32 %v1708, %v1709
    %v1711 = vrot.slane %v1710, 2
    %v1712 = vadd.f32 %v1710, %v1711
    %v1713 = vrot.slane %v1712, 1
    %v1714 = vadd.f32 %v1712, %v1713
    %v1717 = vcombine.low %v1677, %v1714
    %v1719 = vunpack.c.l.s4 1966171168
    %v1720 = vunpack.c.0.s8 %v1719
    %v1721 = vlaneseq
    %v1722 = vshrl.u32 %v1721, 7
    %v1723 = vsub.s32 %v1720, %v1722
    %v1724 = vrot.slane %v1717, %v1723
    %v1726 = vunpack.c.l.s4 1966171168
    %v1727 = vunpack.c.0.s8 %v1726
    %v1728 = vlaneseq
    %v1729 = vshrl.u32 %v1728, 7
    %v1730 = vsub.s32 %v1727, %v1729
    %v1731 = vrot.slane %v1724, %v1730
    %1733 = vst.msk [vmem:[%s6] sm:$0x3] %vm1575, %v1731
  $region25: #{_gcn_forward_impl.7} parent=0 // pred_fallthru
    _
  // Predicated region
  $region26: #{_gcn_forward_impl.7} parent=0 // pred_check
    _
  $region27: #{_gcn_forward_impl.7} parent=0 // pred_check_branch
    %1735 = sbr.rel (0) target = $region29
  $region28: #{_gcn_forward_impl.7} parent=0 // pred_region
    _
  $region29: #{_gcn_forward_impl.7} parent=0 // pred_fallthru
    _
  // Predicated region
  $region30: #{_gcn_forward_impl.7} parent=0 // pred_check
    _
  $region31: #{_gcn_forward_impl.7} parent=0 // pred_check_branch
    %1737 = sbr.rel (0) target = $region33
  $region32: #{_gcn_forward_impl.7} parent=0 // pred_region
    _
  $region33: #{_gcn_forward_impl.7} parent=0 // pred_fallthru
    _
  // Predicated region
  $region34: #{_gcn_forward_impl.7} parent=0 // pred_check
    _
  $region35: #{_gcn_forward_impl.7} parent=0 // pred_check_branch
    %1739 = sbr.rel (0) target = $region37
  $region36: #{_gcn_forward_impl.7} parent=0 // pred_region
    _
  $region37: #{_gcn_forward_impl.7} parent=0 // pred_fallthru
    _
  // Predicated region
  $region38: #{_gcn_forward_impl.7} parent=0 // pred_check
    _
  $region39: #{_gcn_forward_impl.7} parent=0 // pred_check_branch
    %1741 = sbr.rel (0) target = $region41
  $region40: #{_gcn_forward_impl.7} parent=0 // pred_region
    _
  $region41: #{_gcn_forward_impl.7} parent=0 // pred_fallthru
    _
  // Predicated region
  $region42: #{_gcn_forward_impl.7} parent=0 // pred_check
    _
  $region43: #{_gcn_forward_impl.7} parent=0 // pred_check_branch
    %1743 = sbr.rel (0) target = $region45
  $region44: #{_gcn_forward_impl.7} parent=0 // pred_region
    _
  $region45: #{_gcn_forward_impl.7} parent=0 // pred_fallthru
    _
  // Predicated region
  $region46: #{_gcn_forward_impl.7} parent=0 // pred_check
    _
  $region47: #{_gcn_forward_impl.7} parent=0 // pred_check_branch
    %1745 = sbr.rel (0) target = $region49
  $region48: #{_gcn_forward_impl.7} parent=0 // pred_region
    _
  $region49: #{_gcn_forward_impl.7} parent=0 // pred_fallthru
    _

// kernel: _gcn_forward_impl.9
$region0: #{_gcn_forward_impl.9}
  #allocation0 [shape = 'u32[]', space=smem, size = 0x4, offset = 0x4, fixed_abs, tag = 'smem constant byte address 0x4 - core index']
  #allocation1 [shape = 'u32[144,128]{1,0:T(1,128)}', space=vmem, size = 0x12000, scoped, tag = 'internal scratch']
  %s0 = inlined_call_operand.vmem [shape: f32[16,256], index: 0, kind: input, shape index: {}]
  %s1 = inlined_call_operand.vmem [shape: bf16[256,256], index: 1, kind: input, shape index: {}]
  %s2 = inlined_call_operand.vmem [shape: f32[1,256], index: 2, kind: input, shape index: {}]
  %s3 = inlined_call_operand.vmem [shape: f32[1,256], index: 3, kind: input, shape index: {}]
  %s4 = inlined_call_operand.vmem [shape: f32[1,256], index: 4, kind: input, shape index: {}]
  %s5 = inlined_call_operand.vmem [shape: bf16[256,128], index: 5, kind: input, shape index: {}]
  %s6 = inlined_call_operand.vmem [shape: f32[1,128], index: 6, kind: input, shape index: {}]
  %s7 = inlined_call_operand.vmem [shape: f32[16,1], index: 7, kind: input, shape index: {}]
  %s8 = inlined_call_operand.vmem [shape: f32[16,128], index: 8, kind: output, shape index: {}]
  %s9 = sld [smem:[#allocation0]]
  $region42: #{_gcn_forward_impl.9} parent=0
    _
  %s11 = ssub.s32 1, %s9
  %s12 = scalar_select 0, %s11, %s9
  // Predicated region
  $region2: #{_gcn_forward_impl.9} parent=0 // pred_check
    _
  $region3: #{_gcn_forward_impl.9} parent=0 // pred_check_branch
    %14 = sbr.rel (0) target = $region5
  $region4: #{_gcn_forward_impl.9} parent=0 // pred_region
    _
  $region5: #{_gcn_forward_impl.9} parent=0 // pred_fallthru
    _
  // Predicated region
  $region6: #{_gcn_forward_impl.9} parent=0 // pred_check
    _
  $region7: #{_gcn_forward_impl.9} parent=0 // pred_check_branch
    %16 = sbr.rel (0) target = $region9
  $region8: #{_gcn_forward_impl.9} parent=0 // pred_region
    _
  $region9: #{_gcn_forward_impl.9} parent=0 // pred_fallthru
    _
  // Predicated region
  $region10: #{_gcn_forward_impl.9} parent=0 // pred_check
    _
  $region11: #{_gcn_forward_impl.9} parent=0 // pred_check_branch
    %18 = sbr.rel (0) target = $region13
  $region12: #{_gcn_forward_impl.9} parent=0 // pred_region
    _
  $region13: #{_gcn_forward_impl.9} parent=0 // pred_fallthru
    _
  // Predicated region
  $region14: #{_gcn_forward_impl.9} parent=0 // pred_check
    _
  $region15: #{_gcn_forward_impl.9} parent=0 // pred_check_branch
    %20 = sbr.rel (0) target = $region17
  $region16: #{_gcn_forward_impl.9} parent=0 // pred_region
    _
  $region17: #{_gcn_forward_impl.9} parent=0 // pred_fallthru
    _
  // Predicated region
  $region18: #{_gcn_forward_impl.9} parent=0 // pred_check
    _
  $region19: #{_gcn_forward_impl.9} parent=0 // pred_check_branch
    %22 = sbr.rel (0) target = $region21
  $region20: #{_gcn_forward_impl.9} parent=0 // pred_region
    _
  $region21: #{_gcn_forward_impl.9} parent=0 // pred_fallthru
    _
  // Predicated region
  $region22: #{_gcn_forward_impl.9} parent=0 // pred_check
    _
  $region23: #{_gcn_forward_impl.9} parent=0 // pred_check_branch
    %24 = sbr.rel (0) target = $region25
  $region24: #{_gcn_forward_impl.9} parent=0 // pred_region
    _
  $region25: #{_gcn_forward_impl.9} parent=0 // pred_fallthru
    _
  // Predicated region
  $region26: #{_gcn_forward_impl.9} parent=0 // pred_check
    _
  $region27: #{_gcn_forward_impl.9} parent=0 // pred_check_branch
    %26 = sbr.rel (0) target = $region29
  $region28: #{_gcn_forward_impl.9} parent=0 // pred_region
    _
  $region29: #{_gcn_forward_impl.9} parent=0 // pred_fallthru
    _
  // Predicated region
  $region30: #{_gcn_forward_impl.9} parent=0 // pred_check
    _
  $region31: #{_gcn_forward_impl.9} parent=0 // pred_check_branch
    %28 = sbr.rel (0) target = $region33
  $region32: #{_gcn_forward_impl.9} parent=0 // pred_region
    _
  $region33: #{_gcn_forward_impl.9} parent=0 // pred_fallthru
    _
  %v30 = vld [vmem:[%s0] sm:$0xff]
  %v31 = vld [vmem:[%s0 + $0x8] sm:$0xff]
  %v32 = vld [vmem:[%s0 + $0x10] sm:$0xff]
  %v33 = vld [vmem:[%s0 + $0x18] sm:$0xff]
  %v34 = vpack.c.bf16 %v32, %v30
  %v35 = vpack.c.bf16 %v33, %v31
  %v36 = vld [vmem:[%s1] sm:$0xff]
  %v37 = vld [vmem:[%s1 + $0x8] sm:$0xff]
  %v38 = vld [vmem:[%s1 + $0x10] sm:$0xff]
  %v39 = vld [vmem:[%s1 + $0x18] sm:$0xff]
  %v40 = vld [vmem:[%s1 + $0x20] sm:$0xff]
  %v41 = vld [vmem:[%s1 + $0x28] sm:$0xff]
  %v42 = vld [vmem:[%s1 + $0x30] sm:$0xff]
  %v43 = vld [vmem:[%s1 + $0x38] sm:$0xff]
  %v44 = vld [vmem:[%s1 + $0x40] sm:$0xff]
  %v45 = vld [vmem:[%s1 + $0x48] sm:$0xff]
  %v46 = vld [vmem:[%s1 + $0x50] sm:$0xff]
  %v47 = vld [vmem:[%s1 + $0x58] sm:$0xff]
  %v48 = vld [vmem:[%s1 + $0x60] sm:$0xff]
  %v49 = vld [vmem:[%s1 + $0x68] sm:$0xff]
  %v50 = vld [vmem:[%s1 + $0x70] sm:$0xff]
  %v51 = vld [vmem:[%s1 + $0x78] sm:$0xff]
  %v52 = vld [vmem:[%s1 + $0x80] sm:$0xff]
  %v53 = vld [vmem:[%s1 + $0x88] sm:$0xff]
  %v54 = vld [vmem:[%s1 + $0x90] sm:$0xff]
  %v55 = vld [vmem:[%s1 + $0x98] sm:$0xff]
  %v56 = vld [vmem:[%s1 + $0xa0] sm:$0xff]
  %v57 = vld [vmem:[%s1 + $0xa8] sm:$0xff]
  %v58 = vld [vmem:[%s1 + $0xb0] sm:$0xff]
  %v59 = vld [vmem:[%s1 + $0xb8] sm:$0xff]
  %v60 = vld [vmem:[%s1 + $0xc0] sm:$0xff]
  %v61 = vld [vmem:[%s1 + $0xc8] sm:$0xff]
  %v62 = vld [vmem:[%s1 + $0xd0] sm:$0xff]
  %v63 = vld [vmem:[%s1 + $0xd8] sm:$0xff]
  %v64 = vld [vmem:[%s1 + $0xe0] sm:$0xff]
  %v65 = vld [vmem:[%s1 + $0xe8] sm:$0xff]
  %v66 = vld [vmem:[%s1 + $0xf0] sm:$0xff]
  %v67 = vld [vmem:[%s1 + $0xf8] sm:$0xff]
  %v68 = vld [vmem:[%s2] sm:$0x3]
  %v70 = vlaneseq
  %v71 = vshrl.u32 %v70, 7
  %v72 = vsub.s32 0, %v71
  %v73 = vrot.slane %v68, %v72
  %v74 = vlaneseq
  %v75 = vshrl.u32 %v74, 7
  %v76 = vsub.s32 1, %v75
  %v77 = vrot.slane %v68, %v76
  %v112 = vunpack.c.l.b16 %v36
  %v113 = vunpack.c.h.b16 %v36
  %v114 = vunpack.c.l.b16 %v37
  %v115 = vunpack.c.h.b16 %v37
  %v116 = vunpack.c.l.b16 %v38
  %v117 = vunpack.c.h.b16 %v38
  %v118 = vunpack.c.l.b16 %v39
  %v119 = vunpack.c.h.b16 %v39
  %v120 = vunpack.c.l.b16 %v40
  %v121 = vunpack.c.h.b16 %v40
  %v122 = vunpack.c.l.b16 %v41
  %v123 = vunpack.c.h.b16 %v41
  %v124 = vunpack.c.l.b16 %v42
  %v125 = vunpack.c.h.b16 %v42
  %v126 = vunpack.c.l.b16 %v43
  %v127 = vunpack.c.h.b16 %v43
  %v128 = vunpack.c.l.b16 %v44
  %v129 = vunpack.c.h.b16 %v44
  %v130 = vunpack.c.l.b16 %v45
  %v131 = vunpack.c.h.b16 %v45
  %v132 = vunpack.c.l.b16 %v46
  %v133 = vunpack.c.h.b16 %v46
  %v134 = vunpack.c.l.b16 %v47
  %v135 = vunpack.c.h.b16 %v47
  %v136 = vunpack.c.l.b16 %v48
  %v137 = vunpack.c.h.b16 %v48
  %v138 = vunpack.c.l.b16 %v49
  %v139 = vunpack.c.h.b16 %v49
  %v140 = vunpack.c.l.b16 %v50
  %v141 = vunpack.c.h.b16 %v50
  %v142 = vunpack.c.l.b16 %v51
  %v143 = vunpack.c.h.b16 %v51
  %v144 = vunpack.c.l.b16 %v52
  %v145 = vunpack.c.h.b16 %v52
  %v146 = vunpack.c.l.b16 %v53
  %v147 = vunpack.c.h.b16 %v53
  %v148 = vunpack.c.l.b16 %v54
  %v149 = vunpack.c.h.b16 %v54
  %v150 = vunpack.c.l.b16 %v55
  %v151 = vunpack.c.h.b16 %v55
  %v152 = vunpack.c.l.b16 %v56
  %v153 = vunpack.c.h.b16 %v56
  %v154 = vunpack.c.l.b16 %v57
  %v155 = vunpack.c.h.b16 %v57
  %v156 = vunpack.c.l.b16 %v58
  %v157 = vunpack.c.h.b16 %v58
  %v158 = vunpack.c.l.b16 %v59
  %v159 = vunpack.c.h.b16 %v59
  %v160 = vunpack.c.l.b16 %v60
  %v161 = vunpack.c.h.b16 %v60
  %v162 = vunpack.c.l.b16 %v61
  %v163 = vunpack.c.h.b16 %v61
  %v164 = vunpack.c.l.b16 %v62
  %v165 = vunpack.c.h.b16 %v62
  %v166 = vunpack.c.l.b16 %v63
  %v167 = vunpack.c.h.b16 %v63
  %v168 = vunpack.c.l.b16 %v64
  %v169 = vunpack.c.h.b16 %v64
  %v170 = vunpack.c.l.b16 %v65
  %v171 = vunpack.c.h.b16 %v65
  %v172 = vunpack.c.l.b16 %v66
  %v173 = vunpack.c.h.b16 %v66
  %v174 = vunpack.c.l.b16 %v67
  %v175 = vunpack.c.h.b16 %v67
  %v176 = vpack.c.b16 %v114, %v112
  %v177 = vpack.c.b16 %v115, %v113
  %v178 = vpack.c.b16 %v118, %v116
  %v179 = vpack.c.b16 %v119, %v117
  %v180 = vpack.c.b16 %v122, %v120
  %v181 = vpack.c.b16 %v123, %v121
  %v182 = vpack.c.b16 %v126, %v124
  %v183 = vpack.c.b16 %v127, %v125
  %v184 = vpack.c.b16 %v130, %v128
  %v185 = vpack.c.b16 %v131, %v129
  %v186 = vpack.c.b16 %v134, %v132
  %v187 = vpack.c.b16 %v135, %v133
  %v188 = vpack.c.b16 %v138, %v136
  %v189 = vpack.c.b16 %v139, %v137
  %v190 = vpack.c.b16 %v142, %v140
  %v191 = vpack.c.b16 %v143, %v141
  %v192 = vpack.c.b16 %v146, %v144
  %v193 = vpack.c.b16 %v147, %v145
  %v194 = vpack.c.b16 %v150, %v148
  %v195 = vpack.c.b16 %v151, %v149
  %v196 = vpack.c.b16 %v154, %v152
  %v197 = vpack.c.b16 %v155, %v153
  %v198 = vpack.c.b16 %v158, %v156
  %v199 = vpack.c.b16 %v159, %v157
  %v200 = vpack.c.b16 %v162, %v160
  %v201 = vpack.c.b16 %v163, %v161
  %v202 = vpack.c.b16 %v166, %v164
  %v203 = vpack.c.b16 %v167, %v165
  %v204 = vpack.c.b16 %v170, %v168
  %v205 = vpack.c.b16 %v171, %v169
  %v206 = vpack.c.b16 %v174, %v172
  %v207 = vpack.c.b16 %v175, %v173
  %240 = vmatprep.subr.bf16.mxu0 %v177
  %241 = vmatpush1.bf16.msra.mxu0 %v176
  %242 = vmatprep.subr.bf16.mxu0 %v179
  %243 = vmatpush1.bf16.msra.mxu0 %v178
  %244 = vmatprep.subr.bf16.mxu0 %v181
  %245 = vmatpush1.bf16.msra.mxu0 %v180
  %246 = vmatprep.subr.bf16.mxu0 %v183
  %247 = vmatpush1.bf16.msra.mxu0 %v182
  %248 = vmatprep.subr.bf16.mxu0 %v185
  %249 = vmatpush1.bf16.msra.mxu0 %v184
  %250 = vmatprep.subr.bf16.mxu0 %v187
  %251 = vmatpush1.bf16.msra.mxu0 %v186
  %252 = vmatprep.subr.bf16.mxu0 %v189
  %253 = vmatpush1.bf16.msra.mxu0 %v188
  %254 = vmatprep.subr.bf16.mxu0 %v191
  %255 = vmatpush1.bf16.msra.mxu0 %v190
  %256 = vmatprep.subr.bf16.mxu0 %v193
  %257 = vmatpush1.bf16.msra.mxu0 %v192
  %258 = vmatprep.subr.bf16.mxu0 %v195
  %259 = vmatpush1.bf16.msra.mxu0 %v194
  %260 = vmatprep.subr.bf16.mxu0 %v197
  %261 = vmatpush1.bf16.msra.mxu0 %v196
  %262 = vmatprep.subr.bf16.mxu0 %v199
  %263 = vmatpush1.bf16.msra.mxu0 %v198
  %264 = vmatprep.subr.bf16.mxu0 %v201
  %265 = vmatpush1.bf16.msra.mxu0 %v200
  %266 = vmatprep.subr.bf16.mxu0 %v203
  %267 = vmatpush1.bf16.msra.mxu0 %v202
  %268 = vmatprep.subr.bf16.mxu0 %v205
  %269 = vmatpush1.bf16.msra.mxu0 %v204
  %270 = vmatprep.subr.bf16.mxu0 %v207
  %271 = vmatpush1.bf16.msra.mxu0 %v206
  %272 = vmatprep.mubr.bf16.mxu0 %v35
  %273 = vmatmul.mubr.bf16.gmra.mrb[0].mxu0 %v34
  %v274 = vpop.f32.mrb[0].mxu0
  %v275 = vadd.f32 %v73, %v274
  %v276 = vpop.f32.mrb[0].mxu0
  %v277 = vadd.f32 %v77, %v276
  %v278 = vpop.f32.mrb[0].mxu0
  %v279 = vadd.f32 %v73, %v278
  %v280 = vpop.f32.mrb[0].mxu0
  %v281 = vadd.f32 %v77, %v280
  %282 = vdwg.mxu0
  %v283 = vld [vmem:[%s7] sm:$0xff]
  %v284 = vld [vmem:[%s7 + $0x8] sm:$0xff]
  %286 = vset.pattern.permute.xlu0 0
  %287 = vperm.xlu0 %286, %v283
  %v288 = vpop.permute.xlu0 %287
  %291 = vset.pattern.permute.xlu0 0
  %292 = vperm.xlu0 %291, %v284
  %v293 = vpop.permute.xlu0 %292
  %v295 = vmul.f32 %v275, %v288
  %v296 = vmul.f32 %v277, %v288
  %v297 = vmul.f32 %v279, %v293
  %v298 = vmul.f32 %v281, %v293
  %v299 = vadd.f32 %v295, %v297
  %v300 = vrot.slane %v299, 4
  %v301 = vadd.f32 %v299, %v300
  %v302 = vrot.slane %v301, 2
  %v303 = vadd.f32 %v301, %v302
  %v304 = vrot.slane %v303, 1
  %v305 = vadd.f32 %v303, %v304
  %v306 = vadd.f32 %v296, %v298
  %v307 = vrot.slane %v306, 4
  %v308 = vadd.f32 %v306, %v307
  %v309 = vrot.slane %v308, 2
  %v310 = vadd.f32 %v308, %v309
  %v311 = vrot.slane %v310, 1
  %v312 = vadd.f32 %v310, %v311
  %v313 = vmul.f32 %v305, 0.25
  %v314 = vmul.f32 %v312, 0.25
  %v315 = vmul.f32 %v295, %v295
  %v316 = vmul.f32 %v296, %v296
  %v317 = vmul.f32 %v297, %v297
  %v318 = vmul.f32 %v298, %v298
  %v319 = vadd.f32 %v315, %v317
  %v320 = vrot.slane %v319, 4
  %v321 = vadd.f32 %v319, %v320
  %v322 = vrot.slane %v321, 2
  %v323 = vadd.f32 %v321, %v322
  %v324 = vrot.slane %v323, 1
  %v325 = vadd.f32 %v323, %v324
  %v326 = vadd.f32 %v316, %v318
  %v327 = vrot.slane %v326, 4
  %v328 = vadd.f32 %v326, %v327
  %v329 = vrot.slane %v328, 2
  %v330 = vadd.f32 %v328, %v329
  %v331 = vrot.slane %v330, 1
  %v332 = vadd.f32 %v330, %v331
  %v333 = vmul.f32 %v325, 0.25
  %v334 = vmul.f32 %v332, 0.25
  %v335 = vmul.f32 %v313, %v313
  %v336 = vmul.f32 %v314, %v314
  %v337 = vsub.f32 %v333, %v335
  %v338 = vsub.f32 %v334, %v336
  %v339 = vmax.f32 %v337, 0.0
  %v340 = vmax.f32 %v338, 0.0
  %v341 = vsub.f32 %v295, %v313
  %v342 = vsub.f32 %v296, %v314
  %v343 = vsub.f32 %v297, %v313
  %v344 = vsub.f32 %v298, %v314
  %v345 = vadd.f32 %v339, 1e-05
  %v346 = vadd.f32 %v340, 1e-05
  %v347 = vrsqrt.pop %v345
  %v348 = vrsqrt.pop %v346
  %v349 = vmul.f32 %v341, %v347
  %v350 = vmul.f32 %v342, %v348
  %v351 = vmul.f32 %v343, %v347
  %v352 = vmul.f32 %v344, %v348
  %v353 = vld [vmem:[%s3] sm:$0x3]
  %v355 = vlaneseq
  %v356 = vshrl.u32 %v355, 7
  %v357 = vsub.s32 0, %v356
  %v358 = vrot.slane %v353, %v357
  %v359 = vlaneseq
  %v360 = vshrl.u32 %v359, 7
  %v361 = vsub.s32 1, %v360
  %v362 = vrot.slane %v353, %v361
  %v365 = vmul.f32 %v349, %v358
  %v366 = vmul.f32 %v350, %v362
  %v367 = vmul.f32 %v351, %v358
  %v368 = vmul.f32 %v352, %v362
  %v369 = vld [vmem:[%s4] sm:$0x3]
  %v371 = vlaneseq
  %v372 = vshrl.u32 %v371, 7
  %v373 = vsub.s32 0, %v372
  %v374 = vrot.slane %v369, %v373
  %v375 = vlaneseq
  %v376 = vshrl.u32 %v375, 7
  %v377 = vsub.s32 1, %v376
  %v378 = vrot.slane %v369, %v377
  %v381 = vadd.f32 %v365, %v374
  %v382 = vadd.f32 %v366, %v378
  %v383 = vadd.f32 %v367, %v374
  %v384 = vadd.f32 %v368, %v378
  %v385 = vmax.f32 %v381, 0.0
  %v386 = vmax.f32 %v382, 0.0
  %v387 = vmax.f32 %v383, 0.0
  %v388 = vmax.f32 %v384, 0.0
  %v389 = vpack.c.bf16 %v387, %v385
  %v390 = vpack.c.bf16 %v388, %v386
  %v391 = vld [vmem:[%s5] sm:$0xf]
  %v392 = vld [vmem:[%s5 + $0x4] sm:$0xf]
  %v393 = vld [vmem:[%s5 + $0x8] sm:$0xf]
  %v394 = vld [vmem:[%s5 + $0xc] sm:$0xf]
  %v395 = vld [vmem:[%s5 + $0x10] sm:$0xf]
  %v396 = vld [vmem:[%s5 + $0x14] sm:$0xf]
  %v397 = vld [vmem:[%s5 + $0x18] sm:$0xf]
  %v398 = vld [vmem:[%s5 + $0x1c] sm:$0xf]
  %v399 = vld [vmem:[%s5 + $0x20] sm:$0xf]
  %v400 = vld [vmem:[%s5 + $0x24] sm:$0xf]
  %v401 = vld [vmem:[%s5 + $0x28] sm:$0xf]
  %v402 = vld [vmem:[%s5 + $0x2c] sm:$0xf]
  %v403 = vld [vmem:[%s5 + $0x30] sm:$0xf]
  %v404 = vld [vmem:[%s5 + $0x34] sm:$0xf]
  %v405 = vld [vmem:[%s5 + $0x38] sm:$0xf]
  %v406 = vld [vmem:[%s5 + $0x3c] sm:$0xf]
  %v407 = vld [vmem:[%s5 + $0x40] sm:$0xf]
  %v408 = vld [vmem:[%s5 + $0x44] sm:$0xf]
  %v409 = vld [vmem:[%s5 + $0x48] sm:$0xf]
  %v410 = vld [vmem:[%s5 + $0x4c] sm:$0xf]
  %v411 = vld [vmem:[%s5 + $0x50] sm:$0xf]
  %v412 = vld [vmem:[%s5 + $0x54] sm:$0xf]
  %v413 = vld [vmem:[%s5 + $0x58] sm:$0xf]
  %v414 = vld [vmem:[%s5 + $0x5c] sm:$0xf]
  %v415 = vld [vmem:[%s5 + $0x60] sm:$0xf]
  %v416 = vld [vmem:[%s5 + $0x64] sm:$0xf]
  %v417 = vld [vmem:[%s5 + $0x68] sm:$0xf]
  %v418 = vld [vmem:[%s5 + $0x6c] sm:$0xf]
  %v419 = vld [vmem:[%s5 + $0x70] sm:$0xf]
  %v420 = vld [vmem:[%s5 + $0x74] sm:$0xf]
  %v421 = vld [vmem:[%s5 + $0x78] sm:$0xf]
  %v422 = vld [vmem:[%s5 + $0x7c] sm:$0xf]
  %v423 = vld [vmem:[%s6] sm:$0x1]
  %v425 = vlaneseq
  %v426 = vshrl.u32 %v425, 7
  %v427 = vsub.s32 0, %v426
  %v428 = vrot.slane %v423, %v427
  %v462 = vunpack.c.l.b16 %v391
  %v463 = vunpack.c.l.b16 %v392
  %v464 = vunpack.c.l.b16 %v393
  %v465 = vunpack.c.l.b16 %v394
  %v466 = vunpack.c.l.b16 %v395
  %v467 = vunpack.c.l.b16 %v396
  %v468 = vunpack.c.l.b16 %v397
  %v469 = vunpack.c.l.b16 %v398
  %v470 = vunpack.c.l.b16 %v399
  %v471 = vunpack.c.l.b16 %v400
  %v472 = vunpack.c.l.b16 %v401
  %v473 = vunpack.c.l.b16 %v402
  %v474 = vunpack.c.l.b16 %v403
  %v475 = vunpack.c.l.b16 %v404
  %v476 = vunpack.c.l.b16 %v405
  %v477 = vunpack.c.l.b16 %v406
  %v478 = vunpack.c.l.b16 %v407
  %v479 = vunpack.c.l.b16 %v408
  %v480 = vunpack.c.l.b16 %v409
  %v481 = vunpack.c.l.b16 %v410
  %v482 = vunpack.c.l.b16 %v411
  %v483 = vunpack.c.l.b16 %v412
  %v484 = vunpack.c.l.b16 %v413
  %v485 = vunpack.c.l.b16 %v414
  %v486 = vunpack.c.l.b16 %v415
  %v487 = vunpack.c.l.b16 %v416
  %v488 = vunpack.c.l.b16 %v417
  %v489 = vunpack.c.l.b16 %v418
  %v490 = vunpack.c.l.b16 %v419
  %v491 = vunpack.c.l.b16 %v420
  %v492 = vunpack.c.l.b16 %v421
  %v493 = vunpack.c.l.b16 %v422
  %v494 = vpack.c.b16 %v463, %v462
  %v495 = vpack.c.b16 %v465, %v464
  %v496 = vpack.c.b16 %v467, %v466
  %v497 = vpack.c.b16 %v469, %v468
  %v498 = vpack.c.b16 %v471, %v470
  %v499 = vpack.c.b16 %v473, %v472
  %v500 = vpack.c.b16 %v475, %v474
  %v501 = vpack.c.b16 %v477, %v476
  %v502 = vpack.c.b16 %v479, %v478
  %v503 = vpack.c.b16 %v481, %v480
  %v504 = vpack.c.b16 %v483, %v482
  %v505 = vpack.c.b16 %v485, %v484
  %v506 = vpack.c.b16 %v487, %v486
  %v507 = vpack.c.b16 %v489, %v488
  %v508 = vpack.c.b16 %v491, %v490
  %v509 = vpack.c.b16 %v493, %v492
  %526 = vmatprep.subr.bf16.mxu0 0
  %527 = vmatpush1.bf16.msra.mxu0 %v494
  %528 = vmatprep.subr.bf16.mxu0 0
  %529 = vmatpush1.bf16.msra.mxu0 %v495
  %530 = vmatprep.subr.bf16.mxu0 0
  %531 = vmatpush1.bf16.msra.mxu0 %v496
  %532 = vmatprep.subr.bf16.mxu0 0
  %533 = vmatpush1.bf16.msra.mxu0 %v497
  %534 = vmatprep.subr.bf16.mxu0 0
  %535 = vmatpush1.bf16.msra.mxu0 %v498
  %536 = vmatprep.subr.bf16.mxu0 0
  %537 = vmatpush1.bf16.msra.mxu0 %v499
  %538 = vmatprep.subr.bf16.mxu0 0
  %539 = vmatpush1.bf16.msra.mxu0 %v500
  %540 = vmatprep.subr.bf16.mxu0 0
  %541 = vmatpush1.bf16.msra.mxu0 %v501
  %542 = vmatprep.subr.bf16.mxu0 0
  %543 = vmatpush1.bf16.msra.mxu0 %v502
  %544 = vmatprep.subr.bf16.mxu0 0
  %545 = vmatpush1.bf16.msra.mxu0 %v503
  %546 = vmatprep.subr.bf16.mxu0 0
  %547 = vmatpush1.bf16.msra.mxu0 %v504
  %548 = vmatprep.subr.bf16.mxu0 0
  %549 = vmatpush1.bf16.msra.mxu0 %v505
  %550 = vmatprep.subr.bf16.mxu0 0
  %551 = vmatpush1.bf16.msra.mxu0 %v506
  %552 = vmatprep.subr.bf16.mxu0 0
  %553 = vmatpush1.bf16.msra.mxu0 %v507
  %554 = vmatprep.subr.bf16.mxu0 0
  %555 = vmatpush1.bf16.msra.mxu0 %v508
  %556 = vmatprep.subr.bf16.mxu0 0
  %557 = vmatpush1.bf16.msra.mxu0 %v509
  %558 = vmatprep.mubr.bf16.mxu0 %v390
  %559 = vmatmul.mubr.bf16.gmra.mrb[0].mxu0 %v389
  %v560 = vpop.f32.mrb[0].mxu0
  %v561 = vadd.f32 %v428, %v560
  %v562 = vpop.f32.mrb[0].mxu0
  %v563 = vpop.f32.mrb[0].mxu0
  %v564 = vadd.f32 %v428, %v563
  %v565 = vpop.f32.mrb[0].mxu0
  %566 = vdwg.mxu0
  %567 = vst [vmem:[%s8] sm:$0xff] %v561
  %568 = vst [vmem:[%s8 + $0x8] sm:$0xff] %v564
  // Predicated region
  $region34: #{_gcn_forward_impl.9} parent=0 // pred_check
    _
  $region35: #{_gcn_forward_impl.9} parent=0 // pred_check_branch
    %570 = sbr.rel (0) target = $region37
  $region36: #{_gcn_forward_impl.9} parent=0 // pred_region
    _
  $region37: #{_gcn_forward_impl.9} parent=0 // pred_fallthru
    _
  // Predicated region
  $region38: #{_gcn_forward_impl.9} parent=0 // pred_check
    _
  $region39: #{_gcn_forward_impl.9} parent=0 // pred_check_branch
    %572 = sbr.rel (0) target = $region41
  $region40: #{_gcn_forward_impl.9} parent=0 // pred_region
    _
  $region41: #{_gcn_forward_impl.9} parent=0 // pred_fallthru
    _

</llo_original>
